<compile_context>
chip_gen: v7x
topology: tpu7x:2x2x1
jax: 0.10.0
libtpu: 0.0.40
codegen_flags: <defaults>
</compile_context>

<pallas_src>
import jax
import jax.numpy as jnp
import numpy as np
from jax.experimental import pallas as pl
from jax.experimental.pallas import tpu as pltpu

LANE = 128  # TPU lane width; all output / reduction dims are padded to this


def _round_up(x, m):
    return (x + m - 1) // m * m


# ----------------------------- Pallas kernels ------------------------------

def _conv_relu_pool_kernel(x_ref, w_ref, b_ref, o_ref):
    """Fused conv(as matmul) + bias + ReLU + 2x2/2 max-pool for ONE image.

    x_ref: (1, 4, P, Kp)  im2col patches; axis 1 holds the 4 taps of each
                          2x2 pool window, P = number of pool windows.
    w_ref: (Kp, 128)      packed conv weights (K rows and Cout cols zero-padded)
    b_ref: (1, 128)       packed bias
    o_ref: (1, P, 128)    pooled+ReLU output, lane-dense channels
    """
    w = w_ref[...]
    acc = jnp.dot(x_ref[0, 0], w, preferred_element_type=jnp.float32)
    for s in range(1, 4):
        acc = jnp.maximum(
            acc, jnp.dot(x_ref[0, s], w, preferred_element_type=jnp.float32))
    # pool(relu(conv+b)) == relu(max_s(dot_s) + b): bias is tap-uniform,
    # ReLU is monotone non-decreasing.
    o_ref[0] = jnp.maximum(acc + b_ref[...], 0.0)


def _fc_fused_kernel(x_ref, w1_ref, b1_ref, w2_ref, b2_ref, w3_ref, b3_ref,
                     o_ref):
    """fc1+ReLU -> fc2+ReLU -> fc3, fused; weights stay resident in VMEM."""
    h = jnp.dot(x_ref[...], w1_ref[...], preferred_element_type=jnp.float32)
    h = jnp.maximum(h + b1_ref[...], 0.0)
    h = jnp.dot(h, w2_ref[...], preferred_element_type=jnp.float32)
    h = jnp.maximum(h + b2_ref[...], 0.0)
    h = jnp.dot(h, w3_ref[...], preferred_element_type=jnp.float32)
    o_ref[...] = h + b3_ref[...]


# ------------------------------- wrappers -----------------------------------

def conv_relu_pool(x_nhwc, w_packed, b_packed, k):
    """'Valid' conv (stride 1) + bias + ReLU + 2x2/2 max-pool, one pallas_call."""
    B, H, W, C = x_nhwc.shape
    Ho, Wo = H - k + 1, W - k + 1
    Hp, Wp = Ho // 2, Wo // 2
    P = Hp * Wp
    F = C * k * k
    Kp, N = w_packed.shape
    assert Kp >= F and N == LANE

    # im2col (XLA side), feature order = (c, kh, kw) to match OIHW weights.
    taps = jnp.stack([x_nhwc[:, di:di + Ho, dj:dj + Wo, :]
                      for di in range(k) for dj in range(k)], axis=-1)
    patches = taps.reshape(B, Ho, Wo, F)
    # group the 4 taps of each 2x2 pool window onto their own axis:
    # (B, Hp, 2, Wp, 2, F) -> (B, 4, Hp*Wp, F)
    patches = patches.reshape(B, Hp, 2, Wp, 2, F)
    patches = patches.transpose(0, 2, 4, 1, 3, 5).reshape(B, 4, P, F)
    patches = jnp.pad(patches, ((0, 0), (0, 0), (0, 0), (0, Kp - F)))

    return pl.pallas_call(
        _conv_relu_pool_kernel,
        out_shape=jax.ShapeDtypeStruct((B, P, N), jnp.float32),
        grid=(B,),
        in_specs=[
            pl.BlockSpec((1, 4, P, Kp), lambda b: (b, 0, 0, 0)),
            pl.BlockSpec((Kp, N), lambda b: (0, 0)),
            pl.BlockSpec((1, N), lambda b: (0, 0)),
        ],
        out_specs=pl.BlockSpec((1, P, N), lambda b: (b, 0, 0)),
        compiler_params=pltpu.CompilerParams(
            dimension_semantics=("parallel",)),
    )(patches, w_packed, b_packed)


def fc_fused(x, w1, b1, w2, b2, w3, b3):
    """Fused fc1->fc2->fc3 over a tiled, parallel batch grid."""
    B, K = x.shape
    TM = min(_round_up(B, 8), 256)
    Bp = _round_up(B, TM)
    if Bp != B:
        x = jnp.pad(x, ((0, Bp - B), (0, 0)))
    N1, N2, N3 = w1.shape[1], w2.shape[1], w3.shape[1]
    out = pl.pallas_call(
        _fc_fused_kernel,
        out_shape=jax.ShapeDtypeStruct((Bp, N3), jnp.float32),
        grid=(Bp // TM,),
        in_specs=[
            pl.BlockSpec((TM, K), lambda i: (i, 0)),
            pl.BlockSpec((K, N1), lambda i: (0, 0)),
            pl.BlockSpec((1, N1), lambda i: (0, 0)),
            pl.BlockSpec((N1, N2), lambda i: (0, 0)),
            pl.BlockSpec((1, N2), lambda i: (0, 0)),
            pl.BlockSpec((N2, N3), lambda i: (0, 0)),
            pl.BlockSpec((1, N3), lambda i: (0, 0)),
        ],
        out_specs=pl.BlockSpec((TM, N3), lambda i: (i, 0)),
        compiler_params=pltpu.CompilerParams(
            dimension_semantics=("parallel",)),
    )(x, w1, b1, w2, b2, w3, b3)
    return out[:B]


# --------------------------- params & packing --------------------------------

def init_params(key):
    ks = jax.random.split(key, 10)

    def u(k, shape, fan_in):
        bound = 1.0 / float(np.sqrt(fan_in))
        return jax.random.uniform(k, shape, jnp.float32, -bound, bound)

    return {
        "w1": u(ks[0], (6, 3, 5, 5), 3 * 25),
        "b1": u(ks[1], (6,), 3 * 25),
        "w2": u(ks[2], (16, 6, 5, 5), 6 * 25),
        "b2": u(ks[3], (16,), 6 * 25),
        "wf1": u(ks[4], (120, 400), 400),
        "bf1": u(ks[5], (120,), 400),
        "wf2": u(ks[6], (84, 120), 120),
        "bf2": u(ks[7], (84,), 120),
        "wf3": u(ks[8], (10, 84), 84),
        "bf3": u(ks[9], (10,), 84),
    }


def pack_params(p):
    """One-time weight packing: transpose, pad to lane-dense shapes, and fold
    the PyTorch NCHW flatten permutation into the fc1 weight row order."""

    def pad_to(a, shape):
        return jnp.pad(a, [(0, t - s) for s, t in zip(a.shape, shape)])

    # conv1: (6,3,5,5) -> (75, 6) -> (128, 128)
    w1 = pad_to(p["w1"].reshape(6, -1).T, (LANE, LANE))
    b1 = pad_to(p["b1"], (LANE,)).reshape(1, LANE)
    # conv2: (16,6,5,5) -> (150, 16) -> (256, 128)
    w2 = pad_to(p["w2"].reshape(16, -1).T, (2 * LANE, LANE))
    b2 = pad_to(p["b2"], (LANE,)).reshape(1, LANE)
    # fc1: torch col index = c*25 + p (c<16, p<25).  Our flattened activation
    # has feature index q*128 + c (q = pooled spatial position, c padded to
    # 128), so reorder/pad wf1 rows accordingly: (25*128, 128).
    wf1 = p["wf1"].reshape(120, 16, 25)          # [out, c, p]
    wf1 = jnp.transpose(wf1, (2, 1, 0))          # [p, c, out]
    wf1 = pad_to(wf1, (25, LANE, LANE)).reshape(25 * LANE, LANE)
    bf1 = pad_to(p["bf1"], (LANE,)).reshape(1, LANE)
    # fc2 / fc3: transpose + pad to (128, 128)
    wf2 = pad_to(p["wf2"].T, (LANE, LANE))
    bf2 = pad_to(p["bf2"], (LANE,)).reshape(1, LANE)
    wf3 = pad_to(p["wf3"].T, (LANE, LANE))
    bf3 = pad_to(p["bf3"], (LANE,)).reshape(1, LANE)
    return dict(w1=w1, b1=b1, w2=w2, b2=b2,
                wf1=wf1, bf1=bf1, wf2=wf2, bf2=bf2, wf3=wf3, bf3=bf3)


# ------------------------------- the network --------------------------------

def net_forward(packed, x_nchw):
    B = x_nchw.shape[0]
    x = jnp.transpose(x_nchw, (0, 2, 3, 1))                    # NCHW -> NHWC
    y1 = conv_relu_pool(x, packed["w1"], packed["b1"], 5)       # (B, 196, 128)
    y1 = y1.reshape(B, 14, 14, LANE)[:, :, :, :6]               # real channels
    y2 = conv_relu_pool(y1, packed["w2"], packed["b2"], 5)      # (B, 25, 128)
    feat = y2.reshape(B, 25 * LANE)        # row order matches packed fc1 rows
    logits = fc_fused(feat, packed["wf1"], packed["bf1"],
                      packed["wf2"], packed["bf2"],
                      packed["wf3"], packed["bf3"])             # (B, 128)
    return logits[:, :10]


def net_forward_ref(params, x):
    """Pure-JAX reference matching PyTorch semantics (for validation)."""
    y = jax.lax.conv_general_dilated(
        x, params["w1"], (1, 1), "VALID",
        dimension_numbers=("NCHW", "OIHW", "NCHW"))
    y = jax.nn.relu(y + params["b1"][None, :, None, None])
    y = jax.lax.reduce_window(y, -jnp.inf, jax.lax.max,
                              (1, 1, 2, 2), (1, 1, 2, 2), "VALID")
    y = jax.lax.conv_general_dilated(
        y, params["w2"], (1, 1), "VALID",
        dimension_numbers=("NCHW", "OIHW", "NCHW"))
    y = jax.nn.relu(y + params["b2"][None, :, None, None])
    y = jax.lax.reduce_window(y, -jnp.inf, jax.lax.max,
                              (1, 1, 2, 2), (1, 1, 2, 2), "VALID")
    y = y.reshape(y.shape[0], -1)
    y = jax.nn.relu(y @ params["wf1"].T + params["bf1"])
    y = jax.nn.relu(y @ params["wf2"].T + params["bf2"])
    return y @ params["wf3"].T + params["bf3"]


if __name__ == "__main__":
    key = jax.random.PRNGKey(0)
    pkey, xkey = jax.random.split(key)
    params = init_params(pkey)
    packed = pack_params(params)
    # Input shape fixed by the architecture: fc1 = 16*5*5 implies 32x32x3.
    x = jax.random.normal(xkey, (2, 3, 32, 32), jnp.float32)

    out = jax.jit(net_forward)(packed, x)
    out = jax.block_until_ready(out)
    assert out.shape == (2, 10), out.shape

    ref = net_forward_ref(params, x)
    np.testing.assert_allclose(np.asarray(out), np.asarray(ref),
                               atol=2e-3, rtol=2e-3)
    print("KERNEL_OK")
</pallas_src>

<mosaic_0001>
module attributes {stable_mosaic.version = 11 : i64} {
  func.func @_conv_relu_pool_kernel(%arg0: i32, %arg1: memref<1x4x196x128xf32, #tpu.memory_space<vmem>>, %arg2: memref<128x128xf32, #tpu.memory_space<vmem>>, %arg3: memref<1x128xf32, #tpu.memory_space<vmem>>, %arg4: memref<1x196x128xf32, #tpu.memory_space<vmem>>) attributes {dimension_semantics = [#tpu.dimension_semantics<parallel>], iteration_bounds = array<i64: 2>, scalar_prefetch = 0 : i64, scratch_operands = 0 : i64, tpu.core_type = #tpu.core_type<tc>, window_params = [{transform_indices = @transform_0, window_bounds = array<i64: 1, 4, 196, 128>}, {pipeline_mode = #tpu.pipeline_mode<synchronous>, transform_indices = @transform_1, window_bounds = array<i64: 128, 128>}, {pipeline_mode = #tpu.pipeline_mode<synchronous>, transform_indices = @transform_2, window_bounds = array<i64: 1, 128>}, {transform_indices = @transform_3, window_bounds = array<i64: 1, 196, 128>}]} {
    %c0 = arith.constant 0 : index
    %c0_0 = arith.constant 0 : index
    %0 = vector.load %arg2[%c0, %c0_0] : memref<128x128xf32, #tpu.memory_space<vmem>>, vector<128x128xf32>
    %c0_1 = arith.constant 0 : index
    %c0_2 = arith.constant 0 : index
    %c0_3 = arith.constant 0 : index
    %c0_4 = arith.constant 0 : index
    %1 = vector.load %arg1[%c0_1, %c0_2, %c0_3, %c0_4] : memref<1x4x196x128xf32, #tpu.memory_space<vmem>>, vector<1x1x196x128xf32>
    %2 = vector.shape_cast %1 : vector<1x1x196x128xf32> to vector<196x128xf32>
    %cst = arith.constant dense<0.000000e+00> : vector<196x128xf32>
    %3 = tpu.matmul %2, %0, %cst {dimension_numbers = #tpu.dot_dimension_numbers<[1], [0], [0], [1], [0, 0, 1, 1], [], []>} : vector<196x128xf32>, vector<128x128xf32>, vector<196x128xf32> -> vector<196x128xf32>
    %c0_5 = arith.constant 0 : index
    %c1 = arith.constant 1 : index
    %c0_6 = arith.constant 0 : index
    %c0_7 = arith.constant 0 : index
    %4 = vector.load %arg1[%c0_5, %c1, %c0_6, %c0_7] : memref<1x4x196x128xf32, #tpu.memory_space<vmem>>, vector<1x1x196x128xf32>
    %5 = vector.shape_cast %4 : vector<1x1x196x128xf32> to vector<196x128xf32>
    %cst_8 = arith.constant dense<0.000000e+00> : vector<196x128xf32>
    %6 = tpu.matmul %5, %0, %cst_8 {dimension_numbers = #tpu.dot_dimension_numbers<[1], [0], [0], [1], [0, 0, 1, 1], [], []>} : vector<196x128xf32>, vector<128x128xf32>, vector<196x128xf32> -> vector<196x128xf32>
    %7 = arith.maximumf %3, %6 : vector<196x128xf32>
    %c0_9 = arith.constant 0 : index
    %c2 = arith.constant 2 : index
    %c0_10 = arith.constant 0 : index
    %c0_11 = arith.constant 0 : index
    %8 = vector.load %arg1[%c0_9, %c2, %c0_10, %c0_11] : memref<1x4x196x128xf32, #tpu.memory_space<vmem>>, vector<1x1x196x128xf32>
    %9 = vector.shape_cast %8 : vector<1x1x196x128xf32> to vector<196x128xf32>
    %cst_12 = arith.constant dense<0.000000e+00> : vector<196x128xf32>
    %10 = tpu.matmul %9, %0, %cst_12 {dimension_numbers = #tpu.dot_dimension_numbers<[1], [0], [0], [1], [0, 0, 1, 1], [], []>} : vector<196x128xf32>, vector<128x128xf32>, vector<196x128xf32> -> vector<196x128xf32>
    %11 = arith.maximumf %7, %10 : vector<196x128xf32>
    %c0_13 = arith.constant 0 : index
    %c3 = arith.constant 3 : index
    %c0_14 = arith.constant 0 : index
    %c0_15 = arith.constant 0 : index
    %12 = vector.load %arg1[%c0_13, %c3, %c0_14, %c0_15] : memref<1x4x196x128xf32, #tpu.memory_space<vmem>>, vector<1x1x196x128xf32>
    %13 = vector.shape_cast %12 : vector<1x1x196x128xf32> to vector<196x128xf32>
    %cst_16 = arith.constant dense<0.000000e+00> : vector<196x128xf32>
    %14 = tpu.matmul %13, %0, %cst_16 {dimension_numbers = #tpu.dot_dimension_numbers<[1], [0], [0], [1], [0, 0, 1, 1], [], []>} : vector<196x128xf32>, vector<128x128xf32>, vector<196x128xf32> -> vector<196x128xf32>
    %15 = arith.maximumf %11, %14 : vector<196x128xf32>
    %c0_17 = arith.constant 0 : index
    %c0_18 = arith.constant 0 : index
    %16 = vector.load %arg3[%c0_17, %c0_18] : memref<1x128xf32, #tpu.memory_space<vmem>>, vector<1x128xf32>
    %17 = vector.broadcast %16 : vector<1x128xf32> to vector<196x128xf32>
    %18 = arith.addf %15, %17 : vector<196x128xf32>
    %cst_19 = arith.constant 0.000000e+00 : f32
    %19 = vector.broadcast %cst_19 : f32 to vector<196x128xf32>
    %20 = arith.maximumf %18, %19 : vector<196x128xf32>
    %c0_20 = arith.constant 0 : index
    %c0_21 = arith.constant 0 : index
    %c0_22 = arith.constant 0 : index
    %21 = vector.load %arg4[%c0_20, %c0_21, %c0_22] : memref<1x196x128xf32, #tpu.memory_space<vmem>>, vector<1x196x128xf32>
    %22 = vector.shape_cast %21 : vector<1x196x128xf32> to vector<196x128xf32>
    %23 = vector.shape_cast %20 : vector<196x128xf32> to vector<1x196x128xf32>
    tpu.vector_store %arg4[%c0_20, %c0_21, %c0_22], %23 {strides = array<i32>} : memref<1x196x128xf32, #tpu.memory_space<vmem>>, vector<1x196x128xf32>,
    return
  }
  func.func @transform_0(%arg0: i32) -> (i32, i32, i32, i32) {
    %c0_i32 = arith.constant 0 : i32
    %c0_i32_0 = arith.constant 0 : i32
    %c0_i32_1 = arith.constant 0 : i32
    %c0_i32_2 = arith.constant 0 : i32
    return %arg0, %c0_i32, %c0_i32_0, %c0_i32_1 : i32, i32, i32, i32
  }
  func.func @transform_1(%arg0: i32) -> (i32, i32) {
    %c0_i32 = arith.constant 0 : i32
    %c0_i32_0 = arith.constant 0 : i32
    %c0_i32_1 = arith.constant 0 : i32
    return %c0_i32, %c0_i32_0 : i32, i32
  }
  func.func @transform_2(%arg0: i32) -> (i32, i32) {
    %c0_i32 = arith.constant 0 : i32
    %c0_i32_0 = arith.constant 0 : i32
    %c0_i32_1 = arith.constant 0 : i32
    return %c0_i32, %c0_i32_0 : i32, i32
  }
  func.func @transform_3(%arg0: i32) -> (i32, i32, i32) {
    %c0_i32 = arith.constant 0 : i32
    %c0_i32_0 = arith.constant 0 : i32
    %c0_i32_1 = arith.constant 0 : i32
    return %arg0, %c0_i32, %c0_i32_0 : i32, i32, i32
  }
}

module attributes {stable_mosaic.version = 11 : i64} {
  func.func @_conv_relu_pool_kernel(%arg0: i32, %arg1: memref<1x4x25x256xf32, #tpu.memory_space<vmem>>, %arg2: memref<256x128xf32, #tpu.memory_space<vmem>>, %arg3: memref<1x128xf32, #tpu.memory_space<vmem>>, %arg4: memref<1x25x128xf32, #tpu.memory_space<vmem>>) attributes {dimension_semantics = [#tpu.dimension_semantics<parallel>], iteration_bounds = array<i64: 2>, scalar_prefetch = 0 : i64, scratch_operands = 0 : i64, tpu.core_type = #tpu.core_type<tc>, window_params = [{transform_indices = @transform_0, window_bounds = array<i64: 1, 4, 25, 256>}, {pipeline_mode = #tpu.pipeline_mode<synchronous>, transform_indices = @transform_1, window_bounds = array<i64: 256, 128>}, {pipeline_mode = #tpu.pipeline_mode<synchronous>, transform_indices = @transform_2, window_bounds = array<i64: 1, 128>}, {transform_indices = @transform_3, window_bounds = array<i64: 1, 25, 128>}]} {
    %c0 = arith.constant 0 : index
    %c0_0 = arith.constant 0 : index
    %0 = vector.load %arg2[%c0, %c0_0] : memref<256x128xf32, #tpu.memory_space<vmem>>, vector<256x128xf32>
    %c0_1 = arith.constant 0 : index
    %c0_2 = arith.constant 0 : index
    %c0_3 = arith.constant 0 : index
    %c0_4 = arith.constant 0 : index
    %1 = vector.load %arg1[%c0_1, %c0_2, %c0_3, %c0_4] : memref<1x4x25x256xf32, #tpu.memory_space<vmem>>, vector<1x1x25x256xf32>
    %2 = vector.shape_cast %1 : vector<1x1x25x256xf32> to vector<25x256xf32>
    %cst = arith.constant dense<0.000000e+00> : vector<25x128xf32>
    %3 = tpu.matmul %2, %0, %cst {dimension_numbers = #tpu.dot_dimension_numbers<[1], [0], [0], [1], [0, 0, 1, 1], [], []>} : vector<25x256xf32>, vector<256x128xf32>, vector<25x128xf32> -> vector<25x128xf32>
    %c0_5 = arith.constant 0 : index
    %c1 = arith.constant 1 : index
    %c0_6 = arith.constant 0 : index
    %c0_7 = arith.constant 0 : index
    %4 = vector.load %arg1[%c0_5, %c1, %c0_6, %c0_7] : memref<1x4x25x256xf32, #tpu.memory_space<vmem>>, vector<1x1x25x256xf32>
    %5 = vector.shape_cast %4 : vector<1x1x25x256xf32> to vector<25x256xf32>
    %cst_8 = arith.constant dense<0.000000e+00> : vector<25x128xf32>
    %6 = tpu.matmul %5, %0, %cst_8 {dimension_numbers = #tpu.dot_dimension_numbers<[1], [0], [0], [1], [0, 0, 1, 1], [], []>} : vector<25x256xf32>, vector<256x128xf32>, vector<25x128xf32> -> vector<25x128xf32>
    %7 = arith.maximumf %3, %6 : vector<25x128xf32>
    %c0_9 = arith.constant 0 : index
    %c2 = arith.constant 2 : index
    %c0_10 = arith.constant 0 : index
    %c0_11 = arith.constant 0 : index
    %8 = vector.load %arg1[%c0_9, %c2, %c0_10, %c0_11] : memref<1x4x25x256xf32, #tpu.memory_space<vmem>>, vector<1x1x25x256xf32>
    %9 = vector.shape_cast %8 : vector<1x1x25x256xf32> to vector<25x256xf32>
    %cst_12 = arith.constant dense<0.000000e+00> : vector<25x128xf32>
    %10 = tpu.matmul %9, %0, %cst_12 {dimension_numbers = #tpu.dot_dimension_numbers<[1], [0], [0], [1], [0, 0, 1, 1], [], []>} : vector<25x256xf32>, vector<256x128xf32>, vector<25x128xf32> -> vector<25x128xf32>
    %11 = arith.maximumf %7, %10 : vector<25x128xf32>
    %c0_13 = arith.constant 0 : index
    %c3 = arith.constant 3 : index
    %c0_14 = arith.constant 0 : index
    %c0_15 = arith.constant 0 : index
    %12 = vector.load %arg1[%c0_13, %c3, %c0_14, %c0_15] : memref<1x4x25x256xf32, #tpu.memory_space<vmem>>, vector<1x1x25x256xf32>
    %13 = vector.shape_cast %12 : vector<1x1x25x256xf32> to vector<25x256xf32>
    %cst_16 = arith.constant dense<0.000000e+00> : vector<25x128xf32>
    %14 = tpu.matmul %13, %0, %cst_16 {dimension_numbers = #tpu.dot_dimension_numbers<[1], [0], [0], [1], [0, 0, 1, 1], [], []>} : vector<25x256xf32>, vector<256x128xf32>, vector<25x128xf32> -> vector<25x128xf32>
    %15 = arith.maximumf %11, %14 : vector<25x128xf32>
    %c0_17 = arith.constant 0 : index
    %c0_18 = arith.constant 0 : index
    %16 = vector.load %arg3[%c0_17, %c0_18] : memref<1x128xf32, #tpu.memory_space<vmem>>, vector<1x128xf32>
    %17 = vector.broadcast %16 : vector<1x128xf32> to vector<25x128xf32>
    %18 = arith.addf %15, %17 : vector<25x128xf32>
    %cst_19 = arith.constant 0.000000e+00 : f32
    %19 = vector.broadcast %cst_19 : f32 to vector<25x128xf32>
    %20 = arith.maximumf %18, %19 : vector<25x128xf32>
    %c0_20 = arith.constant 0 : index
    %c0_21 = arith.constant 0 : index
    %c0_22 = arith.constant 0 : index
    %21 = vector.load %arg4[%c0_20, %c0_21, %c0_22] : memref<1x25x128xf32, #tpu.memory_space<vmem>>, vector<1x25x128xf32>
    %22 = vector.shape_cast %21 : vector<1x25x128xf32> to vector<25x128xf32>
    %23 = vector.shape_cast %20 : vector<25x128xf32> to vector<1x25x128xf32>
    tpu.vector_store %arg4[%c0_20, %c0_21, %c0_22], %23 {strides = array<i32>} : memref<1x25x128xf32, #tpu.memory_space<vmem>>, vector<1x25x128xf32>,
    return
  }
  func.func @transform_0(%arg0: i32) -> (i32, i32, i32, i32) {
    %c0_i32 = arith.constant 0 : i32
    %c0_i32_0 = arith.constant 0 : i32
    %c0_i32_1 = arith.constant 0 : i32
    %c0_i32_2 = arith.constant 0 : i32
    return %arg0, %c0_i32, %c0_i32_0, %c0_i32_1 : i32, i32, i32, i32
  }
  func.func @transform_1(%arg0: i32) -> (i32, i32) {
    %c0_i32 = arith.constant 0 : i32
    %c0_i32_0 = arith.constant 0 : i32
    %c0_i32_1 = arith.constant 0 : i32
    return %c0_i32, %c0_i32_0 : i32, i32
  }
  func.func @transform_2(%arg0: i32) -> (i32, i32) {
    %c0_i32 = arith.constant 0 : i32
    %c0_i32_0 = arith.constant 0 : i32
    %c0_i32_1 = arith.constant 0 : i32
    return %c0_i32, %c0_i32_0 : i32, i32
  }
  func.func @transform_3(%arg0: i32) -> (i32, i32, i32) {
    %c0_i32 = arith.constant 0 : i32
    %c0_i32_0 = arith.constant 0 : i32
    %c0_i32_1 = arith.constant 0 : i32
    return %arg0, %c0_i32, %c0_i32_0 : i32, i32, i32
  }
}

module attributes {stable_mosaic.version = 11 : i64} {
  func.func @_fc_fused_kernel(%arg0: i32, %arg1: memref<8x3200xf32, #tpu.memory_space<vmem>>, %arg2: memref<3200x128xf32, #tpu.memory_space<vmem>>, %arg3: memref<1x128xf32, #tpu.memory_space<vmem>>, %arg4: memref<128x128xf32, #tpu.memory_space<vmem>>, %arg5: memref<1x128xf32, #tpu.memory_space<vmem>>, %arg6: memref<128x128xf32, #tpu.memory_space<vmem>>, %arg7: memref<1x128xf32, #tpu.memory_space<vmem>>, %arg8: memref<8x128xf32, #tpu.memory_space<vmem>>) attributes {dimension_semantics = [#tpu.dimension_semantics<parallel>], iteration_bounds = array<i64: 1>, scalar_prefetch = 0 : i64, scratch_operands = 0 : i64, tpu.core_type = #tpu.core_type<tc>, window_params = [{transform_indices = @transform_0, window_bounds = array<i64: 8, 3200>}, {pipeline_mode = #tpu.pipeline_mode<synchronous>, transform_indices = @transform_1, window_bounds = array<i64: 3200, 128>}, {pipeline_mode = #tpu.pipeline_mode<synchronous>, transform_indices = @transform_2, window_bounds = array<i64: 1, 128>}, {pipeline_mode = #tpu.pipeline_mode<synchronous>, transform_indices = @transform_3, window_bounds = array<i64: 128, 128>}, {pipeline_mode = #tpu.pipeline_mode<synchronous>, transform_indices = @transform_4, window_bounds = array<i64: 1, 128>}, {pipeline_mode = #tpu.pipeline_mode<synchronous>, transform_indices = @transform_5, window_bounds = array<i64: 128, 128>}, {pipeline_mode = #tpu.pipeline_mode<synchronous>, transform_indices = @transform_6, window_bounds = array<i64: 1, 128>}, {transform_indices = @transform_7, window_bounds = array<i64: 8, 128>}]} {
    %c0 = arith.constant 0 : index
    %c0_0 = arith.constant 0 : index
    %0 = vector.load %arg1[%c0, %c0_0] : memref<8x3200xf32, #tpu.memory_space<vmem>>, vector<8x3200xf32>
    %c0_1 = arith.constant 0 : index
    %c0_2 = arith.constant 0 : index
    %1 = vector.load %arg2[%c0_1, %c0_2] : memref<3200x128xf32, #tpu.memory_space<vmem>>, vector<3200x128xf32>
    %cst = arith.constant dense<0.000000e+00> : vector<8x128xf32>
    %2 = tpu.matmul %0, %1, %cst {dimension_numbers = #tpu.dot_dimension_numbers<[1], [0], [0], [1], [0, 0, 1, 1], [], []>} : vector<8x3200xf32>, vector<3200x128xf32>, vector<8x128xf32> -> vector<8x128xf32>
    %c0_3 = arith.constant 0 : index
    %c0_4 = arith.constant 0 : index
    %3 = vector.load %arg3[%c0_3, %c0_4] : memref<1x128xf32, #tpu.memory_space<vmem>>, vector<1x128xf32>
    %4 = vector.broadcast %3 : vector<1x128xf32> to vector<8x128xf32>
    %5 = arith.addf %2, %4 : vector<8x128xf32>
    %cst_5 = arith.constant 0.000000e+00 : f32
    %6 = vector.broadcast %cst_5 : f32 to vector<8x128xf32>
    %7 = arith.maximumf %5, %6 : vector<8x128xf32>
    %c0_6 = arith.constant 0 : index
    %c0_7 = arith.constant 0 : index
    %8 = vector.load %arg4[%c0_6, %c0_7] : memref<128x128xf32, #tpu.memory_space<vmem>>, vector<128x128xf32>
    %cst_8 = arith.constant dense<0.000000e+00> : vector<8x128xf32>
    %9 = tpu.matmul %7, %8, %cst_8 {dimension_numbers = #tpu.dot_dimension_numbers<[1], [0], [0], [1], [0, 0, 1, 1], [], []>} : vector<8x128xf32>, vector<128x128xf32>, vector<8x128xf32> -> vector<8x128xf32>
    %c0_9 = arith.constant 0 : index
    %c0_10 = arith.constant 0 : index
    %10 = vector.load %arg5[%c0_9, %c0_10] : memref<1x128xf32, #tpu.memory_space<vmem>>, vector<1x128xf32>
    %11 = vector.broadcast %10 : vector<1x128xf32> to vector<8x128xf32>
    %12 = arith.addf %9, %11 : vector<8x128xf32>
    %cst_11 = arith.constant 0.000000e+00 : f32
    %13 = vector.broadcast %cst_11 : f32 to vector<8x128xf32>
    %14 = arith.maximumf %12, %13 : vector<8x128xf32>
    %c0_12 = arith.constant 0 : index
    %c0_13 = arith.constant 0 : index
    %15 = vector.load %arg6[%c0_12, %c0_13] : memref<128x128xf32, #tpu.memory_space<vmem>>, vector<128x128xf32>
    %cst_14 = arith.constant dense<0.000000e+00> : vector<8x128xf32>
    %16 = tpu.matmul %14, %15, %cst_14 {dimension_numbers = #tpu.dot_dimension_numbers<[1], [0], [0], [1], [0, 0, 1, 1], [], []>} : vector<8x128xf32>, vector<128x128xf32>, vector<8x128xf32> -> vector<8x128xf32>
    %c0_15 = arith.constant 0 : index
    %c0_16 = arith.constant 0 : index
    %17 = vector.load %arg7[%c0_15, %c0_16] : memref<1x128xf32, #tpu.memory_space<vmem>>, vector<1x128xf32>
    %18 = vector.broadcast %17 : vector<1x128xf32> to vector<8x128xf32>
    %19 = arith.addf %16, %18 : vector<8x128xf32>
    %c0_17 = arith.constant 0 : index
    %c0_18 = arith.constant 0 : index
    %20 = vector.load %arg8[%c0_17, %c0_18] : memref<8x128xf32, #tpu.memory_space<vmem>>, vector<8x128xf32>
    tpu.vector_store %arg8[%c0_17, %c0_18], %19 {strides = array<i32>} : memref<8x128xf32, #tpu.memory_space<vmem>>, vector<8x128xf32>,
    return
  }
  func.func @transform_0(%arg0: i32) -> (i32, i32) {
    %c0_i32 = arith.constant 0 : i32
    %c0_i32_0 = arith.constant 0 : i32
    return %arg0, %c0_i32 : i32, i32
  }
  func.func @transform_1(%arg0: i32) -> (i32, i32) {
    %c0_i32 = arith.constant 0 : i32
    %c0_i32_0 = arith.constant 0 : i32
    %c0_i32_1 = arith.constant 0 : i32
    return %c0_i32, %c0_i32_0 : i32, i32
  }
  func.func @transform_2(%arg0: i32) -> (i32, i32) {
    %c0_i32 = arith.constant 0 : i32
    %c0_i32_0 = arith.constant 0 : i32
    %c0_i32_1 = arith.constant 0 : i32
    return %c0_i32, %c0_i32_0 : i32, i32
  }
  func.func @transform_3(%arg0: i32) -> (i32, i32) {
    %c0_i32 = arith.constant 0 : i32
    %c0_i32_0 = arith.constant 0 : i32
    %c0_i32_1 = arith.constant 0 : i32
    return %c0_i32, %c0_i32_0 : i32, i32
  }
  func.func @transform_4(%arg0: i32) -> (i32, i32) {
    %c0_i32 = arith.constant 0 : i32
    %c0_i32_0 = arith.constant 0 : i32
    %c0_i32_1 = arith.constant 0 : i32
    return %c0_i32, %c0_i32_0 : i32, i32
  }
  func.func @transform_5(%arg0: i32) -> (i32, i32) {
    %c0_i32 = arith.constant 0 : i32
    %c0_i32_0 = arith.constant 0 : i32
    %c0_i32_1 = arith.constant 0 : i32
    return %c0_i32, %c0_i32_0 : i32, i32
  }
  func.func @transform_6(%arg0: i32) -> (i32, i32) {
    %c0_i32 = arith.constant 0 : i32
    %c0_i32_0 = arith.constant 0 : i32
    %c0_i32_1 = arith.constant 0 : i32
    return %c0_i32, %c0_i32_0 : i32, i32
  }
  func.func @transform_7(%arg0: i32) -> (i32, i32) {
    %c0_i32 = arith.constant 0 : i32
    %c0_i32_0 = arith.constant 0 : i32
    return %arg0, %c0_i32 : i32, i32
  }
}

</mosaic_0001>

<llo_original>
// kernel: net_forward.3
$region0: #{net_forward.3}
  #allocation0 [shape = 'u32[]', space=smem, size = 0x4, offset = 0x4, fixed_abs, tag = 'smem constant byte address 0x4 - core index']
  #allocation1 [shape = 'u32[144,128]{1,0:T(1,128)}', space=vmem, size = 0x12000, scoped, tag = 'internal scratch']
  %s0 = inlined_call_operand.vmem [shape: f32[2,4,196,128], index: 0, kind: input, shape index: {}]
  %s1 = inlined_call_operand.vmem [shape: f32[128,128], index: 1, kind: input, shape index: {}]
  %s2 = inlined_call_operand.vmem [shape: f32[1,128], index: 2, kind: input, shape index: {}]
  %s3 = inlined_call_operand.vmem [shape: f32[2,196,128], index: 3, kind: output, shape index: {}]
  %s4 = sld [smem:[#allocation0]]
  $region45: #{net_forward.3} parent=0
    _
  %s6 = ssub.s32 1, %s4
  %s7 = scalar_select 0, %s6, %s4
  loop: start=0, step=1, limit=4
  $region2: #{net_forward.3} parent=0 // loop_pre_header
    _
  $region3: #{net_forward.3} parent=0 // loop_header
    %s9 = sphi 0, %s13
    %p10 = scmp.ge.s32.totalorder %s9, 4
    %s19 = sphi 0, %s21
    %s22 = sphi 0, %s19
    %s23 = sphi 0, %s22
    %s39 = sphi 0, %s23
    %s43 = sphi 0, %s43
    %s45 = sphi 0, %s43
    %s46 = sphi 0, %s45
    %s60 = sphi 0, %s46
    %s64 = sphi 0, %s64
    %s66 = sphi 0, %s64
    %s67 = sphi 0, %s66
    %s81 = sphi 0, %s67
    %s87 = sphi 0, %s89
    %s90 = sphi 0, %s87
    %s91 = sphi 0, %s90
    %s107 = sphi 0, %s91
  $region4: #{net_forward.3} parent=0 // loop_header_branch
    %12 = sbr.rel (%p10) target = $region8
  $region5: #{net_forward.3} parent=0 // loop_body
    %s14 = ssub.s32 %s9, 1
    %s15 = ssub.s32 %s9, 2
    %s16 = sadd.s32 %s9, 1
    %s17 = ssub.s32 %s9, %s16
    %p18 = scmp.eq.s32.totalorder %s17, 0
    %s20 = sadd.s32 %s19, 1
    %s21 = scalar_select %p18, %s19, %s20
    %p24 = pneg %p18
    %p25 = scmp.eq.s32.totalorder %s9, 1
    %p26 = por %p24, %p25
    %p27 = scmp.ne.s32.totalorder %s19, %s22
    %p28 = scmp.eq.s32.totalorder %s9, 0
    %p29 = por %p27, %p28
    %p30 = scmp.ne.s32.totalorder %s19, %s22
    %p31 = scmp.eq.s32.totalorder %s14, 1
    %p32 = por %p30, %p31
    %p33 = scmp.ne.s32.totalorder %s22, %s23
    %p34 = scmp.eq.s32.totalorder %s14, 0
    %p35 = por %p33, %p34
    %p36 = scmp.ne.s32.totalorder %s22, %s23
    %p37 = scmp.eq.s32.totalorder %s15, 1
    %p38 = por %p36, %p37
    %p40 = scmp.ne.s32.totalorder %s23, %s39
    %p41 = scmp.eq.s32.totalorder %s15, 0
    %p42 = por %p40, %p41
    %s44 = sadd.s32 %s43, 1
    %p47 = scmp.eq.s32.totalorder %s9, 1
    %p48 = scmp.ne.s32.totalorder %s43, %s45
    %p49 = scmp.eq.s32.totalorder %s9, 0
    %p50 = por %p48, %p49
    %p51 = scmp.ne.s32.totalorder %s43, %s45
    %p52 = scmp.eq.s32.totalorder %s14, 1
    %p53 = por %p51, %p52
    %p54 = scmp.ne.s32.totalorder %s45, %s46
    %p55 = scmp.eq.s32.totalorder %s14, 0
    %p56 = por %p54, %p55
    %p57 = scmp.ne.s32.totalorder %s45, %s46
    %p58 = scmp.eq.s32.totalorder %s15, 1
    %p59 = por %p57, %p58
    %p61 = scmp.ne.s32.totalorder %s46, %s60
    %p62 = scmp.eq.s32.totalorder %s15, 0
    %p63 = por %p61, %p62
    %s65 = sadd.s32 %s64, 1
    %p68 = scmp.eq.s32.totalorder %s9, 1
    %p69 = scmp.ne.s32.totalorder %s64, %s66
    %p70 = scmp.eq.s32.totalorder %s9, 0
    %p71 = por %p69, %p70
    %p72 = scmp.ne.s32.totalorder %s64, %s66
    %p73 = scmp.eq.s32.totalorder %s14, 1
    %p74 = por %p72, %p73
    %p75 = scmp.ne.s32.totalorder %s66, %s67
    %p76 = scmp.eq.s32.totalorder %s14, 0
    %p77 = por %p75, %p76
    %p78 = scmp.ne.s32.totalorder %s66, %s67
    %p79 = scmp.eq.s32.totalorder %s15, 1
    %p80 = por %p78, %p79
    %p82 = scmp.ne.s32.totalorder %s67, %s81
    %p83 = scmp.eq.s32.totalorder %s15, 0
    %p84 = por %p82, %p83
    %s85 = ssub.s32 %s9, %s16
    %p86 = scmp.eq.s32.totalorder %s85, 0
    %s88 = sadd.s32 %s87, 1
    %s89 = scalar_select %p86, %s87, %s88
    %p92 = pneg %p86
    %p93 = scmp.eq.s32.totalorder %s9, 1
    %p94 = por %p92, %p93
    %p95 = scmp.ne.s32.totalorder %s87, %s90
    %p96 = scmp.eq.s32.totalorder %s9, 0
    %p97 = por %p95, %p96
    %p98 = scmp.ne.s32.totalorder %s87, %s90
    %p99 = scmp.eq.s32.totalorder %s14, 1
    %p100 = por %p98, %p99
    %p101 = scmp.ne.s32.totalorder %s90, %s91
    %p102 = scmp.eq.s32.totalorder %s14, 0
    %p103 = por %p101, %p102
    %p104 = scmp.ne.s32.totalorder %s90, %s91
    %p105 = scmp.eq.s32.totalorder %s15, 1
    %p106 = por %p104, %p105
    %p108 = scmp.ne.s32.totalorder %s91, %s107
    %p109 = scmp.eq.s32.totalorder %s15, 0
    %p110 = por %p108, %p109
    %p111 = scmp.le.s32.totalorder 1, %s9
    %p112 = scmp.lt.s32.totalorder %s9, 3
    %p113 = pnand %p111, %p112
    %p114 = pneg %p113
    // Predicated region
    $region9: #{net_forward.3} parent=5 // pred_check
      _
    $region10: #{net_forward.3} parent=5 // pred_check_branch
      %116 = sbr.rel (%p113) target = $region12
    $region11: #{net_forward.3} parent=5 // pred_region
      %s117 = ssub.s32 %s9, 1
      // Predicated region
      $region13: #{net_forward.3} parent=11 // pred_check
        %p118 = pneg %p56
      $region14: #{net_forward.3} parent=11 // pred_check_branch
        %120 = sbr.rel (%p118) target = $region16
      $region15: #{net_forward.3} parent=11 // pred_region
        _
      $region16: #{net_forward.3} parent=11 // pred_fallthru
        _
      // Predicated region
      $region17: #{net_forward.3} parent=11 // pred_check
        %p121 = pneg %p77
      $region18: #{net_forward.3} parent=11 // pred_check_branch
        %123 = sbr.rel (%p121) target = $region20
      $region19: #{net_forward.3} parent=11 // pred_region
        _
      $region20: #{net_forward.3} parent=11 // pred_fallthru
        _
    $region12: #{net_forward.3} parent=5 // pred_fallthru
      _
    %p124 = scmp.lt.s32.totalorder %s9, 2
    // Predicated region
    $region21: #{net_forward.3} parent=5 // pred_check
      %p125 = pneg %p124
    $region22: #{net_forward.3} parent=5 // pred_check_branch
      %127 = sbr.rel (%p125) target = $region24
    $region23: #{net_forward.3} parent=5 // pred_region
      // Predicated region
      $region25: #{net_forward.3} parent=23 // pred_check
        %p128 = pneg %p29
      $region26: #{net_forward.3} parent=23 // pred_check_branch
        %130 = sbr.rel (%p128) target = $region28
      $region27: #{net_forward.3} parent=23 // pred_region
        %p131 = scmp.lt.s32.totalorder %s9, 1
        %s132 = scalar_select %p131, %s9, 1
        %s133 = smul.addr %s132, 100
        %s134 = smul.addr %s133, 8
        %s135 = scalar_lea.vmem %s0, %s134
      $region28: #{net_forward.3} parent=23 // pred_fallthru
        _
    $region24: #{net_forward.3} parent=5 // pred_fallthru
      _
    %p136 = scmp.le.s32.totalorder 1, %s9
    %p137 = scmp.lt.s32.totalorder %s9, 3
    %p138 = pnand %p136, %p137
    %p139 = pneg %p138
    // Predicated region
    $region29: #{net_forward.3} parent=5 // pred_check
      _
    $region30: #{net_forward.3} parent=5 // pred_check_branch
      %141 = sbr.rel (%p138) target = $region32
    $region31: #{net_forward.3} parent=5 // pred_region
      %s142 = ssub.s32 %s9, 1
      %p143 = scmp.lt.s32.totalorder %s14, 1
      %s144 = scalar_select %p143, %s14, 1
      %s145 = smul.addr %s144, 100
      %s146 = smul.addr %s145, 8
      %s147 = scalar_lea.vmem %s0, %s146
      %p148 = pneg %p35
      %p149 = pneg %p32
      %p150 = pneg %p56
      %p151 = pneg %p53
      %p152 = pneg %p77
      %p153 = pneg %p74
      %p154 = pneg %p103
      %p155 = pneg %p100
      %p156 = scmp.lt.s32.totalorder %s14, 1
      %s157 = scalar_select %p156, %s14, 1
      %s158 = smul.addr %s157, 25
      %s159 = smul.addr %s158, 8
      %s160 = scalar_lea.vmem %s3, %s159
      %p161 = scmp.lt.s32.totalorder %s14, 1
      %s162 = scalar_select %p161, %s14, 1
      %s163 = smul.addr %s162, 100
      %s164 = smul.addr %s163, 8
      %s165 = scalar_lea.vmem %s0, %s164
      %p166 = scmp.lt.s32.totalorder %s14, 1
      %s167 = scalar_select %p166, %s14, 1
      %s168 = smul.addr %s167, 25
      %s169 = smul.addr %s168, 8
      %s170 = scalar_lea.vmem %s3, %s169
      %v171 = vld [vmem:[%s1] sm:$0xff]
      %v172 = vld [vmem:[%s1 + $0x8] sm:$0xff]
      %v173 = vld [vmem:[%s1 + $0x10] sm:$0xff]
      %v174 = vld [vmem:[%s1 + $0x18] sm:$0xff]
      %v175 = vld [vmem:[%s1 + $0x20] sm:$0xff]
      %v176 = vld [vmem:[%s1 + $0x28] sm:$0xff]
      %v177 = vld [vmem:[%s1 + $0x30] sm:$0xff]
      %v178 = vld [vmem:[%s1 + $0x38] sm:$0xff]
      %v179 = vld [vmem:[%s1 + $0x40] sm:$0xff]
      %v180 = vld [vmem:[%s1 + $0x48] sm:$0xff]
      %v181 = vld [vmem:[%s1 + $0x50] sm:$0xff]
      %v182 = vld [vmem:[%s1 + $0x58] sm:$0xff]
      %v183 = vld [vmem:[%s1 + $0x60] sm:$0xff]
      %v184 = vld [vmem:[%s1 + $0x68] sm:$0xff]
      %v185 = vld [vmem:[%s1 + $0x70] sm:$0xff]
      %v186 = vld [vmem:[%s1 + $0x78] sm:$0xff]
      %v187 = vld [vmem:[%s165] sm:$0xff]
      %v188 = vld [vmem:[%s165 + $0x8] sm:$0xff]
      %v189 = vld [vmem:[%s165 + $0x10] sm:$0xff]
      %v190 = vld [vmem:[%s165 + $0x18] sm:$0xff]
      %v191 = vld [vmem:[%s165 + $0x20] sm:$0xff]
      %v192 = vld [vmem:[%s165 + $0x28] sm:$0xff]
      %v193 = vld [vmem:[%s165 + $0x30] sm:$0xff]
      %v194 = vld [vmem:[%s165 + $0x38] sm:$0xff]
      %v195 = vld [vmem:[%s165 + $0x40] sm:$0xff]
      %v196 = vld [vmem:[%s165 + $0x48] sm:$0xff]
      %v197 = vld [vmem:[%s165 + $0x50] sm:$0xff]
      %v198 = vld [vmem:[%s165 + $0x58] sm:$0xff]
      %v199 = vld [vmem:[%s165 + $0x60] sm:$0xff]
      %v200 = vld [vmem:[%s165 + $0x68] sm:$0xff]
      %v201 = vld [vmem:[%s165 + $0x70] sm:$0xff]
      %v202 = vld [vmem:[%s165 + $0x78] sm:$0xff]
      %v203 = vld [vmem:[%s165 + $0x80] sm:$0xff]
      %v204 = vld [vmem:[%s165 + $0x88] sm:$0xff]
      %v205 = vld [vmem:[%s165 + $0x90] sm:$0xff]
      %v206 = vld [vmem:[%s165 + $0x98] sm:$0xff]
      %v207 = vld [vmem:[%s165 + $0xa0] sm:$0xff]
      %v208 = vld [vmem:[%s165 + $0xa8] sm:$0xff]
      %v209 = vld [vmem:[%s165 + $0xb0] sm:$0xff]
      %v210 = vld [vmem:[%s165 + $0xb8] sm:$0xff]
      %v211 = vld [vmem:[%s165 + $0xc0] sm:$0xf]
      %212 = vmatprep.subr.mxu0 0.0
      %213 = vmatpush1.msra.mxu0 %v171
      %214 = vmatprep.subr.mxu0 0.0
      %215 = vmatpush1.msra.mxu0 %v172
      %216 = vmatprep.subr.mxu0 0.0
      %217 = vmatpush1.msra.mxu0 %v173
      %218 = vmatprep.subr.mxu0 0.0
      %219 = vmatpush1.msra.mxu0 %v174
      %220 = vmatprep.subr.mxu0 0.0
      %221 = vmatpush1.msra.mxu0 %v175
      %222 = vmatprep.subr.mxu0 0.0
      %223 = vmatpush1.msra.mxu0 %v176
      %224 = vmatprep.subr.mxu0 0.0
      %225 = vmatpush1.msra.mxu0 %v177
      %226 = vmatprep.subr.mxu0 0.0
      %227 = vmatpush1.msra.mxu0 %v178
      %228 = vmatprep.subr.mxu0 0.0
      %229 = vmatpush1.msra.mxu0 %v179
      %230 = vmatprep.subr.mxu0 0.0
      %231 = vmatpush1.msra.mxu0 %v180
      %232 = vmatprep.subr.mxu0 0.0
      %233 = vmatpush1.msra.mxu0 %v181
      %234 = vmatprep.subr.mxu0 0.0
      %235 = vmatpush1.msra.mxu0 %v182
      %236 = vmatprep.subr.mxu0 0.0
      %237 = vmatpush1.msra.mxu0 %v183
      %238 = vmatprep.subr.mxu0 0.0
      %239 = vmatpush1.msra.mxu0 %v184
      %240 = vmatprep.subr.mxu0 0.0
      %241 = vmatpush1.msra.mxu0 %v185
      %242 = vmatprep.subr.mxu0 0.0
      %243 = vmatpush1.msra.mxu0 %v186
      %244 = vmatprep.subr.mxu0 0.0
      %245 = vmatpush1.msra.mxu0 0.0
      %246 = vmatprep.subr.mxu0 0.0
      %247 = vmatpush1.msra.mxu0 0.0
      %248 = vmatprep.subr.mxu0 0.0
      %249 = vmatpush1.msra.mxu0 0.0
      %250 = vmatprep.subr.mxu0 0.0
      %251 = vmatpush1.msra.mxu0 0.0
      %252 = vmatprep.subr.mxu0 0.0
      %253 = vmatpush1.msra.mxu0 0.0
      %254 = vmatprep.subr.mxu0 0.0
      %255 = vmatpush1.msra.mxu0 0.0
      %256 = vmatprep.subr.mxu0 0.0
      %257 = vmatpush1.msra.mxu0 0.0
      %258 = vmatprep.subr.mxu0 0.0
      %259 = vmatpush1.msra.mxu0 0.0
      %260 = vmatprep.subr.mxu0 0.0
      %261 = vmatpush1.msra.mxu0 0.0
      %262 = vmatprep.subr.mxu0 0.0
      %263 = vmatpush1.msra.mxu0 0.0
      %264 = vmatprep.subr.mxu0 0.0
      %265 = vmatpush1.msra.mxu0 0.0
      %266 = vmatprep.subr.mxu0 0.0
      %267 = vmatpush1.msra.mxu0 0.0
      %268 = vmatprep.subr.mxu0 0.0
      %269 = vmatpush1.msra.mxu0 0.0
      %270 = vmatprep.subr.mxu0 0.0
      %271 = vmatpush1.msra.mxu0 0.0
      %272 = vmatprep.subr.mxu0 0.0
      %273 = vmatpush1.msra.mxu0 0.0
      %274 = vmatprep.subr.mxu0 0.0
      %275 = vmatpush1.msra.mxu0 0.0
      %276 = vmatprep.mubr.f32.mxu0 0.0
      %277 = vmatmul.mubr.f32.gmra.mrb[0].mxu0 %v187
      %v278 = vpop.f32.mrb[0].mxu0
      %v279 = vadd.f32 0.0, %v278
      %v280 = vpop.f32.mrb[0].mxu0
      %281 = vmatprep.mubr.f32.mxu0 0.0
      %282 = vmatmul.mubr.f32.gmra.mrb[0].mxu0 %v188
      %v283 = vpop.f32.mrb[0].mxu0
      %v284 = vadd.f32 0.0, %v283
      %v285 = vpop.f32.mrb[0].mxu0
      %286 = vmatprep.mubr.f32.mxu0 0.0
      %287 = vmatmul.mubr.f32.gmra.mrb[0].mxu0 %v189
      %v288 = vpop.f32.mrb[0].mxu0
      %v289 = vadd.f32 0.0, %v288
      %v290 = vpop.f32.mrb[0].mxu0
      %291 = vmatprep.mubr.f32.mxu0 0.0
      %292 = vmatmul.mubr.f32.gmra.mrb[0].mxu0 %v190
      %v293 = vpop.f32.mrb[0].mxu0
      %v294 = vadd.f32 0.0, %v293
      %v295 = vpop.f32.mrb[0].mxu0
      %296 = vmatprep.mubr.f32.mxu0 0.0
      %297 = vmatmul.mubr.f32.gmra.mrb[0].mxu0 %v191
      %v298 = vpop.f32.mrb[0].mxu0
      %v299 = vadd.f32 0.0, %v298
      %v300 = vpop.f32.mrb[0].mxu0
      %301 = vmatprep.mubr.f32.mxu0 0.0
      %302 = vmatmul.mubr.f32.gmra.mrb[0].mxu0 %v192
      %v303 = vpop.f32.mrb[0].mxu0
      %v304 = vadd.f32 0.0, %v303
      %v305 = vpop.f32.mrb[0].mxu0
      %306 = vmatprep.mubr.f32.mxu0 0.0
      %307 = vmatmul.mubr.f32.gmra.mrb[0].mxu0 %v193
      %v308 = vpop.f32.mrb[0].mxu0
      %v309 = vadd.f32 0.0, %v308
      %v310 = vpop.f32.mrb[0].mxu0
      %311 = vmatprep.mubr.f32.mxu0 0.0
      %312 = vmatmul.mubr.f32.gmra.mrb[0].mxu0 %v194
      %v313 = vpop.f32.mrb[0].mxu0
      %v314 = vadd.f32 0.0, %v313
      %v315 = vpop.f32.mrb[0].mxu0
      %316 = vmatprep.mubr.f32.mxu0 0.0
      %317 = vmatmul.mubr.f32.gmra.mrb[0].mxu0 %v195
      %v318 = vpop.f32.mrb[0].mxu0
      %v319 = vadd.f32 0.0, %v318
      %v320 = vpop.f32.mrb[0].mxu0
      %321 = vmatprep.mubr.f32.mxu0 0.0
      %322 = vmatmul.mubr.f32.gmra.mrb[0].mxu0 %v196
      %v323 = vpop.f32.mrb[0].mxu0
      %v324 = vadd.f32 0.0, %v323
      %v325 = vpop.f32.mrb[0].mxu0
      %326 = vmatprep.mubr.f32.mxu0 0.0
      %327 = vmatmul.mubr.f32.gmra.mrb[0].mxu0 %v197
      %v328 = vpop.f32.mrb[0].mxu0
      %v329 = vadd.f32 0.0, %v328
      %v330 = vpop.f32.mrb[0].mxu0
      %331 = vmatprep.mubr.f32.mxu0 0.0
      %332 = vmatmul.mubr.f32.gmra.mrb[0].mxu0 %v198
      %v333 = vpop.f32.mrb[0].mxu0
      %v334 = vadd.f32 0.0, %v333
      %v335 = vpop.f32.mrb[0].mxu0
      %336 = vmatprep.mubr.f32.mxu0 0.0
      %337 = vmatmul.mubr.f32.gmra.mrb[0].mxu0 %v199
      %v338 = vpop.f32.mrb[0].mxu0
      %v339 = vadd.f32 0.0, %v338
      %v340 = vpop.f32.mrb[0].mxu0
      %341 = vmatprep.mubr.f32.mxu0 0.0
      %342 = vmatmul.mubr.f32.gmra.mrb[0].mxu0 %v200
      %v343 = vpop.f32.mrb[0].mxu0
      %v344 = vadd.f32 0.0, %v343
      %v345 = vpop.f32.mrb[0].mxu0
      %346 = vmatprep.mubr.f32.mxu0 0.0
      %347 = vmatmul.mubr.f32.gmra.mrb[0].mxu0 %v201
      %v348 = vpop.f32.mrb[0].mxu0
      %v349 = vadd.f32 0.0, %v348
      %v350 = vpop.f32.mrb[0].mxu0
      %351 = vmatprep.mubr.f32.mxu0 0.0
      %352 = vmatmul.mubr.f32.gmra.mrb[0].mxu0 %v202
      %v353 = vpop.f32.mrb[0].mxu0
      %v354 = vadd.f32 0.0, %v353
      %v355 = vpop.f32.mrb[0].mxu0
      %356 = vmatprep.mubr.f32.mxu0 0.0
      %357 = vmatmul.mubr.f32.gmra.mrb[0].mxu0 %v203
      %v358 = vpop.f32.mrb[0].mxu0
      %v359 = vadd.f32 0.0, %v358
      %v360 = vpop.f32.mrb[0].mxu0
      %361 = vmatprep.mubr.f32.mxu0 0.0
      %362 = vmatmul.mubr.f32.gmra.mrb[0].mxu0 %v204
      %v363 = vpop.f32.mrb[0].mxu0
      %v364 = vadd.f32 0.0, %v363
      %v365 = vpop.f32.mrb[0].mxu0
      %366 = vmatprep.mubr.f32.mxu0 0.0
      %367 = vmatmul.mubr.f32.gmra.mrb[0].mxu0 %v205
      %v368 = vpop.f32.mrb[0].mxu0
      %v369 = vadd.f32 0.0, %v368
      %v370 = vpop.f32.mrb[0].mxu0
      %371 = vmatprep.mubr.f32.mxu0 0.0
      %372 = vmatmul.mubr.f32.gmra.mrb[0].mxu0 %v206
      %v373 = vpop.f32.mrb[0].mxu0
      %v374 = vadd.f32 0.0, %v373
      %v375 = vpop.f32.mrb[0].mxu0
      %376 = vmatprep.mubr.f32.mxu0 0.0
      %377 = vmatmul.mubr.f32.gmra.mrb[0].mxu0 %v207
      %v378 = vpop.f32.mrb[0].mxu0
      %v379 = vadd.f32 0.0, %v378
      %v380 = vpop.f32.mrb[0].mxu0
      %381 = vmatprep.mubr.f32.mxu0 0.0
      %382 = vmatmul.mubr.f32.gmra.mrb[0].mxu0 %v208
      %v383 = vpop.f32.mrb[0].mxu0
      %v384 = vadd.f32 0.0, %v383
      %v385 = vpop.f32.mrb[0].mxu0
      %386 = vmatprep.mubr.f32.mxu0 0.0
      %387 = vmatmul.mubr.f32.gmra.mrb[0].mxu0 %v209
      %v388 = vpop.f32.mrb[0].mxu0
      %v389 = vadd.f32 0.0, %v388
      %v390 = vpop.f32.mrb[0].mxu0
      %391 = vmatprep.mubr.f32.mxu0 0.0
      %392 = vmatmul.mubr.f32.gmra.mrb[0].mxu0 %v210
      %v393 = vpop.f32.mrb[0].mxu0
      %v394 = vadd.f32 0.0, %v393
      %v395 = vpop.f32.mrb[0].mxu0
      %396 = vmatprep.mubr.f32.mxu0 0.0
      %397 = vmatmul.mubr.f32.gmra.mrb[0].mxu0 %v211
      %v398 = vpop.f32.mrb[0].mxu0
      %v399 = vadd.f32 0.0, %v398
      %v400 = vpop.f32.mrb[0].mxu0
      %401 = vdwg.mxu0
      %s402 = scalar_lea.vmem %s165, 200
      %v403 = vld [vmem:[%s402] sm:$0xff]
      %v404 = vld [vmem:[%s402 + $0x8] sm:$0xff]
      %v405 = vld [vmem:[%s402 + $0x10] sm:$0xff]
      %v406 = vld [vmem:[%s402 + $0x18] sm:$0xff]
      %v407 = vld [vmem:[%s402 + $0x20] sm:$0xff]
      %v408 = vld [vmem:[%s402 + $0x28] sm:$0xff]
      %v409 = vld [vmem:[%s402 + $0x30] sm:$0xff]
      %v410 = vld [vmem:[%s402 + $0x38] sm:$0xff]
      %v411 = vld [vmem:[%s402 + $0x40] sm:$0xff]
      %v412 = vld [vmem:[%s402 + $0x48] sm:$0xff]
      %v413 = vld [vmem:[%s402 + $0x50] sm:$0xff]
      %v414 = vld [vmem:[%s402 + $0x58] sm:$0xff]
      %v415 = vld [vmem:[%s402 + $0x60] sm:$0xff]
      %v416 = vld [vmem:[%s402 + $0x68] sm:$0xff]
      %v417 = vld [vmem:[%s402 + $0x70] sm:$0xff]
      %v418 = vld [vmem:[%s402 + $0x78] sm:$0xff]
      %v419 = vld [vmem:[%s402 + $0x80] sm:$0xff]
      %v420 = vld [vmem:[%s402 + $0x88] sm:$0xff]
      %v421 = vld [vmem:[%s402 + $0x90] sm:$0xff]
      %v422 = vld [vmem:[%s402 + $0x98] sm:$0xff]
      %v423 = vld [vmem:[%s402 + $0xa0] sm:$0xff]
      %v424 = vld [vmem:[%s402 + $0xa8] sm:$0xff]
      %v425 = vld [vmem:[%s402 + $0xb0] sm:$0xff]
      %v426 = vld [vmem:[%s402 + $0xb8] sm:$0xff]
      %v427 = vld [vmem:[%s402 + $0xc0] sm:$0xf]
      %428 = vmatprep.subr.mxu0 0.0
      %429 = vmatpush1.msra.mxu0 %v171
      %430 = vmatprep.subr.mxu0 0.0
      %431 = vmatpush1.msra.mxu0 %v172
      %432 = vmatprep.subr.mxu0 0.0
      %433 = vmatpush1.msra.mxu0 %v173
      %434 = vmatprep.subr.mxu0 0.0
      %435 = vmatpush1.msra.mxu0 %v174
      %436 = vmatprep.subr.mxu0 0.0
      %437 = vmatpush1.msra.mxu0 %v175
      %438 = vmatprep.subr.mxu0 0.0
      %439 = vmatpush1.msra.mxu0 %v176
      %440 = vmatprep.subr.mxu0 0.0
      %441 = vmatpush1.msra.mxu0 %v177
      %442 = vmatprep.subr.mxu0 0.0
      %443 = vmatpush1.msra.mxu0 %v178
      %444 = vmatprep.subr.mxu0 0.0
      %445 = vmatpush1.msra.mxu0 %v179
      %446 = vmatprep.subr.mxu0 0.0
      %447 = vmatpush1.msra.mxu0 %v180
      %448 = vmatprep.subr.mxu0 0.0
      %449 = vmatpush1.msra.mxu0 %v181
      %450 = vmatprep.subr.mxu0 0.0
      %451 = vmatpush1.msra.mxu0 %v182
      %452 = vmatprep.subr.mxu0 0.0
      %453 = vmatpush1.msra.mxu0 %v183
      %454 = vmatprep.subr.mxu0 0.0
      %455 = vmatpush1.msra.mxu0 %v184
      %456 = vmatprep.subr.mxu0 0.0
      %457 = vmatpush1.msra.mxu0 %v185
      %458 = vmatprep.subr.mxu0 0.0
      %459 = vmatpush1.msra.mxu0 %v186
      %460 = vmatprep.subr.mxu0 0.0
      %461 = vmatpush1.msra.mxu0 0.0
      %462 = vmatprep.subr.mxu0 0.0
      %463 = vmatpush1.msra.mxu0 0.0
      %464 = vmatprep.subr.mxu0 0.0
      %465 = vmatpush1.msra.mxu0 0.0
      %466 = vmatprep.subr.mxu0 0.0
      %467 = vmatpush1.msra.mxu0 0.0
      %468 = vmatprep.subr.mxu0 0.0
      %469 = vmatpush1.msra.mxu0 0.0
      %470 = vmatprep.subr.mxu0 0.0
      %471 = vmatpush1.msra.mxu0 0.0
      %472 = vmatprep.subr.mxu0 0.0
      %473 = vmatpush1.msra.mxu0 0.0
      %474 = vmatprep.subr.mxu0 0.0
      %475 = vmatpush1.msra.mxu0 0.0
      %476 = vmatprep.subr.mxu0 0.0
      %477 = vmatpush1.msra.mxu0 0.0
      %478 = vmatprep.subr.mxu0 0.0
      %479 = vmatpush1.msra.mxu0 0.0
      %480 = vmatprep.subr.mxu0 0.0
      %481 = vmatpush1.msra.mxu0 0.0
      %482 = vmatprep.subr.mxu0 0.0
      %483 = vmatpush1.msra.mxu0 0.0
      %484 = vmatprep.subr.mxu0 0.0
      %485 = vmatpush1.msra.mxu0 0.0
      %486 = vmatprep.subr.mxu0 0.0
      %487 = vmatpush1.msra.mxu0 0.0
      %488 = vmatprep.subr.mxu0 0.0
      %489 = vmatpush1.msra.mxu0 0.0
      %490 = vmatprep.subr.mxu0 0.0
      %491 = vmatpush1.msra.mxu0 0.0
      %492 = vmatprep.mubr.f32.mxu0 0.0
      %493 = vmatmul.mubr.f32.gmra.mrb[0].mxu0 %v403
      %v494 = vpop.f32.mrb[0].mxu0
      %v495 = vadd.f32 0.0, %v494
      %v496 = vpop.f32.mrb[0].mxu0
      %497 = vmatprep.mubr.f32.mxu0 0.0
      %498 = vmatmul.mubr.f32.gmra.mrb[0].mxu0 %v404
      %v499 = vpop.f32.mrb[0].mxu0
      %v500 = vadd.f32 0.0, %v499
      %v501 = vpop.f32.mrb[0].mxu0
      %502 = vmatprep.mubr.f32.mxu0 0.0
      %503 = vmatmul.mubr.f32.gmra.mrb[0].mxu0 %v405
      %v504 = vpop.f32.mrb[0].mxu0
      %v505 = vadd.f32 0.0, %v504
      %v506 = vpop.f32.mrb[0].mxu0
      %507 = vmatprep.mubr.f32.mxu0 0.0
      %508 = vmatmul.mubr.f32.gmra.mrb[0].mxu0 %v406
      %v509 = vpop.f32.mrb[0].mxu0
      %v510 = vadd.f32 0.0, %v509
      %v511 = vpop.f32.mrb[0].mxu0
      %512 = vmatprep.mubr.f32.mxu0 0.0
      %513 = vmatmul.mubr.f32.gmra.mrb[0].mxu0 %v407
      %v514 = vpop.f32.mrb[0].mxu0
      %v515 = vadd.f32 0.0, %v514
      %v516 = vpop.f32.mrb[0].mxu0
      %517 = vmatprep.mubr.f32.mxu0 0.0
      %518 = vmatmul.mubr.f32.gmra.mrb[0].mxu0 %v408
      %v519 = vpop.f32.mrb[0].mxu0
      %v520 = vadd.f32 0.0, %v519
      %v521 = vpop.f32.mrb[0].mxu0
      %522 = vmatprep.mubr.f32.mxu0 0.0
      %523 = vmatmul.mubr.f32.gmra.mrb[0].mxu0 %v409
      %v524 = vpop.f32.mrb[0].mxu0
      %v525 = vadd.f32 0.0, %v524
      %v526 = vpop.f32.mrb[0].mxu0
      %527 = vmatprep.mubr.f32.mxu0 0.0
      %528 = vmatmul.mubr.f32.gmra.mrb[0].mxu0 %v410
      %v529 = vpop.f32.mrb[0].mxu0
      %v530 = vadd.f32 0.0, %v529
      %v531 = vpop.f32.mrb[0].mxu0
      %532 = vmatprep.mubr.f32.mxu0 0.0
      %533 = vmatmul.mubr.f32.gmra.mrb[0].mxu0 %v411
      %v534 = vpop.f32.mrb[0].mxu0
      %v535 = vadd.f32 0.0, %v534
      %v536 = vpop.f32.mrb[0].mxu0
      %537 = vmatprep.mubr.f32.mxu0 0.0
      %538 = vmatmul.mubr.f32.gmra.mrb[0].mxu0 %v412
      %v539 = vpop.f32.mrb[0].mxu0
      %v540 = vadd.f32 0.0, %v539
      %v541 = vpop.f32.mrb[0].mxu0
      %542 = vmatprep.mubr.f32.mxu0 0.0
      %543 = vmatmul.mubr.f32.gmra.mrb[0].mxu0 %v413
      %v544 = vpop.f32.mrb[0].mxu0
      %v545 = vadd.f32 0.0, %v544
      %v546 = vpop.f32.mrb[0].mxu0
      %547 = vmatprep.mubr.f32.mxu0 0.0
      %548 = vmatmul.mubr.f32.gmra.mrb[0].mxu0 %v414
      %v549 = vpop.f32.mrb[0].mxu0
      %v550 = vadd.f32 0.0, %v549
      %v551 = vpop.f32.mrb[0].mxu0
      %552 = vmatprep.mubr.f32.mxu0 0.0
      %553 = vmatmul.mubr.f32.gmra.mrb[0].mxu0 %v415
      %v554 = vpop.f32.mrb[0].mxu0
      %v555 = vadd.f32 0.0, %v554
      %v556 = vpop.f32.mrb[0].mxu0
      %557 = vmatprep.mubr.f32.mxu0 0.0
      %558 = vmatmul.mubr.f32.gmra.mrb[0].mxu0 %v416
      %v559 = vpop.f32.mrb[0].mxu0
      %v560 = vadd.f32 0.0, %v559
      %v561 = vpop.f32.mrb[0].mxu0
      %562 = vmatprep.mubr.f32.mxu0 0.0
      %563 = vmatmul.mubr.f32.gmra.mrb[0].mxu0 %v417
      %v564 = vpop.f32.mrb[0].mxu0
      %v565 = vadd.f32 0.0, %v564
      %v566 = vpop.f32.mrb[0].mxu0
      %567 = vmatprep.mubr.f32.mxu0 0.0
      %568 = vmatmul.mubr.f32.gmra.mrb[0].mxu0 %v418
      %v569 = vpop.f32.mrb[0].mxu0
      %v570 = vadd.f32 0.0, %v569
      %v571 = vpop.f32.mrb[0].mxu0
      %572 = vmatprep.mubr.f32.mxu0 0.0
      %573 = vmatmul.mubr.f32.gmra.mrb[0].mxu0 %v419
      %v574 = vpop.f32.mrb[0].mxu0
      %v575 = vadd.f32 0.0, %v574
      %v576 = vpop.f32.mrb[0].mxu0
      %577 = vmatprep.mubr.f32.mxu0 0.0
      %578 = vmatmul.mubr.f32.gmra.mrb[0].mxu0 %v420
      %v579 = vpop.f32.mrb[0].mxu0
      %v580 = vadd.f32 0.0, %v579
      %v581 = vpop.f32.mrb[0].mxu0
      %582 = vmatprep.mubr.f32.mxu0 0.0
      %583 = vmatmul.mubr.f32.gmra.mrb[0].mxu0 %v421
      %v584 = vpop.f32.mrb[0].mxu0
      %v585 = vadd.f32 0.0, %v584
      %v586 = vpop.f32.mrb[0].mxu0
      %587 = vmatprep.mubr.f32.mxu0 0.0
      %588 = vmatmul.mubr.f32.gmra.mrb[0].mxu0 %v422
      %v589 = vpop.f32.mrb[0].mxu0
      %v590 = vadd.f32 0.0, %v589
      %v591 = vpop.f32.mrb[0].mxu0
      %592 = vmatprep.mubr.f32.mxu0 0.0
      %593 = vmatmul.mubr.f32.gmra.mrb[0].mxu0 %v423
      %v594 = vpop.f32.mrb[0].mxu0
      %v595 = vadd.f32 0.0, %v594
      %v596 = vpop.f32.mrb[0].mxu0
      %597 = vmatprep.mubr.f32.mxu0 0.0
      %598 = vmatmul.mubr.f32.gmra.mrb[0].mxu0 %v424
      %v599 = vpop.f32.mrb[0].mxu0
      %v600 = vadd.f32 0.0, %v599
      %v601 = vpop.f32.mrb[0].mxu0
      %602 = vmatprep.mubr.f32.mxu0 0.0
      %603 = vmatmul.mubr.f32.gmra.mrb[0].mxu0 %v425
      %v604 = vpop.f32.mrb[0].mxu0
      %v605 = vadd.f32 0.0, %v604
      %v606 = vpop.f32.mrb[0].mxu0
      %607 = vmatprep.mubr.f32.mxu0 0.0
      %608 = vmatmul.mubr.f32.gmra.mrb[0].mxu0 %v426
      %v609 = vpop.f32.mrb[0].mxu0
      %v610 = vadd.f32 0.0, %v609
      %v611 = vpop.f32.mrb[0].mxu0
      %612 = vmatprep.mubr.f32.mxu0 0.0
      %613 = vmatmul.mubr.f32.gmra.mrb[0].mxu0 %v427
      %v614 = vpop.f32.mrb[0].mxu0
      %v615 = vadd.f32 0.0, %v614
      %v616 = vpop.f32.mrb[0].mxu0
      %617 = vdwg.mxu0
      %v618 = vmax.f32 %v279, %v495
      %v619 = vmax.f32 %v284, %v500
      %v620 = vmax.f32 %v289, %v505
      %v621 = vmax.f32 %v294, %v510
      %v622 = vmax.f32 %v299, %v515
      %v623 = vmax.f32 %v304, %v520
      %v624 = vmax.f32 %v309, %v525
      %v625 = vmax.f32 %v314, %v530
      %v626 = vmax.f32 %v319, %v535
      %v627 = vmax.f32 %v324, %v540
      %v628 = vmax.f32 %v329, %v545
      %v629 = vmax.f32 %v334, %v550
      %v630 = vmax.f32 %v339, %v555
      %v631 = vmax.f32 %v344, %v560
      %v632 = vmax.f32 %v349, %v565
      %v633 = vmax.f32 %v354, %v570
      %v634 = vmax.f32 %v359, %v575
      %v635 = vmax.f32 %v364, %v580
      %v636 = vmax.f32 %v369, %v585
      %v637 = vmax.f32 %v374, %v590
      %v638 = vmax.f32 %v379, %v595
      %v639 = vmax.f32 %v384, %v600
      %v640 = vmax.f32 %v389, %v605
      %v641 = vmax.f32 %v394, %v610
      %v642 = vmax.f32 %v399, %v615
      %s643 = scalar_lea.vmem %s165, 400
      %v644 = vld [vmem:[%s643] sm:$0xff]
      %v645 = vld [vmem:[%s643 + $0x8] sm:$0xff]
      %v646 = vld [vmem:[%s643 + $0x10] sm:$0xff]
      %v647 = vld [vmem:[%s643 + $0x18] sm:$0xff]
      %v648 = vld [vmem:[%s643 + $0x20] sm:$0xff]
      %v649 = vld [vmem:[%s643 + $0x28] sm:$0xff]
      %v650 = vld [vmem:[%s643 + $0x30] sm:$0xff]
      %v651 = vld [vmem:[%s643 + $0x38] sm:$0xff]
      %v652 = vld [vmem:[%s643 + $0x40] sm:$0xff]
      %v653 = vld [vmem:[%s643 + $0x48] sm:$0xff]
      %v654 = vld [vmem:[%s643 + $0x50] sm:$0xff]
      %v655 = vld [vmem:[%s643 + $0x58] sm:$0xff]
      %v656 = vld [vmem:[%s643 + $0x60] sm:$0xff]
      %v657 = vld [vmem:[%s643 + $0x68] sm:$0xff]
      %v658 = vld [vmem:[%s643 + $0x70] sm:$0xff]
      %v659 = vld [vmem:[%s643 + $0x78] sm:$0xff]
      %v660 = vld [vmem:[%s643 + $0x80] sm:$0xff]
      %v661 = vld [vmem:[%s643 + $0x88] sm:$0xff]
      %v662 = vld [vmem:[%s643 + $0x90] sm:$0xff]
      %v663 = vld [vmem:[%s643 + $0x98] sm:$0xff]
      %v664 = vld [vmem:[%s643 + $0xa0] sm:$0xff]
      %v665 = vld [vmem:[%s643 + $0xa8] sm:$0xff]
      %v666 = vld [vmem:[%s643 + $0xb0] sm:$0xff]
      %v667 = vld [vmem:[%s643 + $0xb8] sm:$0xff]
      %v668 = vld [vmem:[%s643 + $0xc0] sm:$0xf]
      %669 = vmatprep.subr.mxu0 0.0
      %670 = vmatpush1.msra.mxu0 %v171
      %671 = vmatprep.subr.mxu0 0.0
      %672 = vmatpush1.msra.mxu0 %v172
      %673 = vmatprep.subr.mxu0 0.0
      %674 = vmatpush1.msra.mxu0 %v173
      %675 = vmatprep.subr.mxu0 0.0
      %676 = vmatpush1.msra.mxu0 %v174
      %677 = vmatprep.subr.mxu0 0.0
      %678 = vmatpush1.msra.mxu0 %v175
      %679 = vmatprep.subr.mxu0 0.0
      %680 = vmatpush1.msra.mxu0 %v176
      %681 = vmatprep.subr.mxu0 0.0
      %682 = vmatpush1.msra.mxu0 %v177
      %683 = vmatprep.subr.mxu0 0.0
      %684 = vmatpush1.msra.mxu0 %v178
      %685 = vmatprep.subr.mxu0 0.0
      %686 = vmatpush1.msra.mxu0 %v179
      %687 = vmatprep.subr.mxu0 0.0
      %688 = vmatpush1.msra.mxu0 %v180
      %689 = vmatprep.subr.mxu0 0.0
      %690 = vmatpush1.msra.mxu0 %v181
      %691 = vmatprep.subr.mxu0 0.0
      %692 = vmatpush1.msra.mxu0 %v182
      %693 = vmatprep.subr.mxu0 0.0
      %694 = vmatpush1.msra.mxu0 %v183
      %695 = vmatprep.subr.mxu0 0.0
      %696 = vmatpush1.msra.mxu0 %v184
      %697 = vmatprep.subr.mxu0 0.0
      %698 = vmatpush1.msra.mxu0 %v185
      %699 = vmatprep.subr.mxu0 0.0
      %700 = vmatpush1.msra.mxu0 %v186
      %701 = vmatprep.subr.mxu0 0.0
      %702 = vmatpush1.msra.mxu0 0.0
      %703 = vmatprep.subr.mxu0 0.0
      %704 = vmatpush1.msra.mxu0 0.0
      %705 = vmatprep.subr.mxu0 0.0
      %706 = vmatpush1.msra.mxu0 0.0
      %707 = vmatprep.subr.mxu0 0.0
      %708 = vmatpush1.msra.mxu0 0.0
      %709 = vmatprep.subr.mxu0 0.0
      %710 = vmatpush1.msra.mxu0 0.0
      %711 = vmatprep.subr.mxu0 0.0
      %712 = vmatpush1.msra.mxu0 0.0
      %713 = vmatprep.subr.mxu0 0.0
      %714 = vmatpush1.msra.mxu0 0.0
      %715 = vmatprep.subr.mxu0 0.0
      %716 = vmatpush1.msra.mxu0 0.0
      %717 = vmatprep.subr.mxu0 0.0
      %718 = vmatpush1.msra.mxu0 0.0
      %719 = vmatprep.subr.mxu0 0.0
      %720 = vmatpush1.msra.mxu0 0.0
      %721 = vmatprep.subr.mxu0 0.0
      %722 = vmatpush1.msra.mxu0 0.0
      %723 = vmatprep.subr.mxu0 0.0
      %724 = vmatpush1.msra.mxu0 0.0
      %725 = vmatprep.subr.mxu0 0.0
      %726 = vmatpush1.msra.mxu0 0.0
      %727 = vmatprep.subr.mxu0 0.0
      %728 = vmatpush1.msra.mxu0 0.0
      %729 = vmatprep.subr.mxu0 0.0
      %730 = vmatpush1.msra.mxu0 0.0
      %731 = vmatprep.subr.mxu0 0.0
      %732 = vmatpush1.msra.mxu0 0.0
      %733 = vmatprep.mubr.f32.mxu0 0.0
      %734 = vmatmul.mubr.f32.gmra.mrb[0].mxu0 %v644
      %v735 = vpop.f32.mrb[0].mxu0
      %v736 = vadd.f32 0.0, %v735
      %v737 = vpop.f32.mrb[0].mxu0
      %738 = vmatprep.mubr.f32.mxu0 0.0
      %739 = vmatmul.mubr.f32.gmra.mrb[0].mxu0 %v645
      %v740 = vpop.f32.mrb[0].mxu0
      %v741 = vadd.f32 0.0, %v740
      %v742 = vpop.f32.mrb[0].mxu0
      %743 = vmatprep.mubr.f32.mxu0 0.0
      %744 = vmatmul.mubr.f32.gmra.mrb[0].mxu0 %v646
      %v745 = vpop.f32.mrb[0].mxu0
      %v746 = vadd.f32 0.0, %v745
      %v747 = vpop.f32.mrb[0].mxu0
      %748 = vmatprep.mubr.f32.mxu0 0.0
      %749 = vmatmul.mubr.f32.gmra.mrb[0].mxu0 %v647
      %v750 = vpop.f32.mrb[0].mxu0
      %v751 = vadd.f32 0.0, %v750
      %v752 = vpop.f32.mrb[0].mxu0
      %753 = vmatprep.mubr.f32.mxu0 0.0
      %754 = vmatmul.mubr.f32.gmra.mrb[0].mxu0 %v648
      %v755 = vpop.f32.mrb[0].mxu0
      %v756 = vadd.f32 0.0, %v755
      %v757 = vpop.f32.mrb[0].mxu0
      %758 = vmatprep.mubr.f32.mxu0 0.0
      %759 = vmatmul.mubr.f32.gmra.mrb[0].mxu0 %v649
      %v760 = vpop.f32.mrb[0].mxu0
      %v761 = vadd.f32 0.0, %v760
      %v762 = vpop.f32.mrb[0].mxu0
      %763 = vmatprep.mubr.f32.mxu0 0.0
      %764 = vmatmul.mubr.f32.gmra.mrb[0].mxu0 %v650
      %v765 = vpop.f32.mrb[0].mxu0
      %v766 = vadd.f32 0.0, %v765
      %v767 = vpop.f32.mrb[0].mxu0
      %768 = vmatprep.mubr.f32.mxu0 0.0
      %769 = vmatmul.mubr.f32.gmra.mrb[0].mxu0 %v651
      %v770 = vpop.f32.mrb[0].mxu0
      %v771 = vadd.f32 0.0, %v770
      %v772 = vpop.f32.mrb[0].mxu0
      %773 = vmatprep.mubr.f32.mxu0 0.0
      %774 = vmatmul.mubr.f32.gmra.mrb[0].mxu0 %v652
      %v775 = vpop.f32.mrb[0].mxu0
      %v776 = vadd.f32 0.0, %v775
      %v777 = vpop.f32.mrb[0].mxu0
      %778 = vmatprep.mubr.f32.mxu0 0.0
      %779 = vmatmul.mubr.f32.gmra.mrb[0].mxu0 %v653
      %v780 = vpop.f32.mrb[0].mxu0
      %v781 = vadd.f32 0.0, %v780
      %v782 = vpop.f32.mrb[0].mxu0
      %783 = vmatprep.mubr.f32.mxu0 0.0
      %784 = vmatmul.mubr.f32.gmra.mrb[0].mxu0 %v654
      %v785 = vpop.f32.mrb[0].mxu0
      %v786 = vadd.f32 0.0, %v785
      %v787 = vpop.f32.mrb[0].mxu0
      %788 = vmatprep.mubr.f32.mxu0 0.0
      %789 = vmatmul.mubr.f32.gmra.mrb[0].mxu0 %v655
      %v790 = vpop.f32.mrb[0].mxu0
      %v791 = vadd.f32 0.0, %v790
      %v792 = vpop.f32.mrb[0].mxu0
      %793 = vmatprep.mubr.f32.mxu0 0.0
      %794 = vmatmul.mubr.f32.gmra.mrb[0].mxu0 %v656
      %v795 = vpop.f32.mrb[0].mxu0
      %v796 = vadd.f32 0.0, %v795
      %v797 = vpop.f32.mrb[0].mxu0
      %798 = vmatprep.mubr.f32.mxu0 0.0
      %799 = vmatmul.mubr.f32.gmra.mrb[0].mxu0 %v657
      %v800 = vpop.f32.mrb[0].mxu0
      %v801 = vadd.f32 0.0, %v800
      %v802 = vpop.f32.mrb[0].mxu0
      %803 = vmatprep.mubr.f32.mxu0 0.0
      %804 = vmatmul.mubr.f32.gmra.mrb[0].mxu0 %v658
      %v805 = vpop.f32.mrb[0].mxu0
      %v806 = vadd.f32 0.0, %v805
      %v807 = vpop.f32.mrb[0].mxu0
      %808 = vmatprep.mubr.f32.mxu0 0.0
      %809 = vmatmul.mubr.f32.gmra.mrb[0].mxu0 %v659
      %v810 = vpop.f32.mrb[0].mxu0
      %v811 = vadd.f32 0.0, %v810
      %v812 = vpop.f32.mrb[0].mxu0
      %813 = vmatprep.mubr.f32.mxu0 0.0
      %814 = vmatmul.mubr.f32.gmra.mrb[0].mxu0 %v660
      %v815 = vpop.f32.mrb[0].mxu0
      %v816 = vadd.f32 0.0, %v815
      %v817 = vpop.f32.mrb[0].mxu0
      %818 = vmatprep.mubr.f32.mxu0 0.0
      %819 = vmatmul.mubr.f32.gmra.mrb[0].mxu0 %v661
      %v820 = vpop.f32.mrb[0].mxu0
      %v821 = vadd.f32 0.0, %v820
      %v822 = vpop.f32.mrb[0].mxu0
      %823 = vmatprep.mubr.f32.mxu0 0.0
      %824 = vmatmul.mubr.f32.gmra.mrb[0].mxu0 %v662
      %v825 = vpop.f32.mrb[0].mxu0
      %v826 = vadd.f32 0.0, %v825
      %v827 = vpop.f32.mrb[0].mxu0
      %828 = vmatprep.mubr.f32.mxu0 0.0
      %829 = vmatmul.mubr.f32.gmra.mrb[0].mxu0 %v663
      %v830 = vpop.f32.mrb[0].mxu0
      %v831 = vadd.f32 0.0, %v830
      %v832 = vpop.f32.mrb[0].mxu0
      %833 = vmatprep.mubr.f32.mxu0 0.0
      %834 = vmatmul.mubr.f32.gmra.mrb[0].mxu0 %v664
      %v835 = vpop.f32.mrb[0].mxu0
      %v836 = vadd.f32 0.0, %v835
      %v837 = vpop.f32.mrb[0].mxu0
      %838 = vmatprep.mubr.f32.mxu0 0.0
      %839 = vmatmul.mubr.f32.gmra.mrb[0].mxu0 %v665
      %v840 = vpop.f32.mrb[0].mxu0
      %v841 = vadd.f32 0.0, %v840
      %v842 = vpop.f32.mrb[0].mxu0
      %843 = vmatprep.mubr.f32.mxu0 0.0
      %844 = vmatmul.mubr.f32.gmra.mrb[0].mxu0 %v666
      %v845 = vpop.f32.mrb[0].mxu0
      %v846 = vadd.f32 0.0, %v845
      %v847 = vpop.f32.mrb[0].mxu0
      %848 = vmatprep.mubr.f32.mxu0 0.0
      %849 = vmatmul.mubr.f32.gmra.mrb[0].mxu0 %v667
      %v850 = vpop.f32.mrb[0].mxu0
      %v851 = vadd.f32 0.0, %v850
      %v852 = vpop.f32.mrb[0].mxu0
      %853 = vmatprep.mubr.f32.mxu0 0.0
      %854 = vmatmul.mubr.f32.gmra.mrb[0].mxu0 %v668
      %v855 = vpop.f32.mrb[0].mxu0
      %v856 = vadd.f32 0.0, %v855
      %v857 = vpop.f32.mrb[0].mxu0
      %858 = vdwg.mxu0
      %v859 = vmax.f32 %v618, %v736
      %v860 = vmax.f32 %v619, %v741
      %v861 = vmax.f32 %v620, %v746
      %v862 = vmax.f32 %v621, %v751
      %v863 = vmax.f32 %v622, %v756
      %v864 = vmax.f32 %v623, %v761
      %v865 = vmax.f32 %v624, %v766
      %v866 = vmax.f32 %v625, %v771
      %v867 = vmax.f32 %v626, %v776
      %v868 = vmax.f32 %v627, %v781
      %v869 = vmax.f32 %v628, %v786
      %v870 = vmax.f32 %v629, %v791
      %v871 = vmax.f32 %v630, %v796
      %v872 = vmax.f32 %v631, %v801
      %v873 = vmax.f32 %v632, %v806
      %v874 = vmax.f32 %v633, %v811
      %v875 = vmax.f32 %v634, %v816
      %v876 = vmax.f32 %v635, %v821
      %v877 = vmax.f32 %v636, %v826
      %v878 = vmax.f32 %v637, %v831
      %v879 = vmax.f32 %v638, %v836
      %v880 = vmax.f32 %v639, %v841
      %v881 = vmax.f32 %v640, %v846
      %v882 = vmax.f32 %v641, %v851
      %v883 = vmax.f32 %v642, %v856
      %s884 = scalar_lea.vmem %s165, 600
      %v885 = vld [vmem:[%s884] sm:$0xff]
      %v886 = vld [vmem:[%s884 + $0x8] sm:$0xff]
      %v887 = vld [vmem:[%s884 + $0x10] sm:$0xff]
      %v888 = vld [vmem:[%s884 + $0x18] sm:$0xff]
      %v889 = vld [vmem:[%s884 + $0x20] sm:$0xff]
      %v890 = vld [vmem:[%s884 + $0x28] sm:$0xff]
      %v891 = vld [vmem:[%s884 + $0x30] sm:$0xff]
      %v892 = vld [vmem:[%s884 + $0x38] sm:$0xff]
      %v893 = vld [vmem:[%s884 + $0x40] sm:$0xff]
      %v894 = vld [vmem:[%s884 + $0x48] sm:$0xff]
      %v895 = vld [vmem:[%s884 + $0x50] sm:$0xff]
      %v896 = vld [vmem:[%s884 + $0x58] sm:$0xff]
      %v897 = vld [vmem:[%s884 + $0x60] sm:$0xff]
      %v898 = vld [vmem:[%s884 + $0x68] sm:$0xff]
      %v899 = vld [vmem:[%s884 + $0x70] sm:$0xff]
      %v900 = vld [vmem:[%s884 + $0x78] sm:$0xff]
      %v901 = vld [vmem:[%s884 + $0x80] sm:$0xff]
      %v902 = vld [vmem:[%s884 + $0x88] sm:$0xff]
      %v903 = vld [vmem:[%s884 + $0x90] sm:$0xff]
      %v904 = vld [vmem:[%s884 + $0x98] sm:$0xff]
      %v905 = vld [vmem:[%s884 + $0xa0] sm:$0xff]
      %v906 = vld [vmem:[%s884 + $0xa8] sm:$0xff]
      %v907 = vld [vmem:[%s884 + $0xb0] sm:$0xff]
      %v908 = vld [vmem:[%s884 + $0xb8] sm:$0xff]
      %v909 = vld [vmem:[%s884 + $0xc0] sm:$0xf]
      %910 = vmatprep.subr.mxu0 0.0
      %911 = vmatpush1.msra.mxu0 %v171
      %912 = vmatprep.subr.mxu0 0.0
      %913 = vmatpush1.msra.mxu0 %v172
      %914 = vmatprep.subr.mxu0 0.0
      %915 = vmatpush1.msra.mxu0 %v173
      %916 = vmatprep.subr.mxu0 0.0
      %917 = vmatpush1.msra.mxu0 %v174
      %918 = vmatprep.subr.mxu0 0.0
      %919 = vmatpush1.msra.mxu0 %v175
      %920 = vmatprep.subr.mxu0 0.0
      %921 = vmatpush1.msra.mxu0 %v176
      %922 = vmatprep.subr.mxu0 0.0
      %923 = vmatpush1.msra.mxu0 %v177
      %924 = vmatprep.subr.mxu0 0.0
      %925 = vmatpush1.msra.mxu0 %v178
      %926 = vmatprep.subr.mxu0 0.0
      %927 = vmatpush1.msra.mxu0 %v179
      %928 = vmatprep.subr.mxu0 0.0
      %929 = vmatpush1.msra.mxu0 %v180
      %930 = vmatprep.subr.mxu0 0.0
      %931 = vmatpush1.msra.mxu0 %v181
      %932 = vmatprep.subr.mxu0 0.0
      %933 = vmatpush1.msra.mxu0 %v182
      %934 = vmatprep.subr.mxu0 0.0
      %935 = vmatpush1.msra.mxu0 %v183
      %936 = vmatprep.subr.mxu0 0.0
      %937 = vmatpush1.msra.mxu0 %v184
      %938 = vmatprep.subr.mxu0 0.0
      %939 = vmatpush1.msra.mxu0 %v185
      %940 = vmatprep.subr.mxu0 0.0
      %941 = vmatpush1.msra.mxu0 %v186
      %942 = vmatprep.subr.mxu0 0.0
      %943 = vmatpush1.msra.mxu0 0.0
      %944 = vmatprep.subr.mxu0 0.0
      %945 = vmatpush1.msra.mxu0 0.0
      %946 = vmatprep.subr.mxu0 0.0
      %947 = vmatpush1.msra.mxu0 0.0
      %948 = vmatprep.subr.mxu0 0.0
      %949 = vmatpush1.msra.mxu0 0.0
      %950 = vmatprep.subr.mxu0 0.0
      %951 = vmatpush1.msra.mxu0 0.0
      %952 = vmatprep.subr.mxu0 0.0
      %953 = vmatpush1.msra.mxu0 0.0
      %954 = vmatprep.subr.mxu0 0.0
      %955 = vmatpush1.msra.mxu0 0.0
      %956 = vmatprep.subr.mxu0 0.0
      %957 = vmatpush1.msra.mxu0 0.0
      %958 = vmatprep.subr.mxu0 0.0
      %959 = vmatpush1.msra.mxu0 0.0
      %960 = vmatprep.subr.mxu0 0.0
      %961 = vmatpush1.msra.mxu0 0.0
      %962 = vmatprep.subr.mxu0 0.0
      %963 = vmatpush1.msra.mxu0 0.0
      %964 = vmatprep.subr.mxu0 0.0
      %965 = vmatpush1.msra.mxu0 0.0
      %966 = vmatprep.subr.mxu0 0.0
      %967 = vmatpush1.msra.mxu0 0.0
      %968 = vmatprep.subr.mxu0 0.0
      %969 = vmatpush1.msra.mxu0 0.0
      %970 = vmatprep.subr.mxu0 0.0
      %971 = vmatpush1.msra.mxu0 0.0
      %972 = vmatprep.subr.mxu0 0.0
      %973 = vmatpush1.msra.mxu0 0.0
      %974 = vmatprep.mubr.f32.mxu0 0.0
      %975 = vmatmul.mubr.f32.gmra.mrb[0].mxu0 %v885
      %v976 = vpop.f32.mrb[0].mxu0
      %v977 = vadd.f32 0.0, %v976
      %v978 = vpop.f32.mrb[0].mxu0
      %979 = vmatprep.mubr.f32.mxu0 0.0
      %980 = vmatmul.mubr.f32.gmra.mrb[0].mxu0 %v886
      %v981 = vpop.f32.mrb[0].mxu0
      %v982 = vadd.f32 0.0, %v981
      %v983 = vpop.f32.mrb[0].mxu0
      %984 = vmatprep.mubr.f32.mxu0 0.0
      %985 = vmatmul.mubr.f32.gmra.mrb[0].mxu0 %v887
      %v986 = vpop.f32.mrb[0].mxu0
      %v987 = vadd.f32 0.0, %v986
      %v988 = vpop.f32.mrb[0].mxu0
      %989 = vmatprep.mubr.f32.mxu0 0.0
      %990 = vmatmul.mubr.f32.gmra.mrb[0].mxu0 %v888
      %v991 = vpop.f32.mrb[0].mxu0
      %v992 = vadd.f32 0.0, %v991
      %v993 = vpop.f32.mrb[0].mxu0
      %994 = vmatprep.mubr.f32.mxu0 0.0
      %995 = vmatmul.mubr.f32.gmra.mrb[0].mxu0 %v889
      %v996 = vpop.f32.mrb[0].mxu0
      %v997 = vadd.f32 0.0, %v996
      %v998 = vpop.f32.mrb[0].mxu0
      %999 = vmatprep.mubr.f32.mxu0 0.0
      %1000 = vmatmul.mubr.f32.gmra.mrb[0].mxu0 %v890
      %v1001 = vpop.f32.mrb[0].mxu0
      %v1002 = vadd.f32 0.0, %v1001
      %v1003 = vpop.f32.mrb[0].mxu0
      %1004 = vmatprep.mubr.f32.mxu0 0.0
      %1005 = vmatmul.mubr.f32.gmra.mrb[0].mxu0 %v891
      %v1006 = vpop.f32.mrb[0].mxu0
      %v1007 = vadd.f32 0.0, %v1006
      %v1008 = vpop.f32.mrb[0].mxu0
      %1009 = vmatprep.mubr.f32.mxu0 0.0
      %1010 = vmatmul.mubr.f32.gmra.mrb[0].mxu0 %v892
      %v1011 = vpop.f32.mrb[0].mxu0
      %v1012 = vadd.f32 0.0, %v1011
      %v1013 = vpop.f32.mrb[0].mxu0
      %1014 = vmatprep.mubr.f32.mxu0 0.0
      %1015 = vmatmul.mubr.f32.gmra.mrb[0].mxu0 %v893
      %v1016 = vpop.f32.mrb[0].mxu0
      %v1017 = vadd.f32 0.0, %v1016
      %v1018 = vpop.f32.mrb[0].mxu0
      %1019 = vmatprep.mubr.f32.mxu0 0.0
      %1020 = vmatmul.mubr.f32.gmra.mrb[0].mxu0 %v894
      %v1021 = vpop.f32.mrb[0].mxu0
      %v1022 = vadd.f32 0.0, %v1021
      %v1023 = vpop.f32.mrb[0].mxu0
      %1024 = vmatprep.mubr.f32.mxu0 0.0
      %1025 = vmatmul.mubr.f32.gmra.mrb[0].mxu0 %v895
      %v1026 = vpop.f32.mrb[0].mxu0
      %v1027 = vadd.f32 0.0, %v1026
      %v1028 = vpop.f32.mrb[0].mxu0
      %1029 = vmatprep.mubr.f32.mxu0 0.0
      %1030 = vmatmul.mubr.f32.gmra.mrb[0].mxu0 %v896
      %v1031 = vpop.f32.mrb[0].mxu0
      %v1032 = vadd.f32 0.0, %v1031
      %v1033 = vpop.f32.mrb[0].mxu0
      %1034 = vmatprep.mubr.f32.mxu0 0.0
      %1035 = vmatmul.mubr.f32.gmra.mrb[0].mxu0 %v897
      %v1036 = vpop.f32.mrb[0].mxu0
      %v1037 = vadd.f32 0.0, %v1036
      %v1038 = vpop.f32.mrb[0].mxu0
      %1039 = vmatprep.mubr.f32.mxu0 0.0
      %1040 = vmatmul.mubr.f32.gmra.mrb[0].mxu0 %v898
      %v1041 = vpop.f32.mrb[0].mxu0
      %v1042 = vadd.f32 0.0, %v1041
      %v1043 = vpop.f32.mrb[0].mxu0
      %1044 = vmatprep.mubr.f32.mxu0 0.0
      %1045 = vmatmul.mubr.f32.gmra.mrb[0].mxu0 %v899
      %v1046 = vpop.f32.mrb[0].mxu0
      %v1047 = vadd.f32 0.0, %v1046
      %v1048 = vpop.f32.mrb[0].mxu0
      %1049 = vmatprep.mubr.f32.mxu0 0.0
      %1050 = vmatmul.mubr.f32.gmra.mrb[0].mxu0 %v900
      %v1051 = vpop.f32.mrb[0].mxu0
      %v1052 = vadd.f32 0.0, %v1051
      %v1053 = vpop.f32.mrb[0].mxu0
      %1054 = vmatprep.mubr.f32.mxu0 0.0
      %1055 = vmatmul.mubr.f32.gmra.mrb[0].mxu0 %v901
      %v1056 = vpop.f32.mrb[0].mxu0
      %v1057 = vadd.f32 0.0, %v1056
      %v1058 = vpop.f32.mrb[0].mxu0
      %1059 = vmatprep.mubr.f32.mxu0 0.0
      %1060 = vmatmul.mubr.f32.gmra.mrb[0].mxu0 %v902
      %v1061 = vpop.f32.mrb[0].mxu0
      %v1062 = vadd.f32 0.0, %v1061
      %v1063 = vpop.f32.mrb[0].mxu0
      %1064 = vmatprep.mubr.f32.mxu0 0.0
      %1065 = vmatmul.mubr.f32.gmra.mrb[0].mxu0 %v903
      %v1066 = vpop.f32.mrb[0].mxu0
      %v1067 = vadd.f32 0.0, %v1066
      %v1068 = vpop.f32.mrb[0].mxu0
      %1069 = vmatprep.mubr.f32.mxu0 0.0
      %1070 = vmatmul.mubr.f32.gmra.mrb[0].mxu0 %v904
      %v1071 = vpop.f32.mrb[0].mxu0
      %v1072 = vadd.f32 0.0, %v1071
      %v1073 = vpop.f32.mrb[0].mxu0
      %1074 = vmatprep.mubr.f32.mxu0 0.0
      %1075 = vmatmul.mubr.f32.gmra.mrb[0].mxu0 %v905
      %v1076 = vpop.f32.mrb[0].mxu0
      %v1077 = vadd.f32 0.0, %v1076
      %v1078 = vpop.f32.mrb[0].mxu0
      %1079 = vmatprep.mubr.f32.mxu0 0.0
      %1080 = vmatmul.mubr.f32.gmra.mrb[0].mxu0 %v906
      %v1081 = vpop.f32.mrb[0].mxu0
      %v1082 = vadd.f32 0.0, %v1081
      %v1083 = vpop.f32.mrb[0].mxu0
      %1084 = vmatprep.mubr.f32.mxu0 0.0
      %1085 = vmatmul.mubr.f32.gmra.mrb[0].mxu0 %v907
      %v1086 = vpop.f32.mrb[0].mxu0
      %v1087 = vadd.f32 0.0, %v1086
      %v1088 = vpop.f32.mrb[0].mxu0
      %1089 = vmatprep.mubr.f32.mxu0 0.0
      %1090 = vmatmul.mubr.f32.gmra.mrb[0].mxu0 %v908
      %v1091 = vpop.f32.mrb[0].mxu0
      %v1092 = vadd.f32 0.0, %v1091
      %v1093 = vpop.f32.mrb[0].mxu0
      %1094 = vmatprep.mubr.f32.mxu0 0.0
      %1095 = vmatmul.mubr.f32.gmra.mrb[0].mxu0 %v909
      %v1096 = vpop.f32.mrb[0].mxu0
      %v1097 = vadd.f32 0.0, %v1096
      %v1098 = vpop.f32.mrb[0].mxu0
      %1099 = vdwg.mxu0
      %v1100 = vmax.f32 %v859, %v977
      %v1101 = vmax.f32 %v860, %v982
      %v1102 = vmax.f32 %v861, %v987
      %v1103 = vmax.f32 %v862, %v992
      %v1104 = vmax.f32 %v863, %v997
      %v1105 = vmax.f32 %v864, %v1002
      %v1106 = vmax.f32 %v865, %v1007
      %v1107 = vmax.f32 %v866, %v1012
      %v1108 = vmax.f32 %v867, %v1017
      %v1109 = vmax.f32 %v868, %v1022
      %v1110 = vmax.f32 %v869, %v1027
      %v1111 = vmax.f32 %v870, %v1032
      %v1112 = vmax.f32 %v871, %v1037
      %v1113 = vmax.f32 %v872, %v1042
      %v1114 = vmax.f32 %v873, %v1047
      %v1115 = vmax.f32 %v874, %v1052
      %v1116 = vmax.f32 %v875, %v1057
      %v1117 = vmax.f32 %v876, %v1062
      %v1118 = vmax.f32 %v877, %v1067
      %v1119 = vmax.f32 %v878, %v1072
      %v1120 = vmax.f32 %v879, %v1077
      %v1121 = vmax.f32 %v880, %v1082
      %v1122 = vmax.f32 %v881, %v1087
      %v1123 = vmax.f32 %v882, %v1092
      %v1124 = vmax.f32 %v883, %v1097
      %v1125 = vld [vmem:[%s2] sm:$0x1]
      %v1127 = vlaneseq
      %v1128 = vshrl.u32 %v1127, 7
      %v1129 = vsub.s32 0, %v1128
      %v1130 = vrot.slane %v1125, %v1129
      %v1132 = vadd.f32 %v1100, %v1130
      %v1133 = vadd.f32 %v1101, %v1130
      %v1134 = vadd.f32 %v1102, %v1130
      %v1135 = vadd.f32 %v1103, %v1130
      %v1136 = vadd.f32 %v1104, %v1130
      %v1137 = vadd.f32 %v1105, %v1130
      %v1138 = vadd.f32 %v1106, %v1130
      %v1139 = vadd.f32 %v1107, %v1130
      %v1140 = vadd.f32 %v1108, %v1130
      %v1141 = vadd.f32 %v1109, %v1130
      %v1142 = vadd.f32 %v1110, %v1130
      %v1143 = vadd.f32 %v1111, %v1130
      %v1144 = vadd.f32 %v1112, %v1130
      %v1145 = vadd.f32 %v1113, %v1130
      %v1146 = vadd.f32 %v1114, %v1130
      %v1147 = vadd.f32 %v1115, %v1130
      %v1148 = vadd.f32 %v1116, %v1130
      %v1149 = vadd.f32 %v1117, %v1130
      %v1150 = vadd.f32 %v1118, %v1130
      %v1151 = vadd.f32 %v1119, %v1130
      %v1152 = vadd.f32 %v1120, %v1130
      %v1153 = vadd.f32 %v1121, %v1130
      %v1154 = vadd.f32 %v1122, %v1130
      %v1155 = vadd.f32 %v1123, %v1130
      %v1156 = vadd.f32 %v1124, %v1130
      %v1157 = vmax.f32 %v1132, 0.0
      %v1158 = vmax.f32 %v1133, 0.0
      %v1159 = vmax.f32 %v1134, 0.0
      %v1160 = vmax.f32 %v1135, 0.0
      %v1161 = vmax.f32 %v1136, 0.0
      %v1162 = vmax.f32 %v1137, 0.0
      %v1163 = vmax.f32 %v1138, 0.0
      %v1164 = vmax.f32 %v1139, 0.0
      %v1165 = vmax.f32 %v1140, 0.0
      %v1166 = vmax.f32 %v1141, 0.0
      %v1167 = vmax.f32 %v1142, 0.0
      %v1168 = vmax.f32 %v1143, 0.0
      %v1169 = vmax.f32 %v1144, 0.0
      %v1170 = vmax.f32 %v1145, 0.0
      %v1171 = vmax.f32 %v1146, 0.0
      %v1172 = vmax.f32 %v1147, 0.0
      %v1173 = vmax.f32 %v1148, 0.0
      %v1174 = vmax.f32 %v1149, 0.0
      %v1175 = vmax.f32 %v1150, 0.0
      %v1176 = vmax.f32 %v1151, 0.0
      %v1177 = vmax.f32 %v1152, 0.0
      %v1178 = vmax.f32 %v1153, 0.0
      %v1179 = vmax.f32 %v1154, 0.0
      %v1180 = vmax.f32 %v1155, 0.0
      %v1181 = vmax.f32 %v1156, 0.0
      %1182 = vst [vmem:[%s170] sm:$0xff] %v1157
      %1183 = vst [vmem:[%s170 + $0x8] sm:$0xff] %v1158
      %1184 = vst [vmem:[%s170 + $0x10] sm:$0xff] %v1159
      %1185 = vst [vmem:[%s170 + $0x18] sm:$0xff] %v1160
      %1186 = vst [vmem:[%s170 + $0x20] sm:$0xff] %v1161
      %1187 = vst [vmem:[%s170 + $0x28] sm:$0xff] %v1162
      %1188 = vst [vmem:[%s170 + $0x30] sm:$0xff] %v1163
      %1189 = vst [vmem:[%s170 + $0x38] sm:$0xff] %v1164
      %1190 = vst [vmem:[%s170 + $0x40] sm:$0xff] %v1165
      %1191 = vst [vmem:[%s170 + $0x48] sm:$0xff] %v1166
      %1192 = vst [vmem:[%s170 + $0x50] sm:$0xff] %v1167
      %1193 = vst [vmem:[%s170 + $0x58] sm:$0xff] %v1168
      %1194 = vst [vmem:[%s170 + $0x60] sm:$0xff] %v1169
      %1195 = vst [vmem:[%s170 + $0x68] sm:$0xff] %v1170
      %1196 = vst [vmem:[%s170 + $0x70] sm:$0xff] %v1171
      %1197 = vst [vmem:[%s170 + $0x78] sm:$0xff] %v1172
      %1198 = vst [vmem:[%s170 + $0x80] sm:$0xff] %v1173
      %1199 = vst [vmem:[%s170 + $0x88] sm:$0xff] %v1174
      %1200 = vst [vmem:[%s170 + $0x90] sm:$0xff] %v1175
      %1201 = vst [vmem:[%s170 + $0x98] sm:$0xff] %v1176
      %1202 = vst [vmem:[%s170 + $0xa0] sm:$0xff] %v1177
      %1203 = vst [vmem:[%s170 + $0xa8] sm:$0xff] %v1178
      %1204 = vst [vmem:[%s170 + $0xb0] sm:$0xff] %v1179
      %1205 = vst [vmem:[%s170 + $0xb8] sm:$0xff] %v1180
      %1206 = vst [vmem:[%s170 + $0xc0] sm:$0xf] %v1181
      %p1207 = scmp.lt.s32.totalorder %s14, 1
      %s1208 = scalar_select %p1207, %s14, 1
      %s1209 = smul.addr %s1208, 25
      %s1210 = smul.addr %s1209, 8
      %s1211 = scalar_lea.vmem %s3, %s1210
      // Predicated region
      $region33: #{net_forward.3} parent=31 // pred_check
        %p1212 = pneg %p100
      $region34: #{net_forward.3} parent=31 // pred_check_branch
        %1214 = sbr.rel (%p1212) target = $region36
      $region35: #{net_forward.3} parent=31 // pred_region
        _
      $region36: #{net_forward.3} parent=31 // pred_fallthru
        _
    $region32: #{net_forward.3} parent=5 // pred_fallthru
      _
    %p1215 = scmp.le.s32.totalorder 2, %s9
    // Predicated region
    $region37: #{net_forward.3} parent=5 // pred_check
      %p1216 = pneg %p1215
    $region38: #{net_forward.3} parent=5 // pred_check_branch
      %1218 = sbr.rel (%p1216) target = $region40
    $region39: #{net_forward.3} parent=5 // pred_region
      %s1219 = ssub.s32 %s9, 2
      // Predicated region
      $region41: #{net_forward.3} parent=39 // pred_check
        %p1220 = pneg %p106
      $region42: #{net_forward.3} parent=39 // pred_check_branch
        %1222 = sbr.rel (%p1220) target = $region44
      $region43: #{net_forward.3} parent=39 // pred_region
        %p1223 = scmp.lt.s32.totalorder %s15, 1
        %s1224 = scalar_select %p1223, %s15, 1
        %s1225 = smul.addr %s1224, 25
        %s1226 = smul.addr %s1225, 8
        %s1227 = scalar_lea.vmem %s3, %s1226
      $region44: #{net_forward.3} parent=39 // pred_fallthru
        _
    $region40: #{net_forward.3} parent=5 // pred_fallthru
      _
  $region6: #{net_forward.3} parent=0 // loop_footer
    %s13 = sadd.s32 1, %s9
  $region7: #{net_forward.3} parent=0 // loop_footer_branch
    %8 = sbr.rel target = $region3
  $region8: #{net_forward.3} parent=0 // loop_exit
    _

// kernel: net_forward.4
$region0: #{net_forward.4}
  #allocation0 [shape = 'u32[]', space=smem, size = 0x4, offset = 0x4, fixed_abs, tag = 'smem constant byte address 0x4 - core index']
  #allocation1 [shape = 'u32[144,128]{1,0:T(1,128)}', space=vmem, size = 0x12000, scoped, tag = 'internal scratch']
  %s0 = inlined_call_operand.vmem [shape: f32[2,4,25,256], index: 0, kind: input, shape index: {}]
  %s1 = inlined_call_operand.vmem [shape: f32[256,128], index: 1, kind: input, shape index: {}]
  %s2 = inlined_call_operand.vmem [shape: f32[1,128], index: 2, kind: input, shape index: {}]
  %s3 = inlined_call_operand.vmem [shape: f32[2,25,128], index: 3, kind: output, shape index: {}]
  %s4 = sld [smem:[#allocation0]]
  $region45: #{net_forward.4} parent=0
    _
  %s6 = ssub.s32 1, %s4
  %s7 = scalar_select 0, %s6, %s4
  loop: start=0, step=1, limit=4
  $region2: #{net_forward.4} parent=0 // loop_pre_header
    _
  $region3: #{net_forward.4} parent=0 // loop_header
    %s9 = sphi 0, %s13
    %p10 = scmp.ge.s32.totalorder %s9, 4
    %s19 = sphi 0, %s21
    %s22 = sphi 0, %s19
    %s23 = sphi 0, %s22
    %s39 = sphi 0, %s23
    %s43 = sphi 0, %s43
    %s45 = sphi 0, %s43
    %s46 = sphi 0, %s45
    %s60 = sphi 0, %s46
    %s64 = sphi 0, %s64
    %s66 = sphi 0, %s64
    %s67 = sphi 0, %s66
    %s81 = sphi 0, %s67
    %s87 = sphi 0, %s89
    %s90 = sphi 0, %s87
    %s91 = sphi 0, %s90
    %s107 = sphi 0, %s91
  $region4: #{net_forward.4} parent=0 // loop_header_branch
    %12 = sbr.rel (%p10) target = $region8
  $region5: #{net_forward.4} parent=0 // loop_body
    %s14 = ssub.s32 %s9, 1
    %s15 = ssub.s32 %s9, 2
    %s16 = sadd.s32 %s9, 1
    %s17 = ssub.s32 %s9, %s16
    %p18 = scmp.eq.s32.totalorder %s17, 0
    %s20 = sadd.s32 %s19, 1
    %s21 = scalar_select %p18, %s19, %s20
    %p24 = pneg %p18
    %p25 = scmp.eq.s32.totalorder %s9, 1
    %p26 = por %p24, %p25
    %p27 = scmp.ne.s32.totalorder %s19, %s22
    %p28 = scmp.eq.s32.totalorder %s9, 0
    %p29 = por %p27, %p28
    %p30 = scmp.ne.s32.totalorder %s19, %s22
    %p31 = scmp.eq.s32.totalorder %s14, 1
    %p32 = por %p30, %p31
    %p33 = scmp.ne.s32.totalorder %s22, %s23
    %p34 = scmp.eq.s32.totalorder %s14, 0
    %p35 = por %p33, %p34
    %p36 = scmp.ne.s32.totalorder %s22, %s23
    %p37 = scmp.eq.s32.totalorder %s15, 1
    %p38 = por %p36, %p37
    %p40 = scmp.ne.s32.totalorder %s23, %s39
    %p41 = scmp.eq.s32.totalorder %s15, 0
    %p42 = por %p40, %p41
    %s44 = sadd.s32 %s43, 1
    %p47 = scmp.eq.s32.totalorder %s9, 1
    %p48 = scmp.ne.s32.totalorder %s43, %s45
    %p49 = scmp.eq.s32.totalorder %s9, 0
    %p50 = por %p48, %p49
    %p51 = scmp.ne.s32.totalorder %s43, %s45
    %p52 = scmp.eq.s32.totalorder %s14, 1
    %p53 = por %p51, %p52
    %p54 = scmp.ne.s32.totalorder %s45, %s46
    %p55 = scmp.eq.s32.totalorder %s14, 0
    %p56 = por %p54, %p55
    %p57 = scmp.ne.s32.totalorder %s45, %s46
    %p58 = scmp.eq.s32.totalorder %s15, 1
    %p59 = por %p57, %p58
    %p61 = scmp.ne.s32.totalorder %s46, %s60
    %p62 = scmp.eq.s32.totalorder %s15, 0
    %p63 = por %p61, %p62
    %s65 = sadd.s32 %s64, 1
    %p68 = scmp.eq.s32.totalorder %s9, 1
    %p69 = scmp.ne.s32.totalorder %s64, %s66
    %p70 = scmp.eq.s32.totalorder %s9, 0
    %p71 = por %p69, %p70
    %p72 = scmp.ne.s32.totalorder %s64, %s66
    %p73 = scmp.eq.s32.totalorder %s14, 1
    %p74 = por %p72, %p73
    %p75 = scmp.ne.s32.totalorder %s66, %s67
    %p76 = scmp.eq.s32.totalorder %s14, 0
    %p77 = por %p75, %p76
    %p78 = scmp.ne.s32.totalorder %s66, %s67
    %p79 = scmp.eq.s32.totalorder %s15, 1
    %p80 = por %p78, %p79
    %p82 = scmp.ne.s32.totalorder %s67, %s81
    %p83 = scmp.eq.s32.totalorder %s15, 0
    %p84 = por %p82, %p83
    %s85 = ssub.s32 %s9, %s16
    %p86 = scmp.eq.s32.totalorder %s85, 0
    %s88 = sadd.s32 %s87, 1
    %s89 = scalar_select %p86, %s87, %s88
    %p92 = pneg %p86
    %p93 = scmp.eq.s32.totalorder %s9, 1
    %p94 = por %p92, %p93
    %p95 = scmp.ne.s32.totalorder %s87, %s90
    %p96 = scmp.eq.s32.totalorder %s9, 0
    %p97 = por %p95, %p96
    %p98 = scmp.ne.s32.totalorder %s87, %s90
    %p99 = scmp.eq.s32.totalorder %s14, 1
    %p100 = por %p98, %p99
    %p101 = scmp.ne.s32.totalorder %s90, %s91
    %p102 = scmp.eq.s32.totalorder %s14, 0
    %p103 = por %p101, %p102
    %p104 = scmp.ne.s32.totalorder %s90, %s91
    %p105 = scmp.eq.s32.totalorder %s15, 1
    %p106 = por %p104, %p105
    %p108 = scmp.ne.s32.totalorder %s91, %s107
    %p109 = scmp.eq.s32.totalorder %s15, 0
    %p110 = por %p108, %p109
    %p111 = scmp.le.s32.totalorder 1, %s9
    %p112 = scmp.lt.s32.totalorder %s9, 3
    %p113 = pnand %p111, %p112
    %p114 = pneg %p113
    // Predicated region
    $region9: #{net_forward.4} parent=5 // pred_check
      _
    $region10: #{net_forward.4} parent=5 // pred_check_branch
      %116 = sbr.rel (%p113) target = $region12
    $region11: #{net_forward.4} parent=5 // pred_region
      %s117 = ssub.s32 %s9, 1
      // Predicated region
      $region13: #{net_forward.4} parent=11 // pred_check
        %p118 = pneg %p56
      $region14: #{net_forward.4} parent=11 // pred_check_branch
        %120 = sbr.rel (%p118) target = $region16
      $region15: #{net_forward.4} parent=11 // pred_region
        _
      $region16: #{net_forward.4} parent=11 // pred_fallthru
        _
      // Predicated region
      $region17: #{net_forward.4} parent=11 // pred_check
        %p121 = pneg %p77
      $region18: #{net_forward.4} parent=11 // pred_check_branch
        %123 = sbr.rel (%p121) target = $region20
      $region19: #{net_forward.4} parent=11 // pred_region
        _
      $region20: #{net_forward.4} parent=11 // pred_fallthru
        _
    $region12: #{net_forward.4} parent=5 // pred_fallthru
      _
    %p124 = scmp.lt.s32.totalorder %s9, 2
    // Predicated region
    $region21: #{net_forward.4} parent=5 // pred_check
      %p125 = pneg %p124
    $region22: #{net_forward.4} parent=5 // pred_check_branch
      %127 = sbr.rel (%p125) target = $region24
    $region23: #{net_forward.4} parent=5 // pred_region
      // Predicated region
      $region25: #{net_forward.4} parent=23 // pred_check
        %p128 = pneg %p29
      $region26: #{net_forward.4} parent=23 // pred_check_branch
        %130 = sbr.rel (%p128) target = $region28
      $region27: #{net_forward.4} parent=23 // pred_region
        %p131 = scmp.lt.s32.totalorder %s9, 1
        %s132 = scalar_select %p131, %s9, 1
        %s133 = smul.addr %s132, 32
        %s134 = smul.addr %s133, 8
        %s135 = scalar_lea.vmem %s0, %s134
      $region28: #{net_forward.4} parent=23 // pred_fallthru
        _
    $region24: #{net_forward.4} parent=5 // pred_fallthru
      _
    %p136 = scmp.le.s32.totalorder 1, %s9
    %p137 = scmp.lt.s32.totalorder %s9, 3
    %p138 = pnand %p136, %p137
    %p139 = pneg %p138
    // Predicated region
    $region29: #{net_forward.4} parent=5 // pred_check
      _
    $region30: #{net_forward.4} parent=5 // pred_check_branch
      %141 = sbr.rel (%p138) target = $region32
    $region31: #{net_forward.4} parent=5 // pred_region
      %s142 = ssub.s32 %s9, 1
      %p143 = scmp.lt.s32.totalorder %s14, 1
      %s144 = scalar_select %p143, %s14, 1
      %s145 = smul.addr %s144, 32
      %s146 = smul.addr %s145, 8
      %s147 = scalar_lea.vmem %s0, %s146
      %p148 = pneg %p35
      %p149 = pneg %p32
      %p150 = pneg %p56
      %p151 = pneg %p53
      %p152 = pneg %p77
      %p153 = pneg %p74
      %p154 = pneg %p103
      %p155 = pneg %p100
      %p156 = scmp.lt.s32.totalorder %s14, 1
      %s157 = scalar_select %p156, %s14, 1
      %s158 = smul.addr %s157, 4
      %s159 = smul.addr %s158, 8
      %s160 = scalar_lea.vmem %s3, %s159
      %p161 = scmp.lt.s32.totalorder %s14, 1
      %s162 = scalar_select %p161, %s14, 1
      %s163 = smul.addr %s162, 32
      %s164 = smul.addr %s163, 8
      %s165 = scalar_lea.vmem %s0, %s164
      %p166 = scmp.lt.s32.totalorder %s14, 1
      %s167 = scalar_select %p166, %s14, 1
      %s168 = smul.addr %s167, 4
      %s169 = smul.addr %s168, 8
      %s170 = scalar_lea.vmem %s3, %s169
      %v171 = vld [vmem:[%s1] sm:$0xff]
      %v172 = vld [vmem:[%s1 + $0x8] sm:$0xff]
      %v173 = vld [vmem:[%s1 + $0x10] sm:$0xff]
      %v174 = vld [vmem:[%s1 + $0x18] sm:$0xff]
      %v175 = vld [vmem:[%s1 + $0x20] sm:$0xff]
      %v176 = vld [vmem:[%s1 + $0x28] sm:$0xff]
      %v177 = vld [vmem:[%s1 + $0x30] sm:$0xff]
      %v178 = vld [vmem:[%s1 + $0x38] sm:$0xff]
      %v179 = vld [vmem:[%s1 + $0x40] sm:$0xff]
      %v180 = vld [vmem:[%s1 + $0x48] sm:$0xff]
      %v181 = vld [vmem:[%s1 + $0x50] sm:$0xff]
      %v182 = vld [vmem:[%s1 + $0x58] sm:$0xff]
      %v183 = vld [vmem:[%s1 + $0x60] sm:$0xff]
      %v184 = vld [vmem:[%s1 + $0x68] sm:$0xff]
      %v185 = vld [vmem:[%s1 + $0x70] sm:$0xff]
      %v186 = vld [vmem:[%s1 + $0x78] sm:$0xff]
      %v187 = vld [vmem:[%s1 + $0x80] sm:$0xff]
      %v188 = vld [vmem:[%s1 + $0x88] sm:$0xff]
      %v189 = vld [vmem:[%s1 + $0x90] sm:$0xff]
      %v190 = vld [vmem:[%s1 + $0x98] sm:$0xff]
      %v191 = vld [vmem:[%s1 + $0xa0] sm:$0xff]
      %v192 = vld [vmem:[%s1 + $0xa8] sm:$0xff]
      %v193 = vld [vmem:[%s1 + $0xb0] sm:$0xff]
      %v194 = vld [vmem:[%s1 + $0xb8] sm:$0xff]
      %v195 = vld [vmem:[%s1 + $0xc0] sm:$0xff]
      %v196 = vld [vmem:[%s1 + $0xc8] sm:$0xff]
      %v197 = vld [vmem:[%s1 + $0xd0] sm:$0xff]
      %v198 = vld [vmem:[%s1 + $0xd8] sm:$0xff]
      %v199 = vld [vmem:[%s1 + $0xe0] sm:$0xff]
      %v200 = vld [vmem:[%s1 + $0xe8] sm:$0xff]
      %v201 = vld [vmem:[%s1 + $0xf0] sm:$0xff]
      %v202 = vld [vmem:[%s1 + $0xf8] sm:$0xff]
      %v203 = vld [vmem:[%s165] sm:$0xff]
      %v204 = vld [vmem:[%s165 + $0x8] sm:$0xff]
      %v205 = vld [vmem:[%s165 + $0x10] sm:$0xff]
      %v206 = vld [vmem:[%s165 + $0x18] sm:$0xff]
      %v207 = vld [vmem:[%s165 + $0x20] sm:$0xff]
      %v208 = vld [vmem:[%s165 + $0x28] sm:$0xff]
      %v209 = vld [vmem:[%s165 + $0x30] sm:$0x1]
      %v210 = vld [vmem:[%s165 + $0x38] sm:$0x1]
      %211 = vmatprep.subr.mxu0 0.0
      %212 = vmatpush1.msra.mxu0 %v171
      %213 = vmatprep.subr.mxu0 0.0
      %214 = vmatpush1.msra.mxu0 %v172
      %215 = vmatprep.subr.mxu0 0.0
      %216 = vmatpush1.msra.mxu0 %v173
      %217 = vmatprep.subr.mxu0 0.0
      %218 = vmatpush1.msra.mxu0 %v174
      %219 = vmatprep.subr.mxu0 0.0
      %220 = vmatpush1.msra.mxu0 %v175
      %221 = vmatprep.subr.mxu0 0.0
      %222 = vmatpush1.msra.mxu0 %v176
      %223 = vmatprep.subr.mxu0 0.0
      %224 = vmatpush1.msra.mxu0 %v177
      %225 = vmatprep.subr.mxu0 0.0
      %226 = vmatpush1.msra.mxu0 %v178
      %227 = vmatprep.subr.mxu0 0.0
      %228 = vmatpush1.msra.mxu0 %v179
      %229 = vmatprep.subr.mxu0 0.0
      %230 = vmatpush1.msra.mxu0 %v180
      %231 = vmatprep.subr.mxu0 0.0
      %232 = vmatpush1.msra.mxu0 %v181
      %233 = vmatprep.subr.mxu0 0.0
      %234 = vmatpush1.msra.mxu0 %v182
      %235 = vmatprep.subr.mxu0 0.0
      %236 = vmatpush1.msra.mxu0 %v183
      %237 = vmatprep.subr.mxu0 0.0
      %238 = vmatpush1.msra.mxu0 %v184
      %239 = vmatprep.subr.mxu0 0.0
      %240 = vmatpush1.msra.mxu0 %v185
      %241 = vmatprep.subr.mxu0 0.0
      %242 = vmatpush1.msra.mxu0 %v186
      %243 = vmatprep.subr.mxu0 0.0
      %244 = vmatpush1.msra.mxu0 %v187
      %245 = vmatprep.subr.mxu0 0.0
      %246 = vmatpush1.msra.mxu0 %v188
      %247 = vmatprep.subr.mxu0 0.0
      %248 = vmatpush1.msra.mxu0 %v189
      %249 = vmatprep.subr.mxu0 0.0
      %250 = vmatpush1.msra.mxu0 %v190
      %251 = vmatprep.subr.mxu0 0.0
      %252 = vmatpush1.msra.mxu0 %v191
      %253 = vmatprep.subr.mxu0 0.0
      %254 = vmatpush1.msra.mxu0 %v192
      %255 = vmatprep.subr.mxu0 0.0
      %256 = vmatpush1.msra.mxu0 %v193
      %257 = vmatprep.subr.mxu0 0.0
      %258 = vmatpush1.msra.mxu0 %v194
      %259 = vmatprep.subr.mxu0 0.0
      %260 = vmatpush1.msra.mxu0 %v195
      %261 = vmatprep.subr.mxu0 0.0
      %262 = vmatpush1.msra.mxu0 %v196
      %263 = vmatprep.subr.mxu0 0.0
      %264 = vmatpush1.msra.mxu0 %v197
      %265 = vmatprep.subr.mxu0 0.0
      %266 = vmatpush1.msra.mxu0 %v198
      %267 = vmatprep.subr.mxu0 0.0
      %268 = vmatpush1.msra.mxu0 %v199
      %269 = vmatprep.subr.mxu0 0.0
      %270 = vmatpush1.msra.mxu0 %v200
      %271 = vmatprep.subr.mxu0 0.0
      %272 = vmatpush1.msra.mxu0 %v201
      %273 = vmatprep.subr.mxu0 0.0
      %274 = vmatpush1.msra.mxu0 %v202
      %275 = vmatprep.mubr.f32.mxu0 %v204
      %276 = vmatmul.mubr.f32.gmra.mrb[0].mxu0 %v203
      %v277 = vpop.f32.mrb[0].mxu0
      %v278 = vadd.f32 0.0, %v277
      %v279 = vpop.f32.mrb[0].mxu0
      %280 = vmatprep.mubr.f32.mxu0 %v206
      %281 = vmatmul.mubr.f32.gmra.mrb[0].mxu0 %v205
      %v282 = vpop.f32.mrb[0].mxu0
      %v283 = vadd.f32 0.0, %v282
      %v284 = vpop.f32.mrb[0].mxu0
      %285 = vmatprep.mubr.f32.mxu0 %v208
      %286 = vmatmul.mubr.f32.gmra.mrb[0].mxu0 %v207
      %v287 = vpop.f32.mrb[0].mxu0
      %v288 = vadd.f32 0.0, %v287
      %v289 = vpop.f32.mrb[0].mxu0
      %290 = vmatprep.mubr.f32.mxu0 %v210
      %291 = vmatmul.mubr.f32.gmra.mrb[0].mxu0 %v209
      %v292 = vpop.f32.mrb[0].mxu0
      %v293 = vadd.f32 0.0, %v292
      %v294 = vpop.f32.mrb[0].mxu0
      %295 = vdwg.mxu0
      %s296 = scalar_lea.vmem %s165, 64
      %v297 = vld [vmem:[%s296] sm:$0xff]
      %v298 = vld [vmem:[%s296 + $0x8] sm:$0xff]
      %v299 = vld [vmem:[%s296 + $0x10] sm:$0xff]
      %v300 = vld [vmem:[%s296 + $0x18] sm:$0xff]
      %v301 = vld [vmem:[%s296 + $0x20] sm:$0xff]
      %v302 = vld [vmem:[%s296 + $0x28] sm:$0xff]
      %v303 = vld [vmem:[%s296 + $0x30] sm:$0x1]
      %v304 = vld [vmem:[%s296 + $0x38] sm:$0x1]
      %305 = vmatprep.subr.mxu0 0.0
      %306 = vmatpush1.msra.mxu0 %v171
      %307 = vmatprep.subr.mxu0 0.0
      %308 = vmatpush1.msra.mxu0 %v172
      %309 = vmatprep.subr.mxu0 0.0
      %310 = vmatpush1.msra.mxu0 %v173
      %311 = vmatprep.subr.mxu0 0.0
      %312 = vmatpush1.msra.mxu0 %v174
      %313 = vmatprep.subr.mxu0 0.0
      %314 = vmatpush1.msra.mxu0 %v175
      %315 = vmatprep.subr.mxu0 0.0
      %316 = vmatpush1.msra.mxu0 %v176
      %317 = vmatprep.subr.mxu0 0.0
      %318 = vmatpush1.msra.mxu0 %v177
      %319 = vmatprep.subr.mxu0 0.0
      %320 = vmatpush1.msra.mxu0 %v178
      %321 = vmatprep.subr.mxu0 0.0
      %322 = vmatpush1.msra.mxu0 %v179
      %323 = vmatprep.subr.mxu0 0.0
      %324 = vmatpush1.msra.mxu0 %v180
      %325 = vmatprep.subr.mxu0 0.0
      %326 = vmatpush1.msra.mxu0 %v181
      %327 = vmatprep.subr.mxu0 0.0
      %328 = vmatpush1.msra.mxu0 %v182
      %329 = vmatprep.subr.mxu0 0.0
      %330 = vmatpush1.msra.mxu0 %v183
      %331 = vmatprep.subr.mxu0 0.0
      %332 = vmatpush1.msra.mxu0 %v184
      %333 = vmatprep.subr.mxu0 0.0
      %334 = vmatpush1.msra.mxu0 %v185
      %335 = vmatprep.subr.mxu0 0.0
      %336 = vmatpush1.msra.mxu0 %v186
      %337 = vmatprep.subr.mxu0 0.0
      %338 = vmatpush1.msra.mxu0 %v187
      %339 = vmatprep.subr.mxu0 0.0
      %340 = vmatpush1.msra.mxu0 %v188
      %341 = vmatprep.subr.mxu0 0.0
      %342 = vmatpush1.msra.mxu0 %v189
      %343 = vmatprep.subr.mxu0 0.0
      %344 = vmatpush1.msra.mxu0 %v190
      %345 = vmatprep.subr.mxu0 0.0
      %346 = vmatpush1.msra.mxu0 %v191
      %347 = vmatprep.subr.mxu0 0.0
      %348 = vmatpush1.msra.mxu0 %v192
      %349 = vmatprep.subr.mxu0 0.0
      %350 = vmatpush1.msra.mxu0 %v193
      %351 = vmatprep.subr.mxu0 0.0
      %352 = vmatpush1.msra.mxu0 %v194
      %353 = vmatprep.subr.mxu0 0.0
      %354 = vmatpush1.msra.mxu0 %v195
      %355 = vmatprep.subr.mxu0 0.0
      %356 = vmatpush1.msra.mxu0 %v196
      %357 = vmatprep.subr.mxu0 0.0
      %358 = vmatpush1.msra.mxu0 %v197
      %359 = vmatprep.subr.mxu0 0.0
      %360 = vmatpush1.msra.mxu0 %v198
      %361 = vmatprep.subr.mxu0 0.0
      %362 = vmatpush1.msra.mxu0 %v199
      %363 = vmatprep.subr.mxu0 0.0
      %364 = vmatpush1.msra.mxu0 %v200
      %365 = vmatprep.subr.mxu0 0.0
      %366 = vmatpush1.msra.mxu0 %v201
      %367 = vmatprep.subr.mxu0 0.0
      %368 = vmatpush1.msra.mxu0 %v202
      %369 = vmatprep.mubr.f32.mxu0 %v298
      %370 = vmatmul.mubr.f32.gmra.mrb[0].mxu0 %v297
      %v371 = vpop.f32.mrb[0].mxu0
      %v372 = vadd.f32 0.0, %v371
      %v373 = vpop.f32.mrb[0].mxu0
      %374 = vmatprep.mubr.f32.mxu0 %v300
      %375 = vmatmul.mubr.f32.gmra.mrb[0].mxu0 %v299
      %v376 = vpop.f32.mrb[0].mxu0
      %v377 = vadd.f32 0.0, %v376
      %v378 = vpop.f32.mrb[0].mxu0
      %379 = vmatprep.mubr.f32.mxu0 %v302
      %380 = vmatmul.mubr.f32.gmra.mrb[0].mxu0 %v301
      %v381 = vpop.f32.mrb[0].mxu0
      %v382 = vadd.f32 0.0, %v381
      %v383 = vpop.f32.mrb[0].mxu0
      %384 = vmatprep.mubr.f32.mxu0 %v304
      %385 = vmatmul.mubr.f32.gmra.mrb[0].mxu0 %v303
      %v386 = vpop.f32.mrb[0].mxu0
      %v387 = vadd.f32 0.0, %v386
      %v388 = vpop.f32.mrb[0].mxu0
      %389 = vdwg.mxu0
      %v390 = vmax.f32 %v278, %v372
      %v391 = vmax.f32 %v283, %v377
      %v392 = vmax.f32 %v288, %v382
      %v393 = vmax.f32 %v293, %v387
      %s394 = scalar_lea.vmem %s165, 128
      %v395 = vld [vmem:[%s394] sm:$0xff]
      %v396 = vld [vmem:[%s394 + $0x8] sm:$0xff]
      %v397 = vld [vmem:[%s394 + $0x10] sm:$0xff]
      %v398 = vld [vmem:[%s394 + $0x18] sm:$0xff]
      %v399 = vld [vmem:[%s394 + $0x20] sm:$0xff]
      %v400 = vld [vmem:[%s394 + $0x28] sm:$0xff]
      %v401 = vld [vmem:[%s394 + $0x30] sm:$0x1]
      %v402 = vld [vmem:[%s394 + $0x38] sm:$0x1]
      %403 = vmatprep.subr.mxu0 0.0
      %404 = vmatpush1.msra.mxu0 %v171
      %405 = vmatprep.subr.mxu0 0.0
      %406 = vmatpush1.msra.mxu0 %v172
      %407 = vmatprep.subr.mxu0 0.0
      %408 = vmatpush1.msra.mxu0 %v173
      %409 = vmatprep.subr.mxu0 0.0
      %410 = vmatpush1.msra.mxu0 %v174
      %411 = vmatprep.subr.mxu0 0.0
      %412 = vmatpush1.msra.mxu0 %v175
      %413 = vmatprep.subr.mxu0 0.0
      %414 = vmatpush1.msra.mxu0 %v176
      %415 = vmatprep.subr.mxu0 0.0
      %416 = vmatpush1.msra.mxu0 %v177
      %417 = vmatprep.subr.mxu0 0.0
      %418 = vmatpush1.msra.mxu0 %v178
      %419 = vmatprep.subr.mxu0 0.0
      %420 = vmatpush1.msra.mxu0 %v179
      %421 = vmatprep.subr.mxu0 0.0
      %422 = vmatpush1.msra.mxu0 %v180
      %423 = vmatprep.subr.mxu0 0.0
      %424 = vmatpush1.msra.mxu0 %v181
      %425 = vmatprep.subr.mxu0 0.0
      %426 = vmatpush1.msra.mxu0 %v182
      %427 = vmatprep.subr.mxu0 0.0
      %428 = vmatpush1.msra.mxu0 %v183
      %429 = vmatprep.subr.mxu0 0.0
      %430 = vmatpush1.msra.mxu0 %v184
      %431 = vmatprep.subr.mxu0 0.0
      %432 = vmatpush1.msra.mxu0 %v185
      %433 = vmatprep.subr.mxu0 0.0
      %434 = vmatpush1.msra.mxu0 %v186
      %435 = vmatprep.subr.mxu0 0.0
      %436 = vmatpush1.msra.mxu0 %v187
      %437 = vmatprep.subr.mxu0 0.0
      %438 = vmatpush1.msra.mxu0 %v188
      %439 = vmatprep.subr.mxu0 0.0
      %440 = vmatpush1.msra.mxu0 %v189
      %441 = vmatprep.subr.mxu0 0.0
      %442 = vmatpush1.msra.mxu0 %v190
      %443 = vmatprep.subr.mxu0 0.0
      %444 = vmatpush1.msra.mxu0 %v191
      %445 = vmatprep.subr.mxu0 0.0
      %446 = vmatpush1.msra.mxu0 %v192
      %447 = vmatprep.subr.mxu0 0.0
      %448 = vmatpush1.msra.mxu0 %v193
      %449 = vmatprep.subr.mxu0 0.0
      %450 = vmatpush1.msra.mxu0 %v194
      %451 = vmatprep.subr.mxu0 0.0
      %452 = vmatpush1.msra.mxu0 %v195
      %453 = vmatprep.subr.mxu0 0.0
      %454 = vmatpush1.msra.mxu0 %v196
      %455 = vmatprep.subr.mxu0 0.0
      %456 = vmatpush1.msra.mxu0 %v197
      %457 = vmatprep.subr.mxu0 0.0
      %458 = vmatpush1.msra.mxu0 %v198
      %459 = vmatprep.subr.mxu0 0.0
      %460 = vmatpush1.msra.mxu0 %v199
      %461 = vmatprep.subr.mxu0 0.0
      %462 = vmatpush1.msra.mxu0 %v200
      %463 = vmatprep.subr.mxu0 0.0
      %464 = vmatpush1.msra.mxu0 %v201
      %465 = vmatprep.subr.mxu0 0.0
      %466 = vmatpush1.msra.mxu0 %v202
      %467 = vmatprep.mubr.f32.mxu0 %v396
      %468 = vmatmul.mubr.f32.gmra.mrb[0].mxu0 %v395
      %v469 = vpop.f32.mrb[0].mxu0
      %v470 = vadd.f32 0.0, %v469
      %v471 = vpop.f32.mrb[0].mxu0
      %472 = vmatprep.mubr.f32.mxu0 %v398
      %473 = vmatmul.mubr.f32.gmra.mrb[0].mxu0 %v397
      %v474 = vpop.f32.mrb[0].mxu0
      %v475 = vadd.f32 0.0, %v474
      %v476 = vpop.f32.mrb[0].mxu0
      %477 = vmatprep.mubr.f32.mxu0 %v400
      %478 = vmatmul.mubr.f32.gmra.mrb[0].mxu0 %v399
      %v479 = vpop.f32.mrb[0].mxu0
      %v480 = vadd.f32 0.0, %v479
      %v481 = vpop.f32.mrb[0].mxu0
      %482 = vmatprep.mubr.f32.mxu0 %v402
      %483 = vmatmul.mubr.f32.gmra.mrb[0].mxu0 %v401
      %v484 = vpop.f32.mrb[0].mxu0
      %v485 = vadd.f32 0.0, %v484
      %v486 = vpop.f32.mrb[0].mxu0
      %487 = vdwg.mxu0
      %v488 = vmax.f32 %v390, %v470
      %v489 = vmax.f32 %v391, %v475
      %v490 = vmax.f32 %v392, %v480
      %v491 = vmax.f32 %v393, %v485
      %s492 = scalar_lea.vmem %s165, 192
      %v493 = vld [vmem:[%s492] sm:$0xff]
      %v494 = vld [vmem:[%s492 + $0x8] sm:$0xff]
      %v495 = vld [vmem:[%s492 + $0x10] sm:$0xff]
      %v496 = vld [vmem:[%s492 + $0x18] sm:$0xff]
      %v497 = vld [vmem:[%s492 + $0x20] sm:$0xff]
      %v498 = vld [vmem:[%s492 + $0x28] sm:$0xff]
      %v499 = vld [vmem:[%s492 + $0x30] sm:$0x1]
      %v500 = vld [vmem:[%s492 + $0x38] sm:$0x1]
      %501 = vmatprep.subr.mxu0 0.0
      %502 = vmatpush1.msra.mxu0 %v171
      %503 = vmatprep.subr.mxu0 0.0
      %504 = vmatpush1.msra.mxu0 %v172
      %505 = vmatprep.subr.mxu0 0.0
      %506 = vmatpush1.msra.mxu0 %v173
      %507 = vmatprep.subr.mxu0 0.0
      %508 = vmatpush1.msra.mxu0 %v174
      %509 = vmatprep.subr.mxu0 0.0
      %510 = vmatpush1.msra.mxu0 %v175
      %511 = vmatprep.subr.mxu0 0.0
      %512 = vmatpush1.msra.mxu0 %v176
      %513 = vmatprep.subr.mxu0 0.0
      %514 = vmatpush1.msra.mxu0 %v177
      %515 = vmatprep.subr.mxu0 0.0
      %516 = vmatpush1.msra.mxu0 %v178
      %517 = vmatprep.subr.mxu0 0.0
      %518 = vmatpush1.msra.mxu0 %v179
      %519 = vmatprep.subr.mxu0 0.0
      %520 = vmatpush1.msra.mxu0 %v180
      %521 = vmatprep.subr.mxu0 0.0
      %522 = vmatpush1.msra.mxu0 %v181
      %523 = vmatprep.subr.mxu0 0.0
      %524 = vmatpush1.msra.mxu0 %v182
      %525 = vmatprep.subr.mxu0 0.0
      %526 = vmatpush1.msra.mxu0 %v183
      %527 = vmatprep.subr.mxu0 0.0
      %528 = vmatpush1.msra.mxu0 %v184
      %529 = vmatprep.subr.mxu0 0.0
      %530 = vmatpush1.msra.mxu0 %v185
      %531 = vmatprep.subr.mxu0 0.0
      %532 = vmatpush1.msra.mxu0 %v186
      %533 = vmatprep.subr.mxu0 0.0
      %534 = vmatpush1.msra.mxu0 %v187
      %535 = vmatprep.subr.mxu0 0.0
      %536 = vmatpush1.msra.mxu0 %v188
      %537 = vmatprep.subr.mxu0 0.0
      %538 = vmatpush1.msra.mxu0 %v189
      %539 = vmatprep.subr.mxu0 0.0
      %540 = vmatpush1.msra.mxu0 %v190
      %541 = vmatprep.subr.mxu0 0.0
      %542 = vmatpush1.msra.mxu0 %v191
      %543 = vmatprep.subr.mxu0 0.0
      %544 = vmatpush1.msra.mxu0 %v192
      %545 = vmatprep.subr.mxu0 0.0
      %546 = vmatpush1.msra.mxu0 %v193
      %547 = vmatprep.subr.mxu0 0.0
      %548 = vmatpush1.msra.mxu0 %v194
      %549 = vmatprep.subr.mxu0 0.0
      %550 = vmatpush1.msra.mxu0 %v195
      %551 = vmatprep.subr.mxu0 0.0
      %552 = vmatpush1.msra.mxu0 %v196
      %553 = vmatprep.subr.mxu0 0.0
      %554 = vmatpush1.msra.mxu0 %v197
      %555 = vmatprep.subr.mxu0 0.0
      %556 = vmatpush1.msra.mxu0 %v198
      %557 = vmatprep.subr.mxu0 0.0
      %558 = vmatpush1.msra.mxu0 %v199
      %559 = vmatprep.subr.mxu0 0.0
      %560 = vmatpush1.msra.mxu0 %v200
      %561 = vmatprep.subr.mxu0 0.0
      %562 = vmatpush1.msra.mxu0 %v201
      %563 = vmatprep.subr.mxu0 0.0
      %564 = vmatpush1.msra.mxu0 %v202
      %565 = vmatprep.mubr.f32.mxu0 %v494
      %566 = vmatmul.mubr.f32.gmra.mrb[0].mxu0 %v493
      %v567 = vpop.f32.mrb[0].mxu0
      %v568 = vadd.f32 0.0, %v567
      %v569 = vpop.f32.mrb[0].mxu0
      %570 = vmatprep.mubr.f32.mxu0 %v496
      %571 = vmatmul.mubr.f32.gmra.mrb[0].mxu0 %v495
      %v572 = vpop.f32.mrb[0].mxu0
      %v573 = vadd.f32 0.0, %v572
      %v574 = vpop.f32.mrb[0].mxu0
      %575 = vmatprep.mubr.f32.mxu0 %v498
      %576 = vmatmul.mubr.f32.gmra.mrb[0].mxu0 %v497
      %v577 = vpop.f32.mrb[0].mxu0
      %v578 = vadd.f32 0.0, %v577
      %v579 = vpop.f32.mrb[0].mxu0
      %580 = vmatprep.mubr.f32.mxu0 %v500
      %581 = vmatmul.mubr.f32.gmra.mrb[0].mxu0 %v499
      %v582 = vpop.f32.mrb[0].mxu0
      %v583 = vadd.f32 0.0, %v582
      %v584 = vpop.f32.mrb[0].mxu0
      %585 = vdwg.mxu0
      %v586 = vmax.f32 %v488, %v568
      %v587 = vmax.f32 %v489, %v573
      %v588 = vmax.f32 %v490, %v578
      %v589 = vmax.f32 %v491, %v583
      %v590 = vld [vmem:[%s2] sm:$0x1]
      %v592 = vlaneseq
      %v593 = vshrl.u32 %v592, 7
      %v594 = vsub.s32 0, %v593
      %v595 = vrot.slane %v590, %v594
      %v597 = vadd.f32 %v586, %v595
      %v598 = vadd.f32 %v587, %v595
      %v599 = vadd.f32 %v588, %v595
      %v600 = vadd.f32 %v589, %v595
      %v601 = vmax.f32 %v597, 0.0
      %v602 = vmax.f32 %v598, 0.0
      %v603 = vmax.f32 %v599, 0.0
      %v604 = vmax.f32 %v600, 0.0
      %605 = vst [vmem:[%s170] sm:$0xff] %v601
      %606 = vst [vmem:[%s170 + $0x8] sm:$0xff] %v602
      %607 = vst [vmem:[%s170 + $0x10] sm:$0xff] %v603
      %608 = vst [vmem:[%s170 + $0x18] sm:$0x1] %v604
      %p609 = scmp.lt.s32.totalorder %s14, 1
      %s610 = scalar_select %p609, %s14, 1
      %s611 = smul.addr %s610, 4
      %s612 = smul.addr %s611, 8
      %s613 = scalar_lea.vmem %s3, %s612
      // Predicated region
      $region33: #{net_forward.4} parent=31 // pred_check
        %p614 = pneg %p100
      $region34: #{net_forward.4} parent=31 // pred_check_branch
        %616 = sbr.rel (%p614) target = $region36
      $region35: #{net_forward.4} parent=31 // pred_region
        _
      $region36: #{net_forward.4} parent=31 // pred_fallthru
        _
    $region32: #{net_forward.4} parent=5 // pred_fallthru
      _
    %p617 = scmp.le.s32.totalorder 2, %s9
    // Predicated region
    $region37: #{net_forward.4} parent=5 // pred_check
      %p618 = pneg %p617
    $region38: #{net_forward.4} parent=5 // pred_check_branch
      %620 = sbr.rel (%p618) target = $region40
    $region39: #{net_forward.4} parent=5 // pred_region
      %s621 = ssub.s32 %s9, 2
      // Predicated region
      $region41: #{net_forward.4} parent=39 // pred_check
        %p622 = pneg %p106
      $region42: #{net_forward.4} parent=39 // pred_check_branch
        %624 = sbr.rel (%p622) target = $region44
      $region43: #{net_forward.4} parent=39 // pred_region
        %p625 = scmp.lt.s32.totalorder %s15, 1
        %s626 = scalar_select %p625, %s15, 1
        %s627 = smul.addr %s626, 4
        %s628 = smul.addr %s627, 8
        %s629 = scalar_lea.vmem %s3, %s628
      $region44: #{net_forward.4} parent=39 // pred_fallthru
        _
    $region40: #{net_forward.4} parent=5 // pred_fallthru
      _
  $region6: #{net_forward.4} parent=0 // loop_footer
    %s13 = sadd.s32 1, %s9
  $region7: #{net_forward.4} parent=0 // loop_footer_branch
    %8 = sbr.rel target = $region3
  $region8: #{net_forward.4} parent=0 // loop_exit
    _

// kernel: net_forward.5
$region0: #{net_forward.5}
  #allocation0 [shape = 'u32[]', space=smem, size = 0x4, offset = 0x4, fixed_abs, tag = 'smem constant byte address 0x4 - core index']
  #allocation1 [shape = 'u32[144,128]{1,0:T(1,128)}', space=vmem, size = 0x12000, scoped, tag = 'internal scratch']
  %s0 = inlined_call_operand.vmem [shape: f32[8,3200], index: 0, kind: input, shape index: {}]
  %s1 = inlined_call_operand.vmem [shape: f32[3200,128], index: 1, kind: input, shape index: {}]
  %s2 = inlined_call_operand.vmem [shape: f32[1,128], index: 2, kind: input, shape index: {}]
  %s3 = inlined_call_operand.vmem [shape: f32[128,128], index: 3, kind: input, shape index: {}]
  %s4 = inlined_call_operand.vmem [shape: f32[1,128], index: 4, kind: input, shape index: {}]
  %s5 = inlined_call_operand.vmem [shape: f32[128,128], index: 5, kind: input, shape index: {}]
  %s6 = inlined_call_operand.vmem [shape: f32[1,128], index: 6, kind: input, shape index: {}]
  %s7 = inlined_call_operand.vmem [shape: f32[8,128], index: 7, kind: output, shape index: {}]
  %s8 = sld [smem:[#allocation0]]
  $region38: #{net_forward.5} parent=0
    _
  %s10 = ssub.s32 1, %s8
  %s11 = scalar_select 0, %s10, %s8
  // Predicated region
  $region2: #{net_forward.5} parent=0 // pred_check
    _
  $region3: #{net_forward.5} parent=0 // pred_check_branch
    %13 = sbr.rel (0) target = $region5
  $region4: #{net_forward.5} parent=0 // pred_region
    _
  $region5: #{net_forward.5} parent=0 // pred_fallthru
    _
  // Predicated region
  $region6: #{net_forward.5} parent=0 // pred_check
    _
  $region7: #{net_forward.5} parent=0 // pred_check_branch
    %15 = sbr.rel (0) target = $region9
  $region8: #{net_forward.5} parent=0 // pred_region
    _
  $region9: #{net_forward.5} parent=0 // pred_fallthru
    _
  // Predicated region
  $region10: #{net_forward.5} parent=0 // pred_check
    _
  $region11: #{net_forward.5} parent=0 // pred_check_branch
    %17 = sbr.rel (0) target = $region13
  $region12: #{net_forward.5} parent=0 // pred_region
    _
  $region13: #{net_forward.5} parent=0 // pred_fallthru
    _
  // Predicated region
  $region14: #{net_forward.5} parent=0 // pred_check
    _
  $region15: #{net_forward.5} parent=0 // pred_check_branch
    %19 = sbr.rel (0) target = $region17
  $region16: #{net_forward.5} parent=0 // pred_region
    _
  $region17: #{net_forward.5} parent=0 // pred_fallthru
    _
  // Predicated region
  $region18: #{net_forward.5} parent=0 // pred_check
    _
  $region19: #{net_forward.5} parent=0 // pred_check_branch
    %21 = sbr.rel (0) target = $region21
  $region20: #{net_forward.5} parent=0 // pred_region
    _
  $region21: #{net_forward.5} parent=0 // pred_fallthru
    _
  // Predicated region
  $region22: #{net_forward.5} parent=0 // pred_check
    _
  $region23: #{net_forward.5} parent=0 // pred_check_branch
    %23 = sbr.rel (0) target = $region25
  $region24: #{net_forward.5} parent=0 // pred_region
    _
  $region25: #{net_forward.5} parent=0 // pred_fallthru
    _
  // Predicated region
  $region26: #{net_forward.5} parent=0 // pred_check
    _
  $region27: #{net_forward.5} parent=0 // pred_check_branch
    %25 = sbr.rel (0) target = $region29
  $region28: #{net_forward.5} parent=0 // pred_region
    _
  $region29: #{net_forward.5} parent=0 // pred_fallthru
    _
  %v26 = vld [vmem:[%s0] sm:$0xff]
  %v27 = vld [vmem:[%s0 + $0x8] sm:$0xff]
  %v28 = vld [vmem:[%s0 + $0x10] sm:$0xff]
  %v29 = vld [vmem:[%s0 + $0x18] sm:$0xff]
  %v30 = vld [vmem:[%s0 + $0x20] sm:$0xff]
  %v31 = vld [vmem:[%s0 + $0x28] sm:$0xff]
  %v32 = vld [vmem:[%s0 + $0x30] sm:$0xff]
  %v33 = vld [vmem:[%s0 + $0x38] sm:$0xff]
  %v34 = vld [vmem:[%s0 + $0x40] sm:$0xff]
  %v35 = vld [vmem:[%s0 + $0x48] sm:$0xff]
  %v36 = vld [vmem:[%s0 + $0x50] sm:$0xff]
  %v37 = vld [vmem:[%s0 + $0x58] sm:$0xff]
  %v38 = vld [vmem:[%s0 + $0x60] sm:$0xff]
  %v39 = vld [vmem:[%s0 + $0x68] sm:$0xff]
  %v40 = vld [vmem:[%s0 + $0x70] sm:$0xff]
  %v41 = vld [vmem:[%s0 + $0x78] sm:$0xff]
  %v42 = vld [vmem:[%s0 + $0x80] sm:$0xff]
  %v43 = vld [vmem:[%s0 + $0x88] sm:$0xff]
  %v44 = vld [vmem:[%s0 + $0x90] sm:$0xff]
  %v45 = vld [vmem:[%s0 + $0x98] sm:$0xff]
  %v46 = vld [vmem:[%s0 + $0xa0] sm:$0xff]
  %v47 = vld [vmem:[%s0 + $0xa8] sm:$0xff]
  %v48 = vld [vmem:[%s0 + $0xb0] sm:$0xff]
  %v49 = vld [vmem:[%s0 + $0xb8] sm:$0xff]
  %v50 = vld [vmem:[%s0 + $0xc0] sm:$0xff]
  %v51 = vld [vmem:[%s1] sm:$0xff]
  %v52 = vld [vmem:[%s1 + $0x8] sm:$0xff]
  %v53 = vld [vmem:[%s1 + $0x10] sm:$0xff]
  %v54 = vld [vmem:[%s1 + $0x18] sm:$0xff]
  %v55 = vld [vmem:[%s1 + $0x20] sm:$0xff]
  %v56 = vld [vmem:[%s1 + $0x28] sm:$0xff]
  %v57 = vld [vmem:[%s1 + $0x30] sm:$0xff]
  %v58 = vld [vmem:[%s1 + $0x38] sm:$0xff]
  %v59 = vld [vmem:[%s1 + $0x40] sm:$0xff]
  %v60 = vld [vmem:[%s1 + $0x48] sm:$0xff]
  %v61 = vld [vmem:[%s1 + $0x50] sm:$0xff]
  %v62 = vld [vmem:[%s1 + $0x58] sm:$0xff]
  %v63 = vld [vmem:[%s1 + $0x60] sm:$0xff]
  %v64 = vld [vmem:[%s1 + $0x68] sm:$0xff]
  %v65 = vld [vmem:[%s1 + $0x70] sm:$0xff]
  %v66 = vld [vmem:[%s1 + $0x78] sm:$0xff]
  %v67 = vld [vmem:[%s1 + $0x80] sm:$0xff]
  %v68 = vld [vmem:[%s1 + $0x88] sm:$0xff]
  %v69 = vld [vmem:[%s1 + $0x90] sm:$0xff]
  %v70 = vld [vmem:[%s1 + $0x98] sm:$0xff]
  %v71 = vld [vmem:[%s1 + $0xa0] sm:$0xff]
  %v72 = vld [vmem:[%s1 + $0xa8] sm:$0xff]
  %v73 = vld [vmem:[%s1 + $0xb0] sm:$0xff]
  %v74 = vld [vmem:[%s1 + $0xb8] sm:$0xff]
  %v75 = vld [vmem:[%s1 + $0xc0] sm:$0xff]
  %v76 = vld [vmem:[%s1 + $0xc8] sm:$0xff]
  %v77 = vld [vmem:[%s1 + $0xd0] sm:$0xff]
  %v78 = vld [vmem:[%s1 + $0xd8] sm:$0xff]
  %v79 = vld [vmem:[%s1 + $0xe0] sm:$0xff]
  %v80 = vld [vmem:[%s1 + $0xe8] sm:$0xff]
  %v81 = vld [vmem:[%s1 + $0xf0] sm:$0xff]
  %v82 = vld [vmem:[%s1 + $0xf8] sm:$0xff]
  %v83 = vld [vmem:[%s1 + $0x100] sm:$0xff]
  %v84 = vld [vmem:[%s1 + $0x108] sm:$0xff]
  %v85 = vld [vmem:[%s1 + $0x110] sm:$0xff]
  %v86 = vld [vmem:[%s1 + $0x118] sm:$0xff]
  %v87 = vld [vmem:[%s1 + $0x120] sm:$0xff]
  %v88 = vld [vmem:[%s1 + $0x128] sm:$0xff]
  %v89 = vld [vmem:[%s1 + $0x130] sm:$0xff]
  %v90 = vld [vmem:[%s1 + $0x138] sm:$0xff]
  %v91 = vld [vmem:[%s1 + $0x140] sm:$0xff]
  %v92 = vld [vmem:[%s1 + $0x148] sm:$0xff]
  %v93 = vld [vmem:[%s1 + $0x150] sm:$0xff]
  %v94 = vld [vmem:[%s1 + $0x158] sm:$0xff]
  %v95 = vld [vmem:[%s1 + $0x160] sm:$0xff]
  %v96 = vld [vmem:[%s1 + $0x168] sm:$0xff]
  %v97 = vld [vmem:[%s1 + $0x170] sm:$0xff]
  %v98 = vld [vmem:[%s1 + $0x178] sm:$0xff]
  %v99 = vld [vmem:[%s1 + $0x180] sm:$0xff]
  %v100 = vld [vmem:[%s1 + $0x188] sm:$0xff]
  %v101 = vld [vmem:[%s1 + $0x190] sm:$0xff]
  %v102 = vld [vmem:[%s1 + $0x198] sm:$0xff]
  %v103 = vld [vmem:[%s1 + $0x1a0] sm:$0xff]
  %v104 = vld [vmem:[%s1 + $0x1a8] sm:$0xff]
  %v105 = vld [vmem:[%s1 + $0x1b0] sm:$0xff]
  %v106 = vld [vmem:[%s1 + $0x1b8] sm:$0xff]
  %v107 = vld [vmem:[%s1 + $0x1c0] sm:$0xff]
  %v108 = vld [vmem:[%s1 + $0x1c8] sm:$0xff]
  %v109 = vld [vmem:[%s1 + $0x1d0] sm:$0xff]
  %v110 = vld [vmem:[%s1 + $0x1d8] sm:$0xff]
  %v111 = vld [vmem:[%s1 + $0x1e0] sm:$0xff]
  %v112 = vld [vmem:[%s1 + $0x1e8] sm:$0xff]
  %v113 = vld [vmem:[%s1 + $0x1f0] sm:$0xff]
  %v114 = vld [vmem:[%s1 + $0x1f8] sm:$0xff]
  %v115 = vld [vmem:[%s1 + $0x200] sm:$0xff]
  %v116 = vld [vmem:[%s1 + $0x208] sm:$0xff]
  %v117 = vld [vmem:[%s1 + $0x210] sm:$0xff]
  %v118 = vld [vmem:[%s1 + $0x218] sm:$0xff]
  %v119 = vld [vmem:[%s1 + $0x220] sm:$0xff]
  %v120 = vld [vmem:[%s1 + $0x228] sm:$0xff]
  %v121 = vld [vmem:[%s1 + $0x230] sm:$0xff]
  %v122 = vld [vmem:[%s1 + $0x238] sm:$0xff]
  %v123 = vld [vmem:[%s1 + $0x240] sm:$0xff]
  %v124 = vld [vmem:[%s1 + $0x248] sm:$0xff]
  %v125 = vld [vmem:[%s1 + $0x250] sm:$0xff]
  %v126 = vld [vmem:[%s1 + $0x258] sm:$0xff]
  %v127 = vld [vmem:[%s1 + $0x260] sm:$0xff]
  %v128 = vld [vmem:[%s1 + $0x268] sm:$0xff]
  %v129 = vld [vmem:[%s1 + $0x270] sm:$0xff]
  %v130 = vld [vmem:[%s1 + $0x278] sm:$0xff]
  %v131 = vld [vmem:[%s1 + $0x280] sm:$0xff]
  %v132 = vld [vmem:[%s1 + $0x288] sm:$0xff]
  %v133 = vld [vmem:[%s1 + $0x290] sm:$0xff]
  %v134 = vld [vmem:[%s1 + $0x298] sm:$0xff]
  %v135 = vld [vmem:[%s1 + $0x2a0] sm:$0xff]
  %v136 = vld [vmem:[%s1 + $0x2a8] sm:$0xff]
  %v137 = vld [vmem:[%s1 + $0x2b0] sm:$0xff]
  %v138 = vld [vmem:[%s1 + $0x2b8] sm:$0xff]
  %v139 = vld [vmem:[%s1 + $0x2c0] sm:$0xff]
  %v140 = vld [vmem:[%s1 + $0x2c8] sm:$0xff]
  %v141 = vld [vmem:[%s1 + $0x2d0] sm:$0xff]
  %v142 = vld [vmem:[%s1 + $0x2d8] sm:$0xff]
  %v143 = vld [vmem:[%s1 + $0x2e0] sm:$0xff]
  %v144 = vld [vmem:[%s1 + $0x2e8] sm:$0xff]
  %v145 = vld [vmem:[%s1 + $0x2f0] sm:$0xff]
  %v146 = vld [vmem:[%s1 + $0x2f8] sm:$0xff]
  %v147 = vld [vmem:[%s1 + $0x300] sm:$0xff]
  %v148 = vld [vmem:[%s1 + $0x308] sm:$0xff]
  %v149 = vld [vmem:[%s1 + $0x310] sm:$0xff]
  %v150 = vld [vmem:[%s1 + $0x318] sm:$0xff]
  %v151 = vld [vmem:[%s1 + $0x320] sm:$0xff]
  %v152 = vld [vmem:[%s1 + $0x328] sm:$0xff]
  %v153 = vld [vmem:[%s1 + $0x330] sm:$0xff]
  %v154 = vld [vmem:[%s1 + $0x338] sm:$0xff]
  %v155 = vld [vmem:[%s1 + $0x340] sm:$0xff]
  %v156 = vld [vmem:[%s1 + $0x348] sm:$0xff]
  %v157 = vld [vmem:[%s1 + $0x350] sm:$0xff]
  %v158 = vld [vmem:[%s1 + $0x358] sm:$0xff]
  %v159 = vld [vmem:[%s1 + $0x360] sm:$0xff]
  %v160 = vld [vmem:[%s1 + $0x368] sm:$0xff]
  %v161 = vld [vmem:[%s1 + $0x370] sm:$0xff]
  %v162 = vld [vmem:[%s1 + $0x378] sm:$0xff]
  %v163 = vld [vmem:[%s1 + $0x380] sm:$0xff]
  %v164 = vld [vmem:[%s1 + $0x388] sm:$0xff]
  %v165 = vld [vmem:[%s1 + $0x390] sm:$0xff]
  %v166 = vld [vmem:[%s1 + $0x398] sm:$0xff]
  %v167 = vld [vmem:[%s1 + $0x3a0] sm:$0xff]
  %v168 = vld [vmem:[%s1 + $0x3a8] sm:$0xff]
  %v169 = vld [vmem:[%s1 + $0x3b0] sm:$0xff]
  %v170 = vld [vmem:[%s1 + $0x3b8] sm:$0xff]
  %v171 = vld [vmem:[%s1 + $0x3c0] sm:$0xff]
  %v172 = vld [vmem:[%s1 + $0x3c8] sm:$0xff]
  %v173 = vld [vmem:[%s1 + $0x3d0] sm:$0xff]
  %v174 = vld [vmem:[%s1 + $0x3d8] sm:$0xff]
  %v175 = vld [vmem:[%s1 + $0x3e0] sm:$0xff]
  %v176 = vld [vmem:[%s1 + $0x3e8] sm:$0xff]
  %v177 = vld [vmem:[%s1 + $0x3f0] sm:$0xff]
  %v178 = vld [vmem:[%s1 + $0x3f8] sm:$0xff]
  %v179 = vld [vmem:[%s1 + $0x400] sm:$0xff]
  %v180 = vld [vmem:[%s1 + $0x408] sm:$0xff]
  %v181 = vld [vmem:[%s1 + $0x410] sm:$0xff]
  %v182 = vld [vmem:[%s1 + $0x418] sm:$0xff]
  %v183 = vld [vmem:[%s1 + $0x420] sm:$0xff]
  %v184 = vld [vmem:[%s1 + $0x428] sm:$0xff]
  %v185 = vld [vmem:[%s1 + $0x430] sm:$0xff]
  %v186 = vld [vmem:[%s1 + $0x438] sm:$0xff]
  %v187 = vld [vmem:[%s1 + $0x440] sm:$0xff]
  %v188 = vld [vmem:[%s1 + $0x448] sm:$0xff]
  %v189 = vld [vmem:[%s1 + $0x450] sm:$0xff]
  %v190 = vld [vmem:[%s1 + $0x458] sm:$0xff]
  %v191 = vld [vmem:[%s1 + $0x460] sm:$0xff]
  %v192 = vld [vmem:[%s1 + $0x468] sm:$0xff]
  %v193 = vld [vmem:[%s1 + $0x470] sm:$0xff]
  %v194 = vld [vmem:[%s1 + $0x478] sm:$0xff]
  %v195 = vld [vmem:[%s1 + $0x480] sm:$0xff]
  %v196 = vld [vmem:[%s1 + $0x488] sm:$0xff]
  %v197 = vld [vmem:[%s1 + $0x490] sm:$0xff]
  %v198 = vld [vmem:[%s1 + $0x498] sm:$0xff]
  %v199 = vld [vmem:[%s1 + $0x4a0] sm:$0xff]
  %v200 = vld [vmem:[%s1 + $0x4a8] sm:$0xff]
  %v201 = vld [vmem:[%s1 + $0x4b0] sm:$0xff]
  %v202 = vld [vmem:[%s1 + $0x4b8] sm:$0xff]
  %v203 = vld [vmem:[%s1 + $0x4c0] sm:$0xff]
  %v204 = vld [vmem:[%s1 + $0x4c8] sm:$0xff]
  %v205 = vld [vmem:[%s1 + $0x4d0] sm:$0xff]
  %v206 = vld [vmem:[%s1 + $0x4d8] sm:$0xff]
  %v207 = vld [vmem:[%s1 + $0x4e0] sm:$0xff]
  %v208 = vld [vmem:[%s1 + $0x4e8] sm:$0xff]
  %v209 = vld [vmem:[%s1 + $0x4f0] sm:$0xff]
  %v210 = vld [vmem:[%s1 + $0x4f8] sm:$0xff]
  %v211 = vld [vmem:[%s1 + $0x500] sm:$0xff]
  %v212 = vld [vmem:[%s1 + $0x508] sm:$0xff]
  %v213 = vld [vmem:[%s1 + $0x510] sm:$0xff]
  %v214 = vld [vmem:[%s1 + $0x518] sm:$0xff]
  %v215 = vld [vmem:[%s1 + $0x520] sm:$0xff]
  %v216 = vld [vmem:[%s1 + $0x528] sm:$0xff]
  %v217 = vld [vmem:[%s1 + $0x530] sm:$0xff]
  %v218 = vld [vmem:[%s1 + $0x538] sm:$0xff]
  %v219 = vld [vmem:[%s1 + $0x540] sm:$0xff]
  %v220 = vld [vmem:[%s1 + $0x548] sm:$0xff]
  %v221 = vld [vmem:[%s1 + $0x550] sm:$0xff]
  %v222 = vld [vmem:[%s1 + $0x558] sm:$0xff]
  %v223 = vld [vmem:[%s1 + $0x560] sm:$0xff]
  %v224 = vld [vmem:[%s1 + $0x568] sm:$0xff]
  %v225 = vld [vmem:[%s1 + $0x570] sm:$0xff]
  %v226 = vld [vmem:[%s1 + $0x578] sm:$0xff]
  %v227 = vld [vmem:[%s1 + $0x580] sm:$0xff]
  %v228 = vld [vmem:[%s1 + $0x588] sm:$0xff]
  %v229 = vld [vmem:[%s1 + $0x590] sm:$0xff]
  %v230 = vld [vmem:[%s1 + $0x598] sm:$0xff]
  %v231 = vld [vmem:[%s1 + $0x5a0] sm:$0xff]
  %v232 = vld [vmem:[%s1 + $0x5a8] sm:$0xff]
  %v233 = vld [vmem:[%s1 + $0x5b0] sm:$0xff]
  %v234 = vld [vmem:[%s1 + $0x5b8] sm:$0xff]
  %v235 = vld [vmem:[%s1 + $0x5c0] sm:$0xff]
  %v236 = vld [vmem:[%s1 + $0x5c8] sm:$0xff]
  %v237 = vld [vmem:[%s1 + $0x5d0] sm:$0xff]
  %v238 = vld [vmem:[%s1 + $0x5d8] sm:$0xff]
  %v239 = vld [vmem:[%s1 + $0x5e0] sm:$0xff]
  %v240 = vld [vmem:[%s1 + $0x5e8] sm:$0xff]
  %v241 = vld [vmem:[%s1 + $0x5f0] sm:$0xff]
  %v242 = vld [vmem:[%s1 + $0x5f8] sm:$0xff]
  %v243 = vld [vmem:[%s1 + $0x600] sm:$0xff]
  %v244 = vld [vmem:[%s1 + $0x608] sm:$0xff]
  %v245 = vld [vmem:[%s1 + $0x610] sm:$0xff]
  %v246 = vld [vmem:[%s1 + $0x618] sm:$0xff]
  %v247 = vld [vmem:[%s1 + $0x620] sm:$0xff]
  %v248 = vld [vmem:[%s1 + $0x628] sm:$0xff]
  %v249 = vld [vmem:[%s1 + $0x630] sm:$0xff]
  %v250 = vld [vmem:[%s1 + $0x638] sm:$0xff]
  %v251 = vld [vmem:[%s1 + $0x640] sm:$0xff]
  %v252 = vld [vmem:[%s1 + $0x648] sm:$0xff]
  %v253 = vld [vmem:[%s1 + $0x650] sm:$0xff]
  %v254 = vld [vmem:[%s1 + $0x658] sm:$0xff]
  %v255 = vld [vmem:[%s1 + $0x660] sm:$0xff]
  %v256 = vld [vmem:[%s1 + $0x668] sm:$0xff]
  %v257 = vld [vmem:[%s1 + $0x670] sm:$0xff]
  %v258 = vld [vmem:[%s1 + $0x678] sm:$0xff]
  %v259 = vld [vmem:[%s1 + $0x680] sm:$0xff]
  %v260 = vld [vmem:[%s1 + $0x688] sm:$0xff]
  %v261 = vld [vmem:[%s1 + $0x690] sm:$0xff]
  %v262 = vld [vmem:[%s1 + $0x698] sm:$0xff]
  %v263 = vld [vmem:[%s1 + $0x6a0] sm:$0xff]
  %v264 = vld [vmem:[%s1 + $0x6a8] sm:$0xff]
  %v265 = vld [vmem:[%s1 + $0x6b0] sm:$0xff]
  %v266 = vld [vmem:[%s1 + $0x6b8] sm:$0xff]
  %v267 = vld [vmem:[%s1 + $0x6c0] sm:$0xff]
  %v268 = vld [vmem:[%s1 + $0x6c8] sm:$0xff]
  %v269 = vld [vmem:[%s1 + $0x6d0] sm:$0xff]
  %v270 = vld [vmem:[%s1 + $0x6d8] sm:$0xff]
  %v271 = vld [vmem:[%s1 + $0x6e0] sm:$0xff]
  %v272 = vld [vmem:[%s1 + $0x6e8] sm:$0xff]
  %v273 = vld [vmem:[%s1 + $0x6f0] sm:$0xff]
  %v274 = vld [vmem:[%s1 + $0x6f8] sm:$0xff]
  %v275 = vld [vmem:[%s1 + $0x700] sm:$0xff]
  %v276 = vld [vmem:[%s1 + $0x708] sm:$0xff]
  %v277 = vld [vmem:[%s1 + $0x710] sm:$0xff]
  %v278 = vld [vmem:[%s1 + $0x718] sm:$0xff]
  %v279 = vld [vmem:[%s1 + $0x720] sm:$0xff]
  %v280 = vld [vmem:[%s1 + $0x728] sm:$0xff]
  %v281 = vld [vmem:[%s1 + $0x730] sm:$0xff]
  %v282 = vld [vmem:[%s1 + $0x738] sm:$0xff]
  %v283 = vld [vmem:[%s1 + $0x740] sm:$0xff]
  %v284 = vld [vmem:[%s1 + $0x748] sm:$0xff]
  %v285 = vld [vmem:[%s1 + $0x750] sm:$0xff]
  %v286 = vld [vmem:[%s1 + $0x758] sm:$0xff]
  %v287 = vld [vmem:[%s1 + $0x760] sm:$0xff]
  %v288 = vld [vmem:[%s1 + $0x768] sm:$0xff]
  %v289 = vld [vmem:[%s1 + $0x770] sm:$0xff]
  %v290 = vld [vmem:[%s1 + $0x778] sm:$0xff]
  %v291 = vld [vmem:[%s1 + $0x780] sm:$0xff]
  %v292 = vld [vmem:[%s1 + $0x788] sm:$0xff]
  %v293 = vld [vmem:[%s1 + $0x790] sm:$0xff]
  %v294 = vld [vmem:[%s1 + $0x798] sm:$0xff]
  %v295 = vld [vmem:[%s1 + $0x7a0] sm:$0xff]
  %v296 = vld [vmem:[%s1 + $0x7a8] sm:$0xff]
  %v297 = vld [vmem:[%s1 + $0x7b0] sm:$0xff]
  %v298 = vld [vmem:[%s1 + $0x7b8] sm:$0xff]
  %v299 = vld [vmem:[%s1 + $0x7c0] sm:$0xff]
  %v300 = vld [vmem:[%s1 + $0x7c8] sm:$0xff]
  %v301 = vld [vmem:[%s1 + $0x7d0] sm:$0xff]
  %v302 = vld [vmem:[%s1 + $0x7d8] sm:$0xff]
  %v303 = vld [vmem:[%s1 + $0x7e0] sm:$0xff]
  %v304 = vld [vmem:[%s1 + $0x7e8] sm:$0xff]
  %v305 = vld [vmem:[%s1 + $0x7f0] sm:$0xff]
  %v306 = vld [vmem:[%s1 + $0x7f8] sm:$0xff]
  %v307 = vld [vmem:[%s1 + $0x800] sm:$0xff]
  %v308 = vld [vmem:[%s1 + $0x808] sm:$0xff]
  %v309 = vld [vmem:[%s1 + $0x810] sm:$0xff]
  %v310 = vld [vmem:[%s1 + $0x818] sm:$0xff]
  %v311 = vld [vmem:[%s1 + $0x820] sm:$0xff]
  %v312 = vld [vmem:[%s1 + $0x828] sm:$0xff]
  %v313 = vld [vmem:[%s1 + $0x830] sm:$0xff]
  %v314 = vld [vmem:[%s1 + $0x838] sm:$0xff]
  %v315 = vld [vmem:[%s1 + $0x840] sm:$0xff]
  %v316 = vld [vmem:[%s1 + $0x848] sm:$0xff]
  %v317 = vld [vmem:[%s1 + $0x850] sm:$0xff]
  %v318 = vld [vmem:[%s1 + $0x858] sm:$0xff]
  %v319 = vld [vmem:[%s1 + $0x860] sm:$0xff]
  %v320 = vld [vmem:[%s1 + $0x868] sm:$0xff]
  %v321 = vld [vmem:[%s1 + $0x870] sm:$0xff]
  %v322 = vld [vmem:[%s1 + $0x878] sm:$0xff]
  %v323 = vld [vmem:[%s1 + $0x880] sm:$0xff]
  %v324 = vld [vmem:[%s1 + $0x888] sm:$0xff]
  %v325 = vld [vmem:[%s1 + $0x890] sm:$0xff]
  %v326 = vld [vmem:[%s1 + $0x898] sm:$0xff]
  %v327 = vld [vmem:[%s1 + $0x8a0] sm:$0xff]
  %v328 = vld [vmem:[%s1 + $0x8a8] sm:$0xff]
  %v329 = vld [vmem:[%s1 + $0x8b0] sm:$0xff]
  %v330 = vld [vmem:[%s1 + $0x8b8] sm:$0xff]
  %v331 = vld [vmem:[%s1 + $0x8c0] sm:$0xff]
  %v332 = vld [vmem:[%s1 + $0x8c8] sm:$0xff]
  %v333 = vld [vmem:[%s1 + $0x8d0] sm:$0xff]
  %v334 = vld [vmem:[%s1 + $0x8d8] sm:$0xff]
  %v335 = vld [vmem:[%s1 + $0x8e0] sm:$0xff]
  %v336 = vld [vmem:[%s1 + $0x8e8] sm:$0xff]
  %v337 = vld [vmem:[%s1 + $0x8f0] sm:$0xff]
  %v338 = vld [vmem:[%s1 + $0x8f8] sm:$0xff]
  %v339 = vld [vmem:[%s1 + $0x900] sm:$0xff]
  %v340 = vld [vmem:[%s1 + $0x908] sm:$0xff]
  %v341 = vld [vmem:[%s1 + $0x910] sm:$0xff]
  %v342 = vld [vmem:[%s1 + $0x918] sm:$0xff]
  %v343 = vld [vmem:[%s1 + $0x920] sm:$0xff]
  %v344 = vld [vmem:[%s1 + $0x928] sm:$0xff]
  %v345 = vld [vmem:[%s1 + $0x930] sm:$0xff]
  %v346 = vld [vmem:[%s1 + $0x938] sm:$0xff]
  %v347 = vld [vmem:[%s1 + $0x940] sm:$0xff]
  %v348 = vld [vmem:[%s1 + $0x948] sm:$0xff]
  %v349 = vld [vmem:[%s1 + $0x950] sm:$0xff]
  %v350 = vld [vmem:[%s1 + $0x958] sm:$0xff]
  %v351 = vld [vmem:[%s1 + $0x960] sm:$0xff]
  %v352 = vld [vmem:[%s1 + $0x968] sm:$0xff]
  %v353 = vld [vmem:[%s1 + $0x970] sm:$0xff]
  %v354 = vld [vmem:[%s1 + $0x978] sm:$0xff]
  %v355 = vld [vmem:[%s1 + $0x980] sm:$0xff]
  %v356 = vld [vmem:[%s1 + $0x988] sm:$0xff]
  %v357 = vld [vmem:[%s1 + $0x990] sm:$0xff]
  %v358 = vld [vmem:[%s1 + $0x998] sm:$0xff]
  %v359 = vld [vmem:[%s1 + $0x9a0] sm:$0xff]
  %v360 = vld [vmem:[%s1 + $0x9a8] sm:$0xff]
  %v361 = vld [vmem:[%s1 + $0x9b0] sm:$0xff]
  %v362 = vld [vmem:[%s1 + $0x9b8] sm:$0xff]
  %v363 = vld [vmem:[%s1 + $0x9c0] sm:$0xff]
  %v364 = vld [vmem:[%s1 + $0x9c8] sm:$0xff]
  %v365 = vld [vmem:[%s1 + $0x9d0] sm:$0xff]
  %v366 = vld [vmem:[%s1 + $0x9d8] sm:$0xff]
  %v367 = vld [vmem:[%s1 + $0x9e0] sm:$0xff]
  %v368 = vld [vmem:[%s1 + $0x9e8] sm:$0xff]
  %v369 = vld [vmem:[%s1 + $0x9f0] sm:$0xff]
  %v370 = vld [vmem:[%s1 + $0x9f8] sm:$0xff]
  %v371 = vld [vmem:[%s1 + $0xa00] sm:$0xff]
  %v372 = vld [vmem:[%s1 + $0xa08] sm:$0xff]
  %v373 = vld [vmem:[%s1 + $0xa10] sm:$0xff]
  %v374 = vld [vmem:[%s1 + $0xa18] sm:$0xff]
  %v375 = vld [vmem:[%s1 + $0xa20] sm:$0xff]
  %v376 = vld [vmem:[%s1 + $0xa28] sm:$0xff]
  %v377 = vld [vmem:[%s1 + $0xa30] sm:$0xff]
  %v378 = vld [vmem:[%s1 + $0xa38] sm:$0xff]
  %v379 = vld [vmem:[%s1 + $0xa40] sm:$0xff]
  %v380 = vld [vmem:[%s1 + $0xa48] sm:$0xff]
  %v381 = vld [vmem:[%s1 + $0xa50] sm:$0xff]
  %v382 = vld [vmem:[%s1 + $0xa58] sm:$0xff]
  %v383 = vld [vmem:[%s1 + $0xa60] sm:$0xff]
  %v384 = vld [vmem:[%s1 + $0xa68] sm:$0xff]
  %v385 = vld [vmem:[%s1 + $0xa70] sm:$0xff]
  %v386 = vld [vmem:[%s1 + $0xa78] sm:$0xff]
  %v387 = vld [vmem:[%s1 + $0xa80] sm:$0xff]
  %v388 = vld [vmem:[%s1 + $0xa88] sm:$0xff]
  %v389 = vld [vmem:[%s1 + $0xa90] sm:$0xff]
  %v390 = vld [vmem:[%s1 + $0xa98] sm:$0xff]
  %v391 = vld [vmem:[%s1 + $0xaa0] sm:$0xff]
  %v392 = vld [vmem:[%s1 + $0xaa8] sm:$0xff]
  %v393 = vld [vmem:[%s1 + $0xab0] sm:$0xff]
  %v394 = vld [vmem:[%s1 + $0xab8] sm:$0xff]
  %v395 = vld [vmem:[%s1 + $0xac0] sm:$0xff]
  %v396 = vld [vmem:[%s1 + $0xac8] sm:$0xff]
  %v397 = vld [vmem:[%s1 + $0xad0] sm:$0xff]
  %v398 = vld [vmem:[%s1 + $0xad8] sm:$0xff]
  %v399 = vld [vmem:[%s1 + $0xae0] sm:$0xff]
  %v400 = vld [vmem:[%s1 + $0xae8] sm:$0xff]
  %v401 = vld [vmem:[%s1 + $0xaf0] sm:$0xff]
  %v402 = vld [vmem:[%s1 + $0xaf8] sm:$0xff]
  %v403 = vld [vmem:[%s1 + $0xb00] sm:$0xff]
  %v404 = vld [vmem:[%s1 + $0xb08] sm:$0xff]
  %v405 = vld [vmem:[%s1 + $0xb10] sm:$0xff]
  %v406 = vld [vmem:[%s1 + $0xb18] sm:$0xff]
  %v407 = vld [vmem:[%s1 + $0xb20] sm:$0xff]
  %v408 = vld [vmem:[%s1 + $0xb28] sm:$0xff]
  %v409 = vld [vmem:[%s1 + $0xb30] sm:$0xff]
  %v410 = vld [vmem:[%s1 + $0xb38] sm:$0xff]
  %v411 = vld [vmem:[%s1 + $0xb40] sm:$0xff]
  %v412 = vld [vmem:[%s1 + $0xb48] sm:$0xff]
  %v413 = vld [vmem:[%s1 + $0xb50] sm:$0xff]
  %v414 = vld [vmem:[%s1 + $0xb58] sm:$0xff]
  %v415 = vld [vmem:[%s1 + $0xb60] sm:$0xff]
  %v416 = vld [vmem:[%s1 + $0xb68] sm:$0xff]
  %v417 = vld [vmem:[%s1 + $0xb70] sm:$0xff]
  %v418 = vld [vmem:[%s1 + $0xb78] sm:$0xff]
  %v419 = vld [vmem:[%s1 + $0xb80] sm:$0xff]
  %v420 = vld [vmem:[%s1 + $0xb88] sm:$0xff]
  %v421 = vld [vmem:[%s1 + $0xb90] sm:$0xff]
  %v422 = vld [vmem:[%s1 + $0xb98] sm:$0xff]
  %v423 = vld [vmem:[%s1 + $0xba0] sm:$0xff]
  %v424 = vld [vmem:[%s1 + $0xba8] sm:$0xff]
  %v425 = vld [vmem:[%s1 + $0xbb0] sm:$0xff]
  %v426 = vld [vmem:[%s1 + $0xbb8] sm:$0xff]
  %v427 = vld [vmem:[%s1 + $0xbc0] sm:$0xff]
  %v428 = vld [vmem:[%s1 + $0xbc8] sm:$0xff]
  %v429 = vld [vmem:[%s1 + $0xbd0] sm:$0xff]
  %v430 = vld [vmem:[%s1 + $0xbd8] sm:$0xff]
  %v431 = vld [vmem:[%s1 + $0xbe0] sm:$0xff]
  %v432 = vld [vmem:[%s1 + $0xbe8] sm:$0xff]
  %v433 = vld [vmem:[%s1 + $0xbf0] sm:$0xff]
  %v434 = vld [vmem:[%s1 + $0xbf8] sm:$0xff]
  %v435 = vld [vmem:[%s1 + $0xc00] sm:$0xff]
  %v436 = vld [vmem:[%s1 + $0xc08] sm:$0xff]
  %v437 = vld [vmem:[%s1 + $0xc10] sm:$0xff]
  %v438 = vld [vmem:[%s1 + $0xc18] sm:$0xff]
  %v439 = vld [vmem:[%s1 + $0xc20] sm:$0xff]
  %v440 = vld [vmem:[%s1 + $0xc28] sm:$0xff]
  %v441 = vld [vmem:[%s1 + $0xc30] sm:$0xff]
  %v442 = vld [vmem:[%s1 + $0xc38] sm:$0xff]
  %v443 = vld [vmem:[%s1 + $0xc40] sm:$0xff]
  %v444 = vld [vmem:[%s1 + $0xc48] sm:$0xff]
  %v445 = vld [vmem:[%s1 + $0xc50] sm:$0xff]
  %v446 = vld [vmem:[%s1 + $0xc58] sm:$0xff]
  %v447 = vld [vmem:[%s1 + $0xc60] sm:$0xff]
  %v448 = vld [vmem:[%s1 + $0xc68] sm:$0xff]
  %v449 = vld [vmem:[%s1 + $0xc70] sm:$0xff]
  %v450 = vld [vmem:[%s1 + $0xc78] sm:$0xff]
  %v451 = vld [vmem:[%s2] sm:$0x1]
  %v453 = vlaneseq
  %v454 = vshrl.u32 %v453, 7
  %v455 = vsub.s32 0, %v454
  %v456 = vrot.slane %v451, %v455
  %458 = vmatprep.subr.mxu0 0.0
  %459 = vmatpush1.msra.mxu0 %v51
  %460 = vmatprep.subr.mxu0 0.0
  %461 = vmatpush1.msra.mxu0 %v52
  %462 = vmatprep.subr.mxu0 0.0
  %463 = vmatpush1.msra.mxu0 %v53
  %464 = vmatprep.subr.mxu0 0.0
  %465 = vmatpush1.msra.mxu0 %v54
  %466 = vmatprep.subr.mxu0 0.0
  %467 = vmatpush1.msra.mxu0 %v55
  %468 = vmatprep.subr.mxu0 0.0
  %469 = vmatpush1.msra.mxu0 %v56
  %470 = vmatprep.subr.mxu0 0.0
  %471 = vmatpush1.msra.mxu0 %v57
  %472 = vmatprep.subr.mxu0 0.0
  %473 = vmatpush1.msra.mxu0 %v58
  %474 = vmatprep.subr.mxu0 0.0
  %475 = vmatpush1.msra.mxu0 %v59
  %476 = vmatprep.subr.mxu0 0.0
  %477 = vmatpush1.msra.mxu0 %v60
  %478 = vmatprep.subr.mxu0 0.0
  %479 = vmatpush1.msra.mxu0 %v61
  %480 = vmatprep.subr.mxu0 0.0
  %481 = vmatpush1.msra.mxu0 %v62
  %482 = vmatprep.subr.mxu0 0.0
  %483 = vmatpush1.msra.mxu0 %v63
  %484 = vmatprep.subr.mxu0 0.0
  %485 = vmatpush1.msra.mxu0 %v64
  %486 = vmatprep.subr.mxu0 0.0
  %487 = vmatpush1.msra.mxu0 %v65
  %488 = vmatprep.subr.mxu0 0.0
  %489 = vmatpush1.msra.mxu0 %v66
  %490 = vmatprep.subr.mxu0 0.0
  %491 = vmatpush1.msra.mxu0 %v67
  %492 = vmatprep.subr.mxu0 0.0
  %493 = vmatpush1.msra.mxu0 %v68
  %494 = vmatprep.subr.mxu0 0.0
  %495 = vmatpush1.msra.mxu0 %v69
  %496 = vmatprep.subr.mxu0 0.0
  %497 = vmatpush1.msra.mxu0 %v70
  %498 = vmatprep.subr.mxu0 0.0
  %499 = vmatpush1.msra.mxu0 %v71
  %500 = vmatprep.subr.mxu0 0.0
  %501 = vmatpush1.msra.mxu0 %v72
  %502 = vmatprep.subr.mxu0 0.0
  %503 = vmatpush1.msra.mxu0 %v73
  %504 = vmatprep.subr.mxu0 0.0
  %505 = vmatpush1.msra.mxu0 %v74
  %506 = vmatprep.subr.mxu0 0.0
  %507 = vmatpush1.msra.mxu0 %v75
  %508 = vmatprep.subr.mxu0 0.0
  %509 = vmatpush1.msra.mxu0 %v76
  %510 = vmatprep.subr.mxu0 0.0
  %511 = vmatpush1.msra.mxu0 %v77
  %512 = vmatprep.subr.mxu0 0.0
  %513 = vmatpush1.msra.mxu0 %v78
  %514 = vmatprep.subr.mxu0 0.0
  %515 = vmatpush1.msra.mxu0 %v79
  %516 = vmatprep.subr.mxu0 0.0
  %517 = vmatpush1.msra.mxu0 %v80
  %518 = vmatprep.subr.mxu0 0.0
  %519 = vmatpush1.msra.mxu0 %v81
  %520 = vmatprep.subr.mxu0 0.0
  %521 = vmatpush1.msra.mxu0 %v82
  %522 = vmatprep.mubr.f32.mxu0 %v27
  %523 = vmatmul.mubr.f32.gmra.mrb[0].mxu0 %v26
  %v524 = vpop.f32.mrb[0].mxu0
  %v525 = vadd.f32 %v456, %v524
  %v526 = vpop.f32.mrb[0].mxu0
  %527 = vdwg.mxu0
  %528 = vmatprep.subr.mxu0 0.0
  %529 = vmatpush1.msra.mxu0 %v83
  %530 = vmatprep.subr.mxu0 0.0
  %531 = vmatpush1.msra.mxu0 %v84
  %532 = vmatprep.subr.mxu0 0.0
  %533 = vmatpush1.msra.mxu0 %v85
  %534 = vmatprep.subr.mxu0 0.0
  %535 = vmatpush1.msra.mxu0 %v86
  %536 = vmatprep.subr.mxu0 0.0
  %537 = vmatpush1.msra.mxu0 %v87
  %538 = vmatprep.subr.mxu0 0.0
  %539 = vmatpush1.msra.mxu0 %v88
  %540 = vmatprep.subr.mxu0 0.0
  %541 = vmatpush1.msra.mxu0 %v89
  %542 = vmatprep.subr.mxu0 0.0
  %543 = vmatpush1.msra.mxu0 %v90
  %544 = vmatprep.subr.mxu0 0.0
  %545 = vmatpush1.msra.mxu0 %v91
  %546 = vmatprep.subr.mxu0 0.0
  %547 = vmatpush1.msra.mxu0 %v92
  %548 = vmatprep.subr.mxu0 0.0
  %549 = vmatpush1.msra.mxu0 %v93
  %550 = vmatprep.subr.mxu0 0.0
  %551 = vmatpush1.msra.mxu0 %v94
  %552 = vmatprep.subr.mxu0 0.0
  %553 = vmatpush1.msra.mxu0 %v95
  %554 = vmatprep.subr.mxu0 0.0
  %555 = vmatpush1.msra.mxu0 %v96
  %556 = vmatprep.subr.mxu0 0.0
  %557 = vmatpush1.msra.mxu0 %v97
  %558 = vmatprep.subr.mxu0 0.0
  %559 = vmatpush1.msra.mxu0 %v98
  %560 = vmatprep.subr.mxu0 0.0
  %561 = vmatpush1.msra.mxu0 %v99
  %562 = vmatprep.subr.mxu0 0.0
  %563 = vmatpush1.msra.mxu0 %v100
  %564 = vmatprep.subr.mxu0 0.0
  %565 = vmatpush1.msra.mxu0 %v101
  %566 = vmatprep.subr.mxu0 0.0
  %567 = vmatpush1.msra.mxu0 %v102
  %568 = vmatprep.subr.mxu0 0.0
  %569 = vmatpush1.msra.mxu0 %v103
  %570 = vmatprep.subr.mxu0 0.0
  %571 = vmatpush1.msra.mxu0 %v104
  %572 = vmatprep.subr.mxu0 0.0
  %573 = vmatpush1.msra.mxu0 %v105
  %574 = vmatprep.subr.mxu0 0.0
  %575 = vmatpush1.msra.mxu0 %v106
  %576 = vmatprep.subr.mxu0 0.0
  %577 = vmatpush1.msra.mxu0 %v107
  %578 = vmatprep.subr.mxu0 0.0
  %579 = vmatpush1.msra.mxu0 %v108
  %580 = vmatprep.subr.mxu0 0.0
  %581 = vmatpush1.msra.mxu0 %v109
  %582 = vmatprep.subr.mxu0 0.0
  %583 = vmatpush1.msra.mxu0 %v110
  %584 = vmatprep.subr.mxu0 0.0
  %585 = vmatpush1.msra.mxu0 %v111
  %586 = vmatprep.subr.mxu0 0.0
  %587 = vmatpush1.msra.mxu0 %v112
  %588 = vmatprep.subr.mxu0 0.0
  %589 = vmatpush1.msra.mxu0 %v113
  %590 = vmatprep.subr.mxu0 0.0
  %591 = vmatpush1.msra.mxu0 %v114
  %592 = vmatprep.mubr.f32.mxu0 %v29
  %593 = vmatmul.mubr.f32.gmra.mrb[0].mxu0 %v28
  %v594 = vpop.f32.mrb[0].mxu0
  %v595 = vadd.f32 %v525, %v594
  %v596 = vpop.f32.mrb[0].mxu0
  %597 = vdwg.mxu0
  %598 = vmatprep.subr.mxu0 0.0
  %599 = vmatpush1.msra.mxu0 %v115
  %600 = vmatprep.subr.mxu0 0.0
  %601 = vmatpush1.msra.mxu0 %v116
  %602 = vmatprep.subr.mxu0 0.0
  %603 = vmatpush1.msra.mxu0 %v117
  %604 = vmatprep.subr.mxu0 0.0
  %605 = vmatpush1.msra.mxu0 %v118
  %606 = vmatprep.subr.mxu0 0.0
  %607 = vmatpush1.msra.mxu0 %v119
  %608 = vmatprep.subr.mxu0 0.0
  %609 = vmatpush1.msra.mxu0 %v120
  %610 = vmatprep.subr.mxu0 0.0
  %611 = vmatpush1.msra.mxu0 %v121
  %612 = vmatprep.subr.mxu0 0.0
  %613 = vmatpush1.msra.mxu0 %v122
  %614 = vmatprep.subr.mxu0 0.0
  %615 = vmatpush1.msra.mxu0 %v123
  %616 = vmatprep.subr.mxu0 0.0
  %617 = vmatpush1.msra.mxu0 %v124
  %618 = vmatprep.subr.mxu0 0.0
  %619 = vmatpush1.msra.mxu0 %v125
  %620 = vmatprep.subr.mxu0 0.0
  %621 = vmatpush1.msra.mxu0 %v126
  %622 = vmatprep.subr.mxu0 0.0
  %623 = vmatpush1.msra.mxu0 %v127
  %624 = vmatprep.subr.mxu0 0.0
  %625 = vmatpush1.msra.mxu0 %v128
  %626 = vmatprep.subr.mxu0 0.0
  %627 = vmatpush1.msra.mxu0 %v129
  %628 = vmatprep.subr.mxu0 0.0
  %629 = vmatpush1.msra.mxu0 %v130
  %630 = vmatprep.subr.mxu0 0.0
  %631 = vmatpush1.msra.mxu0 %v131
  %632 = vmatprep.subr.mxu0 0.0
  %633 = vmatpush1.msra.mxu0 %v132
  %634 = vmatprep.subr.mxu0 0.0
  %635 = vmatpush1.msra.mxu0 %v133
  %636 = vmatprep.subr.mxu0 0.0
  %637 = vmatpush1.msra.mxu0 %v134
  %638 = vmatprep.subr.mxu0 0.0
  %639 = vmatpush1.msra.mxu0 %v135
  %640 = vmatprep.subr.mxu0 0.0
  %641 = vmatpush1.msra.mxu0 %v136
  %642 = vmatprep.subr.mxu0 0.0
  %643 = vmatpush1.msra.mxu0 %v137
  %644 = vmatprep.subr.mxu0 0.0
  %645 = vmatpush1.msra.mxu0 %v138
  %646 = vmatprep.subr.mxu0 0.0
  %647 = vmatpush1.msra.mxu0 %v139
  %648 = vmatprep.subr.mxu0 0.0
  %649 = vmatpush1.msra.mxu0 %v140
  %650 = vmatprep.subr.mxu0 0.0
  %651 = vmatpush1.msra.mxu0 %v141
  %652 = vmatprep.subr.mxu0 0.0
  %653 = vmatpush1.msra.mxu0 %v142
  %654 = vmatprep.subr.mxu0 0.0
  %655 = vmatpush1.msra.mxu0 %v143
  %656 = vmatprep.subr.mxu0 0.0
  %657 = vmatpush1.msra.mxu0 %v144
  %658 = vmatprep.subr.mxu0 0.0
  %659 = vmatpush1.msra.mxu0 %v145
  %660 = vmatprep.subr.mxu0 0.0
  %661 = vmatpush1.msra.mxu0 %v146
  %662 = vmatprep.mubr.f32.mxu0 %v31
  %663 = vmatmul.mubr.f32.gmra.mrb[0].mxu0 %v30
  %v664 = vpop.f32.mrb[0].mxu0
  %v665 = vadd.f32 %v595, %v664
  %v666 = vpop.f32.mrb[0].mxu0
  %667 = vdwg.mxu0
  %668 = vmatprep.subr.mxu0 0.0
  %669 = vmatpush1.msra.mxu0 %v147
  %670 = vmatprep.subr.mxu0 0.0
  %671 = vmatpush1.msra.mxu0 %v148
  %672 = vmatprep.subr.mxu0 0.0
  %673 = vmatpush1.msra.mxu0 %v149
  %674 = vmatprep.subr.mxu0 0.0
  %675 = vmatpush1.msra.mxu0 %v150
  %676 = vmatprep.subr.mxu0 0.0
  %677 = vmatpush1.msra.mxu0 %v151
  %678 = vmatprep.subr.mxu0 0.0
  %679 = vmatpush1.msra.mxu0 %v152
  %680 = vmatprep.subr.mxu0 0.0
  %681 = vmatpush1.msra.mxu0 %v153
  %682 = vmatprep.subr.mxu0 0.0
  %683 = vmatpush1.msra.mxu0 %v154
  %684 = vmatprep.subr.mxu0 0.0
  %685 = vmatpush1.msra.mxu0 %v155
  %686 = vmatprep.subr.mxu0 0.0
  %687 = vmatpush1.msra.mxu0 %v156
  %688 = vmatprep.subr.mxu0 0.0
  %689 = vmatpush1.msra.mxu0 %v157
  %690 = vmatprep.subr.mxu0 0.0
  %691 = vmatpush1.msra.mxu0 %v158
  %692 = vmatprep.subr.mxu0 0.0
  %693 = vmatpush1.msra.mxu0 %v159
  %694 = vmatprep.subr.mxu0 0.0
  %695 = vmatpush1.msra.mxu0 %v160
  %696 = vmatprep.subr.mxu0 0.0
  %697 = vmatpush1.msra.mxu0 %v161
  %698 = vmatprep.subr.mxu0 0.0
  %699 = vmatpush1.msra.mxu0 %v162
  %700 = vmatprep.subr.mxu0 0.0
  %701 = vmatpush1.msra.mxu0 %v163
  %702 = vmatprep.subr.mxu0 0.0
  %703 = vmatpush1.msra.mxu0 %v164
  %704 = vmatprep.subr.mxu0 0.0
  %705 = vmatpush1.msra.mxu0 %v165
  %706 = vmatprep.subr.mxu0 0.0
  %707 = vmatpush1.msra.mxu0 %v166
  %708 = vmatprep.subr.mxu0 0.0
  %709 = vmatpush1.msra.mxu0 %v167
  %710 = vmatprep.subr.mxu0 0.0
  %711 = vmatpush1.msra.mxu0 %v168
  %712 = vmatprep.subr.mxu0 0.0
  %713 = vmatpush1.msra.mxu0 %v169
  %714 = vmatprep.subr.mxu0 0.0
  %715 = vmatpush1.msra.mxu0 %v170
  %716 = vmatprep.subr.mxu0 0.0
  %717 = vmatpush1.msra.mxu0 %v171
  %718 = vmatprep.subr.mxu0 0.0
  %719 = vmatpush1.msra.mxu0 %v172
  %720 = vmatprep.subr.mxu0 0.0
  %721 = vmatpush1.msra.mxu0 %v173
  %722 = vmatprep.subr.mxu0 0.0
  %723 = vmatpush1.msra.mxu0 %v174
  %724 = vmatprep.subr.mxu0 0.0
  %725 = vmatpush1.msra.mxu0 %v175
  %726 = vmatprep.subr.mxu0 0.0
  %727 = vmatpush1.msra.mxu0 %v176
  %728 = vmatprep.subr.mxu0 0.0
  %729 = vmatpush1.msra.mxu0 %v177
  %730 = vmatprep.subr.mxu0 0.0
  %731 = vmatpush1.msra.mxu0 %v178
  %732 = vmatprep.mubr.f32.mxu0 %v33
  %733 = vmatmul.mubr.f32.gmra.mrb[0].mxu0 %v32
  %v734 = vpop.f32.mrb[0].mxu0
  %v735 = vadd.f32 %v665, %v734
  %v736 = vpop.f32.mrb[0].mxu0
  %737 = vdwg.mxu0
  %738 = vmatprep.subr.mxu0 0.0
  %739 = vmatpush1.msra.mxu0 %v179
  %740 = vmatprep.subr.mxu0 0.0
  %741 = vmatpush1.msra.mxu0 %v180
  %742 = vmatprep.subr.mxu0 0.0
  %743 = vmatpush1.msra.mxu0 %v181
  %744 = vmatprep.subr.mxu0 0.0
  %745 = vmatpush1.msra.mxu0 %v182
  %746 = vmatprep.subr.mxu0 0.0
  %747 = vmatpush1.msra.mxu0 %v183
  %748 = vmatprep.subr.mxu0 0.0
  %749 = vmatpush1.msra.mxu0 %v184
  %750 = vmatprep.subr.mxu0 0.0
  %751 = vmatpush1.msra.mxu0 %v185
  %752 = vmatprep.subr.mxu0 0.0
  %753 = vmatpush1.msra.mxu0 %v186
  %754 = vmatprep.subr.mxu0 0.0
  %755 = vmatpush1.msra.mxu0 %v187
  %756 = vmatprep.subr.mxu0 0.0
  %757 = vmatpush1.msra.mxu0 %v188
  %758 = vmatprep.subr.mxu0 0.0
  %759 = vmatpush1.msra.mxu0 %v189
  %760 = vmatprep.subr.mxu0 0.0
  %761 = vmatpush1.msra.mxu0 %v190
  %762 = vmatprep.subr.mxu0 0.0
  %763 = vmatpush1.msra.mxu0 %v191
  %764 = vmatprep.subr.mxu0 0.0
  %765 = vmatpush1.msra.mxu0 %v192
  %766 = vmatprep.subr.mxu0 0.0
  %767 = vmatpush1.msra.mxu0 %v193
  %768 = vmatprep.subr.mxu0 0.0
  %769 = vmatpush1.msra.mxu0 %v194
  %770 = vmatprep.subr.mxu0 0.0
  %771 = vmatpush1.msra.mxu0 %v195
  %772 = vmatprep.subr.mxu0 0.0
  %773 = vmatpush1.msra.mxu0 %v196
  %774 = vmatprep.subr.mxu0 0.0
  %775 = vmatpush1.msra.mxu0 %v197
  %776 = vmatprep.subr.mxu0 0.0
  %777 = vmatpush1.msra.mxu0 %v198
  %778 = vmatprep.subr.mxu0 0.0
  %779 = vmatpush1.msra.mxu0 %v199
  %780 = vmatprep.subr.mxu0 0.0
  %781 = vmatpush1.msra.mxu0 %v200
  %782 = vmatprep.subr.mxu0 0.0
  %783 = vmatpush1.msra.mxu0 %v201
  %784 = vmatprep.subr.mxu0 0.0
  %785 = vmatpush1.msra.mxu0 %v202
  %786 = vmatprep.subr.mxu0 0.0
  %787 = vmatpush1.msra.mxu0 %v203
  %788 = vmatprep.subr.mxu0 0.0
  %789 = vmatpush1.msra.mxu0 %v204
  %790 = vmatprep.subr.mxu0 0.0
  %791 = vmatpush1.msra.mxu0 %v205
  %792 = vmatprep.subr.mxu0 0.0
  %793 = vmatpush1.msra.mxu0 %v206
  %794 = vmatprep.subr.mxu0 0.0
  %795 = vmatpush1.msra.mxu0 %v207
  %796 = vmatprep.subr.mxu0 0.0
  %797 = vmatpush1.msra.mxu0 %v208
  %798 = vmatprep.subr.mxu0 0.0
  %799 = vmatpush1.msra.mxu0 %v209
  %800 = vmatprep.subr.mxu0 0.0
  %801 = vmatpush1.msra.mxu0 %v210
  %802 = vmatprep.mubr.f32.mxu0 %v35
  %803 = vmatmul.mubr.f32.gmra.mrb[0].mxu0 %v34
  %v804 = vpop.f32.mrb[0].mxu0
  %v805 = vadd.f32 %v735, %v804
  %v806 = vpop.f32.mrb[0].mxu0
  %807 = vdwg.mxu0
  %808 = vmatprep.subr.mxu0 0.0
  %809 = vmatpush1.msra.mxu0 %v211
  %810 = vmatprep.subr.mxu0 0.0
  %811 = vmatpush1.msra.mxu0 %v212
  %812 = vmatprep.subr.mxu0 0.0
  %813 = vmatpush1.msra.mxu0 %v213
  %814 = vmatprep.subr.mxu0 0.0
  %815 = vmatpush1.msra.mxu0 %v214
  %816 = vmatprep.subr.mxu0 0.0
  %817 = vmatpush1.msra.mxu0 %v215
  %818 = vmatprep.subr.mxu0 0.0
  %819 = vmatpush1.msra.mxu0 %v216
  %820 = vmatprep.subr.mxu0 0.0
  %821 = vmatpush1.msra.mxu0 %v217
  %822 = vmatprep.subr.mxu0 0.0
  %823 = vmatpush1.msra.mxu0 %v218
  %824 = vmatprep.subr.mxu0 0.0
  %825 = vmatpush1.msra.mxu0 %v219
  %826 = vmatprep.subr.mxu0 0.0
  %827 = vmatpush1.msra.mxu0 %v220
  %828 = vmatprep.subr.mxu0 0.0
  %829 = vmatpush1.msra.mxu0 %v221
  %830 = vmatprep.subr.mxu0 0.0
  %831 = vmatpush1.msra.mxu0 %v222
  %832 = vmatprep.subr.mxu0 0.0
  %833 = vmatpush1.msra.mxu0 %v223
  %834 = vmatprep.subr.mxu0 0.0
  %835 = vmatpush1.msra.mxu0 %v224
  %836 = vmatprep.subr.mxu0 0.0
  %837 = vmatpush1.msra.mxu0 %v225
  %838 = vmatprep.subr.mxu0 0.0
  %839 = vmatpush1.msra.mxu0 %v226
  %840 = vmatprep.subr.mxu0 0.0
  %841 = vmatpush1.msra.mxu0 %v227
  %842 = vmatprep.subr.mxu0 0.0
  %843 = vmatpush1.msra.mxu0 %v228
  %844 = vmatprep.subr.mxu0 0.0
  %845 = vmatpush1.msra.mxu0 %v229
  %846 = vmatprep.subr.mxu0 0.0
  %847 = vmatpush1.msra.mxu0 %v230
  %848 = vmatprep.subr.mxu0 0.0
  %849 = vmatpush1.msra.mxu0 %v231
  %850 = vmatprep.subr.mxu0 0.0
  %851 = vmatpush1.msra.mxu0 %v232
  %852 = vmatprep.subr.mxu0 0.0
  %853 = vmatpush1.msra.mxu0 %v233
  %854 = vmatprep.subr.mxu0 0.0
  %855 = vmatpush1.msra.mxu0 %v234
  %856 = vmatprep.subr.mxu0 0.0
  %857 = vmatpush1.msra.mxu0 %v235
  %858 = vmatprep.subr.mxu0 0.0
  %859 = vmatpush1.msra.mxu0 %v236
  %860 = vmatprep.subr.mxu0 0.0
  %861 = vmatpush1.msra.mxu0 %v237
  %862 = vmatprep.subr.mxu0 0.0
  %863 = vmatpush1.msra.mxu0 %v238
  %864 = vmatprep.subr.mxu0 0.0
  %865 = vmatpush1.msra.mxu0 %v239
  %866 = vmatprep.subr.mxu0 0.0
  %867 = vmatpush1.msra.mxu0 %v240
  %868 = vmatprep.subr.mxu0 0.0
  %869 = vmatpush1.msra.mxu0 %v241
  %870 = vmatprep.subr.mxu0 0.0
  %871 = vmatpush1.msra.mxu0 %v242
  %872 = vmatprep.mubr.f32.mxu0 %v37
  %873 = vmatmul.mubr.f32.gmra.mrb[0].mxu0 %v36
  %v874 = vpop.f32.mrb[0].mxu0
  %v875 = vadd.f32 %v805, %v874
  %v876 = vpop.f32.mrb[0].mxu0
  %877 = vdwg.mxu0
  %878 = vmatprep.subr.mxu0 0.0
  %879 = vmatpush1.msra.mxu0 %v243
  %880 = vmatprep.subr.mxu0 0.0
  %881 = vmatpush1.msra.mxu0 %v244
  %882 = vmatprep.subr.mxu0 0.0
  %883 = vmatpush1.msra.mxu0 %v245
  %884 = vmatprep.subr.mxu0 0.0
  %885 = vmatpush1.msra.mxu0 %v246
  %886 = vmatprep.subr.mxu0 0.0
  %887 = vmatpush1.msra.mxu0 %v247
  %888 = vmatprep.subr.mxu0 0.0
  %889 = vmatpush1.msra.mxu0 %v248
  %890 = vmatprep.subr.mxu0 0.0
  %891 = vmatpush1.msra.mxu0 %v249
  %892 = vmatprep.subr.mxu0 0.0
  %893 = vmatpush1.msra.mxu0 %v250
  %894 = vmatprep.subr.mxu0 0.0
  %895 = vmatpush1.msra.mxu0 %v251
  %896 = vmatprep.subr.mxu0 0.0
  %897 = vmatpush1.msra.mxu0 %v252
  %898 = vmatprep.subr.mxu0 0.0
  %899 = vmatpush1.msra.mxu0 %v253
  %900 = vmatprep.subr.mxu0 0.0
  %901 = vmatpush1.msra.mxu0 %v254
  %902 = vmatprep.subr.mxu0 0.0
  %903 = vmatpush1.msra.mxu0 %v255
  %904 = vmatprep.subr.mxu0 0.0
  %905 = vmatpush1.msra.mxu0 %v256
  %906 = vmatprep.subr.mxu0 0.0
  %907 = vmatpush1.msra.mxu0 %v257
  %908 = vmatprep.subr.mxu0 0.0
  %909 = vmatpush1.msra.mxu0 %v258
  %910 = vmatprep.subr.mxu0 0.0
  %911 = vmatpush1.msra.mxu0 %v259
  %912 = vmatprep.subr.mxu0 0.0
  %913 = vmatpush1.msra.mxu0 %v260
  %914 = vmatprep.subr.mxu0 0.0
  %915 = vmatpush1.msra.mxu0 %v261
  %916 = vmatprep.subr.mxu0 0.0
  %917 = vmatpush1.msra.mxu0 %v262
  %918 = vmatprep.subr.mxu0 0.0
  %919 = vmatpush1.msra.mxu0 %v263
  %920 = vmatprep.subr.mxu0 0.0
  %921 = vmatpush1.msra.mxu0 %v264
  %922 = vmatprep.subr.mxu0 0.0
  %923 = vmatpush1.msra.mxu0 %v265
  %924 = vmatprep.subr.mxu0 0.0
  %925 = vmatpush1.msra.mxu0 %v266
  %926 = vmatprep.subr.mxu0 0.0
  %927 = vmatpush1.msra.mxu0 %v267
  %928 = vmatprep.subr.mxu0 0.0
  %929 = vmatpush1.msra.mxu0 %v268
  %930 = vmatprep.subr.mxu0 0.0
  %931 = vmatpush1.msra.mxu0 %v269
  %932 = vmatprep.subr.mxu0 0.0
  %933 = vmatpush1.msra.mxu0 %v270
  %934 = vmatprep.subr.mxu0 0.0
  %935 = vmatpush1.msra.mxu0 %v271
  %936 = vmatprep.subr.mxu0 0.0
  %937 = vmatpush1.msra.mxu0 %v272
  %938 = vmatprep.subr.mxu0 0.0
  %939 = vmatpush1.msra.mxu0 %v273
  %940 = vmatprep.subr.mxu0 0.0
  %941 = vmatpush1.msra.mxu0 %v274
  %942 = vmatprep.mubr.f32.mxu0 %v39
  %943 = vmatmul.mubr.f32.gmra.mrb[0].mxu0 %v38
  %v944 = vpop.f32.mrb[0].mxu0
  %v945 = vadd.f32 %v875, %v944
  %v946 = vpop.f32.mrb[0].mxu0
  %947 = vdwg.mxu0
  %948 = vmatprep.subr.mxu0 0.0
  %949 = vmatpush1.msra.mxu0 %v275
  %950 = vmatprep.subr.mxu0 0.0
  %951 = vmatpush1.msra.mxu0 %v276
  %952 = vmatprep.subr.mxu0 0.0
  %953 = vmatpush1.msra.mxu0 %v277
  %954 = vmatprep.subr.mxu0 0.0
  %955 = vmatpush1.msra.mxu0 %v278
  %956 = vmatprep.subr.mxu0 0.0
  %957 = vmatpush1.msra.mxu0 %v279
  %958 = vmatprep.subr.mxu0 0.0
  %959 = vmatpush1.msra.mxu0 %v280
  %960 = vmatprep.subr.mxu0 0.0
  %961 = vmatpush1.msra.mxu0 %v281
  %962 = vmatprep.subr.mxu0 0.0
  %963 = vmatpush1.msra.mxu0 %v282
  %964 = vmatprep.subr.mxu0 0.0
  %965 = vmatpush1.msra.mxu0 %v283
  %966 = vmatprep.subr.mxu0 0.0
  %967 = vmatpush1.msra.mxu0 %v284
  %968 = vmatprep.subr.mxu0 0.0
  %969 = vmatpush1.msra.mxu0 %v285
  %970 = vmatprep.subr.mxu0 0.0
  %971 = vmatpush1.msra.mxu0 %v286
  %972 = vmatprep.subr.mxu0 0.0
  %973 = vmatpush1.msra.mxu0 %v287
  %974 = vmatprep.subr.mxu0 0.0
  %975 = vmatpush1.msra.mxu0 %v288
  %976 = vmatprep.subr.mxu0 0.0
  %977 = vmatpush1.msra.mxu0 %v289
  %978 = vmatprep.subr.mxu0 0.0
  %979 = vmatpush1.msra.mxu0 %v290
  %980 = vmatprep.subr.mxu0 0.0
  %981 = vmatpush1.msra.mxu0 %v291
  %982 = vmatprep.subr.mxu0 0.0
  %983 = vmatpush1.msra.mxu0 %v292
  %984 = vmatprep.subr.mxu0 0.0
  %985 = vmatpush1.msra.mxu0 %v293
  %986 = vmatprep.subr.mxu0 0.0
  %987 = vmatpush1.msra.mxu0 %v294
  %988 = vmatprep.subr.mxu0 0.0
  %989 = vmatpush1.msra.mxu0 %v295
  %990 = vmatprep.subr.mxu0 0.0
  %991 = vmatpush1.msra.mxu0 %v296
  %992 = vmatprep.subr.mxu0 0.0
  %993 = vmatpush1.msra.mxu0 %v297
  %994 = vmatprep.subr.mxu0 0.0
  %995 = vmatpush1.msra.mxu0 %v298
  %996 = vmatprep.subr.mxu0 0.0
  %997 = vmatpush1.msra.mxu0 %v299
  %998 = vmatprep.subr.mxu0 0.0
  %999 = vmatpush1.msra.mxu0 %v300
  %1000 = vmatprep.subr.mxu0 0.0
  %1001 = vmatpush1.msra.mxu0 %v301
  %1002 = vmatprep.subr.mxu0 0.0
  %1003 = vmatpush1.msra.mxu0 %v302
  %1004 = vmatprep.subr.mxu0 0.0
  %1005 = vmatpush1.msra.mxu0 %v303
  %1006 = vmatprep.subr.mxu0 0.0
  %1007 = vmatpush1.msra.mxu0 %v304
  %1008 = vmatprep.subr.mxu0 0.0
  %1009 = vmatpush1.msra.mxu0 %v305
  %1010 = vmatprep.subr.mxu0 0.0
  %1011 = vmatpush1.msra.mxu0 %v306
  %1012 = vmatprep.mubr.f32.mxu0 %v41
  %1013 = vmatmul.mubr.f32.gmra.mrb[0].mxu0 %v40
  %v1014 = vpop.f32.mrb[0].mxu0
  %v1015 = vadd.f32 %v945, %v1014
  %v1016 = vpop.f32.mrb[0].mxu0
  %1017 = vdwg.mxu0
  %1018 = vmatprep.subr.mxu0 0.0
  %1019 = vmatpush1.msra.mxu0 %v307
  %1020 = vmatprep.subr.mxu0 0.0
  %1021 = vmatpush1.msra.mxu0 %v308
  %1022 = vmatprep.subr.mxu0 0.0
  %1023 = vmatpush1.msra.mxu0 %v309
  %1024 = vmatprep.subr.mxu0 0.0
  %1025 = vmatpush1.msra.mxu0 %v310
  %1026 = vmatprep.subr.mxu0 0.0
  %1027 = vmatpush1.msra.mxu0 %v311
  %1028 = vmatprep.subr.mxu0 0.0
  %1029 = vmatpush1.msra.mxu0 %v312
  %1030 = vmatprep.subr.mxu0 0.0
  %1031 = vmatpush1.msra.mxu0 %v313
  %1032 = vmatprep.subr.mxu0 0.0
  %1033 = vmatpush1.msra.mxu0 %v314
  %1034 = vmatprep.subr.mxu0 0.0
  %1035 = vmatpush1.msra.mxu0 %v315
  %1036 = vmatprep.subr.mxu0 0.0
  %1037 = vmatpush1.msra.mxu0 %v316
  %1038 = vmatprep.subr.mxu0 0.0
  %1039 = vmatpush1.msra.mxu0 %v317
  %1040 = vmatprep.subr.mxu0 0.0
  %1041 = vmatpush1.msra.mxu0 %v318
  %1042 = vmatprep.subr.mxu0 0.0
  %1043 = vmatpush1.msra.mxu0 %v319
  %1044 = vmatprep.subr.mxu0 0.0
  %1045 = vmatpush1.msra.mxu0 %v320
  %1046 = vmatprep.subr.mxu0 0.0
  %1047 = vmatpush1.msra.mxu0 %v321
  %1048 = vmatprep.subr.mxu0 0.0
  %1049 = vmatpush1.msra.mxu0 %v322
  %1050 = vmatprep.subr.mxu0 0.0
  %1051 = vmatpush1.msra.mxu0 %v323
  %1052 = vmatprep.subr.mxu0 0.0
  %1053 = vmatpush1.msra.mxu0 %v324
  %1054 = vmatprep.subr.mxu0 0.0
  %1055 = vmatpush1.msra.mxu0 %v325
  %1056 = vmatprep.subr.mxu0 0.0
  %1057 = vmatpush1.msra.mxu0 %v326
  %1058 = vmatprep.subr.mxu0 0.0
  %1059 = vmatpush1.msra.mxu0 %v327
  %1060 = vmatprep.subr.mxu0 0.0
  %1061 = vmatpush1.msra.mxu0 %v328
  %1062 = vmatprep.subr.mxu0 0.0
  %1063 = vmatpush1.msra.mxu0 %v329
  %1064 = vmatprep.subr.mxu0 0.0
  %1065 = vmatpush1.msra.mxu0 %v330
  %1066 = vmatprep.subr.mxu0 0.0
  %1067 = vmatpush1.msra.mxu0 %v331
  %1068 = vmatprep.subr.mxu0 0.0
  %1069 = vmatpush1.msra.mxu0 %v332
  %1070 = vmatprep.subr.mxu0 0.0
  %1071 = vmatpush1.msra.mxu0 %v333
  %1072 = vmatprep.subr.mxu0 0.0
  %1073 = vmatpush1.msra.mxu0 %v334
  %1074 = vmatprep.subr.mxu0 0.0
  %1075 = vmatpush1.msra.mxu0 %v335
  %1076 = vmatprep.subr.mxu0 0.0
  %1077 = vmatpush1.msra.mxu0 %v336
  %1078 = vmatprep.subr.mxu0 0.0
  %1079 = vmatpush1.msra.mxu0 %v337
  %1080 = vmatprep.subr.mxu0 0.0
  %1081 = vmatpush1.msra.mxu0 %v338
  %1082 = vmatprep.mubr.f32.mxu0 %v43
  %1083 = vmatmul.mubr.f32.gmra.mrb[0].mxu0 %v42
  %v1084 = vpop.f32.mrb[0].mxu0
  %v1085 = vadd.f32 %v1015, %v1084
  %v1086 = vpop.f32.mrb[0].mxu0
  %1087 = vdwg.mxu0
  %1088 = vmatprep.subr.mxu0 0.0
  %1089 = vmatpush1.msra.mxu0 %v339
  %1090 = vmatprep.subr.mxu0 0.0
  %1091 = vmatpush1.msra.mxu0 %v340
  %1092 = vmatprep.subr.mxu0 0.0
  %1093 = vmatpush1.msra.mxu0 %v341
  %1094 = vmatprep.subr.mxu0 0.0
  %1095 = vmatpush1.msra.mxu0 %v342
  %1096 = vmatprep.subr.mxu0 0.0
  %1097 = vmatpush1.msra.mxu0 %v343
  %1098 = vmatprep.subr.mxu0 0.0
  %1099 = vmatpush1.msra.mxu0 %v344
  %1100 = vmatprep.subr.mxu0 0.0
  %1101 = vmatpush1.msra.mxu0 %v345
  %1102 = vmatprep.subr.mxu0 0.0
  %1103 = vmatpush1.msra.mxu0 %v346
  %1104 = vmatprep.subr.mxu0 0.0
  %1105 = vmatpush1.msra.mxu0 %v347
  %1106 = vmatprep.subr.mxu0 0.0
  %1107 = vmatpush1.msra.mxu0 %v348
  %1108 = vmatprep.subr.mxu0 0.0
  %1109 = vmatpush1.msra.mxu0 %v349
  %1110 = vmatprep.subr.mxu0 0.0
  %1111 = vmatpush1.msra.mxu0 %v350
  %1112 = vmatprep.subr.mxu0 0.0
  %1113 = vmatpush1.msra.mxu0 %v351
  %1114 = vmatprep.subr.mxu0 0.0
  %1115 = vmatpush1.msra.mxu0 %v352
  %1116 = vmatprep.subr.mxu0 0.0
  %1117 = vmatpush1.msra.mxu0 %v353
  %1118 = vmatprep.subr.mxu0 0.0
  %1119 = vmatpush1.msra.mxu0 %v354
  %1120 = vmatprep.subr.mxu0 0.0
  %1121 = vmatpush1.msra.mxu0 %v355
  %1122 = vmatprep.subr.mxu0 0.0
  %1123 = vmatpush1.msra.mxu0 %v356
  %1124 = vmatprep.subr.mxu0 0.0
  %1125 = vmatpush1.msra.mxu0 %v357
  %1126 = vmatprep.subr.mxu0 0.0
  %1127 = vmatpush1.msra.mxu0 %v358
  %1128 = vmatprep.subr.mxu0 0.0
  %1129 = vmatpush1.msra.mxu0 %v359
  %1130 = vmatprep.subr.mxu0 0.0
  %1131 = vmatpush1.msra.mxu0 %v360
  %1132 = vmatprep.subr.mxu0 0.0
  %1133 = vmatpush1.msra.mxu0 %v361
  %1134 = vmatprep.subr.mxu0 0.0
  %1135 = vmatpush1.msra.mxu0 %v362
  %1136 = vmatprep.subr.mxu0 0.0
  %1137 = vmatpush1.msra.mxu0 %v363
  %1138 = vmatprep.subr.mxu0 0.0
  %1139 = vmatpush1.msra.mxu0 %v364
  %1140 = vmatprep.subr.mxu0 0.0
  %1141 = vmatpush1.msra.mxu0 %v365
  %1142 = vmatprep.subr.mxu0 0.0
  %1143 = vmatpush1.msra.mxu0 %v366
  %1144 = vmatprep.subr.mxu0 0.0
  %1145 = vmatpush1.msra.mxu0 %v367
  %1146 = vmatprep.subr.mxu0 0.0
  %1147 = vmatpush1.msra.mxu0 %v368
  %1148 = vmatprep.subr.mxu0 0.0
  %1149 = vmatpush1.msra.mxu0 %v369
  %1150 = vmatprep.subr.mxu0 0.0
  %1151 = vmatpush1.msra.mxu0 %v370
  %1152 = vmatprep.mubr.f32.mxu0 %v45
  %1153 = vmatmul.mubr.f32.gmra.mrb[0].mxu0 %v44
  %v1154 = vpop.f32.mrb[0].mxu0
  %v1155 = vadd.f32 %v1085, %v1154
  %v1156 = vpop.f32.mrb[0].mxu0
  %1157 = vdwg.mxu0
  %1158 = vmatprep.subr.mxu0 0.0
  %1159 = vmatpush1.msra.mxu0 %v371
  %1160 = vmatprep.subr.mxu0 0.0
  %1161 = vmatpush1.msra.mxu0 %v372
  %1162 = vmatprep.subr.mxu0 0.0
  %1163 = vmatpush1.msra.mxu0 %v373
  %1164 = vmatprep.subr.mxu0 0.0
  %1165 = vmatpush1.msra.mxu0 %v374
  %1166 = vmatprep.subr.mxu0 0.0
  %1167 = vmatpush1.msra.mxu0 %v375
  %1168 = vmatprep.subr.mxu0 0.0
  %1169 = vmatpush1.msra.mxu0 %v376
  %1170 = vmatprep.subr.mxu0 0.0
  %1171 = vmatpush1.msra.mxu0 %v377
  %1172 = vmatprep.subr.mxu0 0.0
  %1173 = vmatpush1.msra.mxu0 %v378
  %1174 = vmatprep.subr.mxu0 0.0
  %1175 = vmatpush1.msra.mxu0 %v379
  %1176 = vmatprep.subr.mxu0 0.0
  %1177 = vmatpush1.msra.mxu0 %v380
  %1178 = vmatprep.subr.mxu0 0.0
  %1179 = vmatpush1.msra.mxu0 %v381
  %1180 = vmatprep.subr.mxu0 0.0
  %1181 = vmatpush1.msra.mxu0 %v382
  %1182 = vmatprep.subr.mxu0 0.0
  %1183 = vmatpush1.msra.mxu0 %v383
  %1184 = vmatprep.subr.mxu0 0.0
  %1185 = vmatpush1.msra.mxu0 %v384
  %1186 = vmatprep.subr.mxu0 0.0
  %1187 = vmatpush1.msra.mxu0 %v385
  %1188 = vmatprep.subr.mxu0 0.0
  %1189 = vmatpush1.msra.mxu0 %v386
  %1190 = vmatprep.subr.mxu0 0.0
  %1191 = vmatpush1.msra.mxu0 %v387
  %1192 = vmatprep.subr.mxu0 0.0
  %1193 = vmatpush1.msra.mxu0 %v388
  %1194 = vmatprep.subr.mxu0 0.0
  %1195 = vmatpush1.msra.mxu0 %v389
  %1196 = vmatprep.subr.mxu0 0.0
  %1197 = vmatpush1.msra.mxu0 %v390
  %1198 = vmatprep.subr.mxu0 0.0
  %1199 = vmatpush1.msra.mxu0 %v391
  %1200 = vmatprep.subr.mxu0 0.0
  %1201 = vmatpush1.msra.mxu0 %v392
  %1202 = vmatprep.subr.mxu0 0.0
  %1203 = vmatpush1.msra.mxu0 %v393
  %1204 = vmatprep.subr.mxu0 0.0
  %1205 = vmatpush1.msra.mxu0 %v394
  %1206 = vmatprep.subr.mxu0 0.0
  %1207 = vmatpush1.msra.mxu0 %v395
  %1208 = vmatprep.subr.mxu0 0.0
  %1209 = vmatpush1.msra.mxu0 %v396
  %1210 = vmatprep.subr.mxu0 0.0
  %1211 = vmatpush1.msra.mxu0 %v397
  %1212 = vmatprep.subr.mxu0 0.0
  %1213 = vmatpush1.msra.mxu0 %v398
  %1214 = vmatprep.subr.mxu0 0.0
  %1215 = vmatpush1.msra.mxu0 %v399
  %1216 = vmatprep.subr.mxu0 0.0
  %1217 = vmatpush1.msra.mxu0 %v400
  %1218 = vmatprep.subr.mxu0 0.0
  %1219 = vmatpush1.msra.mxu0 %v401
  %1220 = vmatprep.subr.mxu0 0.0
  %1221 = vmatpush1.msra.mxu0 %v402
  %1222 = vmatprep.mubr.f32.mxu0 %v47
  %1223 = vmatmul.mubr.f32.gmra.mrb[0].mxu0 %v46
  %v1224 = vpop.f32.mrb[0].mxu0
  %v1225 = vadd.f32 %v1155, %v1224
  %v1226 = vpop.f32.mrb[0].mxu0
  %1227 = vdwg.mxu0
  %1228 = vmatprep.subr.mxu0 0.0
  %1229 = vmatpush1.msra.mxu0 %v403
  %1230 = vmatprep.subr.mxu0 0.0
  %1231 = vmatpush1.msra.mxu0 %v404
  %1232 = vmatprep.subr.mxu0 0.0
  %1233 = vmatpush1.msra.mxu0 %v405
  %1234 = vmatprep.subr.mxu0 0.0
  %1235 = vmatpush1.msra.mxu0 %v406
  %1236 = vmatprep.subr.mxu0 0.0
  %1237 = vmatpush1.msra.mxu0 %v407
  %1238 = vmatprep.subr.mxu0 0.0
  %1239 = vmatpush1.msra.mxu0 %v408
  %1240 = vmatprep.subr.mxu0 0.0
  %1241 = vmatpush1.msra.mxu0 %v409
  %1242 = vmatprep.subr.mxu0 0.0
  %1243 = vmatpush1.msra.mxu0 %v410
  %1244 = vmatprep.subr.mxu0 0.0
  %1245 = vmatpush1.msra.mxu0 %v411
  %1246 = vmatprep.subr.mxu0 0.0
  %1247 = vmatpush1.msra.mxu0 %v412
  %1248 = vmatprep.subr.mxu0 0.0
  %1249 = vmatpush1.msra.mxu0 %v413
  %1250 = vmatprep.subr.mxu0 0.0
  %1251 = vmatpush1.msra.mxu0 %v414
  %1252 = vmatprep.subr.mxu0 0.0
  %1253 = vmatpush1.msra.mxu0 %v415
  %1254 = vmatprep.subr.mxu0 0.0
  %1255 = vmatpush1.msra.mxu0 %v416
  %1256 = vmatprep.subr.mxu0 0.0
  %1257 = vmatpush1.msra.mxu0 %v417
  %1258 = vmatprep.subr.mxu0 0.0
  %1259 = vmatpush1.msra.mxu0 %v418
  %1260 = vmatprep.subr.mxu0 0.0
  %1261 = vmatpush1.msra.mxu0 %v419
  %1262 = vmatprep.subr.mxu0 0.0
  %1263 = vmatpush1.msra.mxu0 %v420
  %1264 = vmatprep.subr.mxu0 0.0
  %1265 = vmatpush1.msra.mxu0 %v421
  %1266 = vmatprep.subr.mxu0 0.0
  %1267 = vmatpush1.msra.mxu0 %v422
  %1268 = vmatprep.subr.mxu0 0.0
  %1269 = vmatpush1.msra.mxu0 %v423
  %1270 = vmatprep.subr.mxu0 0.0
  %1271 = vmatpush1.msra.mxu0 %v424
  %1272 = vmatprep.subr.mxu0 0.0
  %1273 = vmatpush1.msra.mxu0 %v425
  %1274 = vmatprep.subr.mxu0 0.0
  %1275 = vmatpush1.msra.mxu0 %v426
  %1276 = vmatprep.subr.mxu0 0.0
  %1277 = vmatpush1.msra.mxu0 %v427
  %1278 = vmatprep.subr.mxu0 0.0
  %1279 = vmatpush1.msra.mxu0 %v428
  %1280 = vmatprep.subr.mxu0 0.0
  %1281 = vmatpush1.msra.mxu0 %v429
  %1282 = vmatprep.subr.mxu0 0.0
  %1283 = vmatpush1.msra.mxu0 %v430
  %1284 = vmatprep.subr.mxu0 0.0
  %1285 = vmatpush1.msra.mxu0 %v431
  %1286 = vmatprep.subr.mxu0 0.0
  %1287 = vmatpush1.msra.mxu0 %v432
  %1288 = vmatprep.subr.mxu0 0.0
  %1289 = vmatpush1.msra.mxu0 %v433
  %1290 = vmatprep.subr.mxu0 0.0
  %1291 = vmatpush1.msra.mxu0 %v434
  %1292 = vmatprep.mubr.f32.mxu0 %v49
  %1293 = vmatmul.mubr.f32.gmra.mrb[0].mxu0 %v48
  %v1294 = vpop.f32.mrb[0].mxu0
  %v1295 = vadd.f32 %v1225, %v1294
  %v1296 = vpop.f32.mrb[0].mxu0
  %1297 = vdwg.mxu0
  %1298 = vmatprep.subr.mxu0 0.0
  %1299 = vmatpush1.msra.mxu0 %v435
  %1300 = vmatprep.subr.mxu0 0.0
  %1301 = vmatpush1.msra.mxu0 %v436
  %1302 = vmatprep.subr.mxu0 0.0
  %1303 = vmatpush1.msra.mxu0 %v437
  %1304 = vmatprep.subr.mxu0 0.0
  %1305 = vmatpush1.msra.mxu0 %v438
  %1306 = vmatprep.subr.mxu0 0.0
  %1307 = vmatpush1.msra.mxu0 %v439
  %1308 = vmatprep.subr.mxu0 0.0
  %1309 = vmatpush1.msra.mxu0 %v440
  %1310 = vmatprep.subr.mxu0 0.0
  %1311 = vmatpush1.msra.mxu0 %v441
  %1312 = vmatprep.subr.mxu0 0.0
  %1313 = vmatpush1.msra.mxu0 %v442
  %1314 = vmatprep.subr.mxu0 0.0
  %1315 = vmatpush1.msra.mxu0 %v443
  %1316 = vmatprep.subr.mxu0 0.0
  %1317 = vmatpush1.msra.mxu0 %v444
  %1318 = vmatprep.subr.mxu0 0.0
  %1319 = vmatpush1.msra.mxu0 %v445
  %1320 = vmatprep.subr.mxu0 0.0
  %1321 = vmatpush1.msra.mxu0 %v446
  %1322 = vmatprep.subr.mxu0 0.0
  %1323 = vmatpush1.msra.mxu0 %v447
  %1324 = vmatprep.subr.mxu0 0.0
  %1325 = vmatpush1.msra.mxu0 %v448
  %1326 = vmatprep.subr.mxu0 0.0
  %1327 = vmatpush1.msra.mxu0 %v449
  %1328 = vmatprep.subr.mxu0 0.0
  %1329 = vmatpush1.msra.mxu0 %v450
  %1330 = vmatprep.subr.mxu0 0.0
  %1331 = vmatpush1.msra.mxu0 0.0
  %1332 = vmatprep.subr.mxu0 0.0
  %1333 = vmatpush1.msra.mxu0 0.0
  %1334 = vmatprep.subr.mxu0 0.0
  %1335 = vmatpush1.msra.mxu0 0.0
  %1336 = vmatprep.subr.mxu0 0.0
  %1337 = vmatpush1.msra.mxu0 0.0
  %1338 = vmatprep.subr.mxu0 0.0
  %1339 = vmatpush1.msra.mxu0 0.0
  %1340 = vmatprep.subr.mxu0 0.0
  %1341 = vmatpush1.msra.mxu0 0.0
  %1342 = vmatprep.subr.mxu0 0.0
  %1343 = vmatpush1.msra.mxu0 0.0
  %1344 = vmatprep.subr.mxu0 0.0
  %1345 = vmatpush1.msra.mxu0 0.0
  %1346 = vmatprep.subr.mxu0 0.0
  %1347 = vmatpush1.msra.mxu0 0.0
  %1348 = vmatprep.subr.mxu0 0.0
  %1349 = vmatpush1.msra.mxu0 0.0
  %1350 = vmatprep.subr.mxu0 0.0
  %1351 = vmatpush1.msra.mxu0 0.0
  %1352 = vmatprep.subr.mxu0 0.0
  %1353 = vmatpush1.msra.mxu0 0.0
  %1354 = vmatprep.subr.mxu0 0.0
  %1355 = vmatpush1.msra.mxu0 0.0
  %1356 = vmatprep.subr.mxu0 0.0
  %1357 = vmatpush1.msra.mxu0 0.0
  %1358 = vmatprep.subr.mxu0 0.0
  %1359 = vmatpush1.msra.mxu0 0.0
  %1360 = vmatprep.subr.mxu0 0.0
  %1361 = vmatpush1.msra.mxu0 0.0
  %1362 = vmatprep.mubr.f32.mxu0 0.0
  %1363 = vmatmul.mubr.f32.gmra.mrb[0].mxu0 %v50
  %v1364 = vpop.f32.mrb[0].mxu0
  %v1365 = vadd.f32 %v1295, %v1364
  %v1366 = vpop.f32.mrb[0].mxu0
  %1367 = vdwg.mxu0
  %v1368 = vmax.f32 %v1365, 0.0
  %v1369 = vld [vmem:[%s3] sm:$0xff]
  %v1370 = vld [vmem:[%s3 + $0x8] sm:$0xff]
  %v1371 = vld [vmem:[%s3 + $0x10] sm:$0xff]
  %v1372 = vld [vmem:[%s3 + $0x18] sm:$0xff]
  %v1373 = vld [vmem:[%s3 + $0x20] sm:$0xff]
  %v1374 = vld [vmem:[%s3 + $0x28] sm:$0xff]
  %v1375 = vld [vmem:[%s3 + $0x30] sm:$0xff]
  %v1376 = vld [vmem:[%s3 + $0x38] sm:$0xff]
  %v1377 = vld [vmem:[%s3 + $0x40] sm:$0xff]
  %v1378 = vld [vmem:[%s3 + $0x48] sm:$0xff]
  %v1379 = vld [vmem:[%s3 + $0x50] sm:$0xff]
  %v1380 = vld [vmem:[%s3 + $0x58] sm:$0xff]
  %v1381 = vld [vmem:[%s3 + $0x60] sm:$0xff]
  %v1382 = vld [vmem:[%s3 + $0x68] sm:$0xff]
  %v1383 = vld [vmem:[%s3 + $0x70] sm:$0xff]
  %v1384 = vld [vmem:[%s3 + $0x78] sm:$0xff]
  %v1385 = vld [vmem:[%s4] sm:$0x1]
  %v1387 = vlaneseq
  %v1388 = vshrl.u32 %v1387, 7
  %v1389 = vsub.s32 0, %v1388
  %v1390 = vrot.slane %v1385, %v1389
  %1392 = vmatprep.subr.mxu0 0.0
  %1393 = vmatpush1.msra.mxu0 %v1369
  %1394 = vmatprep.subr.mxu0 0.0
  %1395 = vmatpush1.msra.mxu0 %v1370
  %1396 = vmatprep.subr.mxu0 0.0
  %1397 = vmatpush1.msra.mxu0 %v1371
  %1398 = vmatprep.subr.mxu0 0.0
  %1399 = vmatpush1.msra.mxu0 %v1372
  %1400 = vmatprep.subr.mxu0 0.0
  %1401 = vmatpush1.msra.mxu0 %v1373
  %1402 = vmatprep.subr.mxu0 0.0
  %1403 = vmatpush1.msra.mxu0 %v1374
  %1404 = vmatprep.subr.mxu0 0.0
  %1405 = vmatpush1.msra.mxu0 %v1375
  %1406 = vmatprep.subr.mxu0 0.0
  %1407 = vmatpush1.msra.mxu0 %v1376
  %1408 = vmatprep.subr.mxu0 0.0
  %1409 = vmatpush1.msra.mxu0 %v1377
  %1410 = vmatprep.subr.mxu0 0.0
  %1411 = vmatpush1.msra.mxu0 %v1378
  %1412 = vmatprep.subr.mxu0 0.0
  %1413 = vmatpush1.msra.mxu0 %v1379
  %1414 = vmatprep.subr.mxu0 0.0
  %1415 = vmatpush1.msra.mxu0 %v1380
  %1416 = vmatprep.subr.mxu0 0.0
  %1417 = vmatpush1.msra.mxu0 %v1381
  %1418 = vmatprep.subr.mxu0 0.0
  %1419 = vmatpush1.msra.mxu0 %v1382
  %1420 = vmatprep.subr.mxu0 0.0
  %1421 = vmatpush1.msra.mxu0 %v1383
  %1422 = vmatprep.subr.mxu0 0.0
  %1423 = vmatpush1.msra.mxu0 %v1384
  %1424 = vmatprep.subr.mxu0 0.0
  %1425 = vmatpush1.msra.mxu0 0.0
  %1426 = vmatprep.subr.mxu0 0.0
  %1427 = vmatpush1.msra.mxu0 0.0
  %1428 = vmatprep.subr.mxu0 0.0
  %1429 = vmatpush1.msra.mxu0 0.0
  %1430 = vmatprep.subr.mxu0 0.0
  %1431 = vmatpush1.msra.mxu0 0.0
  %1432 = vmatprep.subr.mxu0 0.0
  %1433 = vmatpush1.msra.mxu0 0.0
  %1434 = vmatprep.subr.mxu0 0.0
  %1435 = vmatpush1.msra.mxu0 0.0
  %1436 = vmatprep.subr.mxu0 0.0
  %1437 = vmatpush1.msra.mxu0 0.0
  %1438 = vmatprep.subr.mxu0 0.0
  %1439 = vmatpush1.msra.mxu0 0.0
  %1440 = vmatprep.subr.mxu0 0.0
  %1441 = vmatpush1.msra.mxu0 0.0
  %1442 = vmatprep.subr.mxu0 0.0
  %1443 = vmatpush1.msra.mxu0 0.0
  %1444 = vmatprep.subr.mxu0 0.0
  %1445 = vmatpush1.msra.mxu0 0.0
  %1446 = vmatprep.subr.mxu0 0.0
  %1447 = vmatpush1.msra.mxu0 0.0
  %1448 = vmatprep.subr.mxu0 0.0
  %1449 = vmatpush1.msra.mxu0 0.0
  %1450 = vmatprep.subr.mxu0 0.0
  %1451 = vmatpush1.msra.mxu0 0.0
  %1452 = vmatprep.subr.mxu0 0.0
  %1453 = vmatpush1.msra.mxu0 0.0
  %1454 = vmatprep.subr.mxu0 0.0
  %1455 = vmatpush1.msra.mxu0 0.0
  %1456 = vmatprep.mubr.f32.mxu0 0.0
  %1457 = vmatmul.mubr.f32.gmra.mrb[0].mxu0 %v1368
  %v1458 = vpop.f32.mrb[0].mxu0
  %v1459 = vadd.f32 %v1390, %v1458
  %v1460 = vpop.f32.mrb[0].mxu0
  %1461 = vdwg.mxu0
  %v1462 = vmax.f32 %v1459, 0.0
  %v1463 = vld [vmem:[%s5] sm:$0xff]
  %v1464 = vld [vmem:[%s5 + $0x8] sm:$0xff]
  %v1465 = vld [vmem:[%s5 + $0x10] sm:$0xff]
  %v1466 = vld [vmem:[%s5 + $0x18] sm:$0xff]
  %v1467 = vld [vmem:[%s5 + $0x20] sm:$0xff]
  %v1468 = vld [vmem:[%s5 + $0x28] sm:$0xff]
  %v1469 = vld [vmem:[%s5 + $0x30] sm:$0xff]
  %v1470 = vld [vmem:[%s5 + $0x38] sm:$0xff]
  %v1471 = vld [vmem:[%s5 + $0x40] sm:$0xff]
  %v1472 = vld [vmem:[%s5 + $0x48] sm:$0xff]
  %v1473 = vld [vmem:[%s5 + $0x50] sm:$0xff]
  %v1474 = vld [vmem:[%s5 + $0x58] sm:$0xff]
  %v1475 = vld [vmem:[%s5 + $0x60] sm:$0xff]
  %v1476 = vld [vmem:[%s5 + $0x68] sm:$0xff]
  %v1477 = vld [vmem:[%s5 + $0x70] sm:$0xff]
  %v1478 = vld [vmem:[%s5 + $0x78] sm:$0xff]
  %v1479 = vld [vmem:[%s6] sm:$0x1]
  %v1481 = vlaneseq
  %v1482 = vshrl.u32 %v1481, 7
  %v1483 = vsub.s32 0, %v1482
  %v1484 = vrot.slane %v1479, %v1483
  %1486 = vmatprep.subr.mxu0 0.0
  %1487 = vmatpush1.msra.mxu0 %v1463
  %1488 = vmatprep.subr.mxu0 0.0
  %1489 = vmatpush1.msra.mxu0 %v1464
  %1490 = vmatprep.subr.mxu0 0.0
  %1491 = vmatpush1.msra.mxu0 %v1465
  %1492 = vmatprep.subr.mxu0 0.0
  %1493 = vmatpush1.msra.mxu0 %v1466
  %1494 = vmatprep.subr.mxu0 0.0
  %1495 = vmatpush1.msra.mxu0 %v1467
  %1496 = vmatprep.subr.mxu0 0.0
  %1497 = vmatpush1.msra.mxu0 %v1468
  %1498 = vmatprep.subr.mxu0 0.0
  %1499 = vmatpush1.msra.mxu0 %v1469
  %1500 = vmatprep.subr.mxu0 0.0
  %1501 = vmatpush1.msra.mxu0 %v1470
  %1502 = vmatprep.subr.mxu0 0.0
  %1503 = vmatpush1.msra.mxu0 %v1471
  %1504 = vmatprep.subr.mxu0 0.0
  %1505 = vmatpush1.msra.mxu0 %v1472
  %1506 = vmatprep.subr.mxu0 0.0
  %1507 = vmatpush1.msra.mxu0 %v1473
  %1508 = vmatprep.subr.mxu0 0.0
  %1509 = vmatpush1.msra.mxu0 %v1474
  %1510 = vmatprep.subr.mxu0 0.0
  %1511 = vmatpush1.msra.mxu0 %v1475
  %1512 = vmatprep.subr.mxu0 0.0
  %1513 = vmatpush1.msra.mxu0 %v1476
  %1514 = vmatprep.subr.mxu0 0.0
  %1515 = vmatpush1.msra.mxu0 %v1477
  %1516 = vmatprep.subr.mxu0 0.0
  %1517 = vmatpush1.msra.mxu0 %v1478
  %1518 = vmatprep.subr.mxu0 0.0
  %1519 = vmatpush1.msra.mxu0 0.0
  %1520 = vmatprep.subr.mxu0 0.0
  %1521 = vmatpush1.msra.mxu0 0.0
  %1522 = vmatprep.subr.mxu0 0.0
  %1523 = vmatpush1.msra.mxu0 0.0
  %1524 = vmatprep.subr.mxu0 0.0
  %1525 = vmatpush1.msra.mxu0 0.0
  %1526 = vmatprep.subr.mxu0 0.0
  %1527 = vmatpush1.msra.mxu0 0.0
  %1528 = vmatprep.subr.mxu0 0.0
  %1529 = vmatpush1.msra.mxu0 0.0
  %1530 = vmatprep.subr.mxu0 0.0
  %1531 = vmatpush1.msra.mxu0 0.0
  %1532 = vmatprep.subr.mxu0 0.0
  %1533 = vmatpush1.msra.mxu0 0.0
  %1534 = vmatprep.subr.mxu0 0.0
  %1535 = vmatpush1.msra.mxu0 0.0
  %1536 = vmatprep.subr.mxu0 0.0
  %1537 = vmatpush1.msra.mxu0 0.0
  %1538 = vmatprep.subr.mxu0 0.0
  %1539 = vmatpush1.msra.mxu0 0.0
  %1540 = vmatprep.subr.mxu0 0.0
  %1541 = vmatpush1.msra.mxu0 0.0
  %1542 = vmatprep.subr.mxu0 0.0
  %1543 = vmatpush1.msra.mxu0 0.0
  %1544 = vmatprep.subr.mxu0 0.0
  %1545 = vmatpush1.msra.mxu0 0.0
  %1546 = vmatprep.subr.mxu0 0.0
  %1547 = vmatpush1.msra.mxu0 0.0
  %1548 = vmatprep.subr.mxu0 0.0
  %1549 = vmatpush1.msra.mxu0 0.0
  %1550 = vmatprep.mubr.f32.mxu0 0.0
  %1551 = vmatmul.mubr.f32.gmra.mrb[0].mxu0 %v1462
  %v1552 = vpop.f32.mrb[0].mxu0
  %v1553 = vadd.f32 %v1484, %v1552
  %v1554 = vpop.f32.mrb[0].mxu0
  %1555 = vdwg.mxu0
  %1556 = vst [vmem:[%s7] sm:$0xff] %v1553
  // Predicated region
  $region30: #{net_forward.5} parent=0 // pred_check
    _
  $region31: #{net_forward.5} parent=0 // pred_check_branch
    %1558 = sbr.rel (0) target = $region33
  $region32: #{net_forward.5} parent=0 // pred_region
    _
  $region33: #{net_forward.5} parent=0 // pred_fallthru
    _
  // Predicated region
  $region34: #{net_forward.5} parent=0 // pred_check
    _
  $region35: #{net_forward.5} parent=0 // pred_check_branch
    %1560 = sbr.rel (0) target = $region37
  $region36: #{net_forward.5} parent=0 // pred_region
    _
  $region37: #{net_forward.5} parent=0 // pred_fallthru
    _

</llo_original>
